<compile_context>
chip_gen: v5e
topology: v5e:2x2
jax: 0.10.0
libtpu: 0.0.40
codegen_flags: <defaults>
</compile_context>

<pallas_src>
import numpy as np
import jax
import jax.numpy as jnp
from jax import lax
from jax.experimental import pallas as pl
from jax.experimental.pallas import tpu as pltpu


def _round_up(x, m):
    return ((x + m - 1) // m) * m


# -----------------------------------------------------------------------------
# deterministic "parameters": windowed DFT matrix (transposed), kaldi mel banks
# -----------------------------------------------------------------------------
def _windowed_dft_T(n_fft, win_length, n_bins, k_mm):
    """Hann-windowed [cos; sin] DFT matrix, transposed to (2*n_bins, k_mm).

    Columns n >= n_fft (present only when hop does not divide n_fft) carry a
    zero window, so they contribute nothing to the matmul.
    """
    win = np.zeros(k_mm, dtype=np.float64)
    left = (n_fft - win_length) // 2          # torch.stft centers the window
    # torch.hann_window(win_length, periodic=False) == np.hanning(win_length)
    win[left:left + win_length] = np.hanning(win_length)
    n = np.arange(k_mm, dtype=np.float64)[None, :]
    k = np.arange(n_bins, dtype=np.float64)[:, None]
    ang = 2.0 * np.pi * k * n / float(n_fft)
    # only |X[k]|^2 is needed -> sign of the imaginary part is irrelevant.
    return np.concatenate([np.cos(ang) * win, np.sin(ang) * win], axis=0)


def _kaldi_mel_banks(num_bins, n_fft, sample_freq, low_freq, high_freq):
    # numpy port of torchaudio.compliance.kaldi.get_mel_banks (no vtln warp).
    num_fft_bins = n_fft // 2
    nyquist = 0.5 * sample_freq
    if high_freq <= 0.0:
        high_freq += nyquist
    assert 0.0 <= low_freq < high_freq <= nyquist
    fft_bin_width = sample_freq / float(n_fft)

    def mel(f):
        return 1127.0 * np.log(1.0 + np.asarray(f, dtype=np.float64) / 700.0)

    mel_low, mel_high = mel(low_freq), mel(high_freq)
    mel_delta = (mel_high - mel_low) / (num_bins + 1)
    b = np.arange(num_bins, dtype=np.float64)[:, None]
    left = mel_low + b * mel_delta
    center = mel_low + (b + 1.0) * mel_delta
    right = mel_low + (b + 2.0) * mel_delta
    m = mel(fft_bin_width * np.arange(num_fft_bins, dtype=np.float64))[None, :]
    up = (m - left) / (center - left)
    down = (right - m) / (right - center)
    return np.maximum(0.0, np.minimum(up, down))      # [num_bins, num_fft_bins]


# -----------------------------------------------------------------------------
# Pallas kernel: frame assembly (lane axis) + windowed DFT + power + mel + log
# -----------------------------------------------------------------------------
def _make_logmel_kernel(*, w_c, n_bins, n_mels, n_col_blocks, n_frames, target_t):
    def kernel(chunks_ref, wcs_ref, mel_ref, out_ref):
        full = chunks_ref[0]                              # (hop, w_in) bf16

        # FWT[k*hop + r, t] = sample (t + k)*hop + r  ==  sample k*hop + r of
        # frame t. Each part is a full-lane-width slab shifted by k lanes; the
        # stack along sublanes is aligned (hop is a multiple of the packing).
        parts = [full[:, k:k + w_c] for k in range(n_col_blocks)]
        fwt = parts[0] if n_col_blocks == 1 else jnp.concatenate(parts, axis=0)

        # windowed real/imag DFT: single bf16 MXU matmul, f32 accumulation.
        ri = jnp.dot(wcs_ref[...], fwt,
                     preferred_element_type=jnp.float32)  # (2K, w_c) f32
        re = ri[:n_bins, :]                                # aligned sublane split
        im = ri[n_bins:, :]
        power = re * re + im * im                          # (K, w_c) f32

        # natural-layout mel projection -> lane-dense (n_mels, w_c)
        melspec = jnp.dot(mel_ref[...], power,
                          preferred_element_type=jnp.float32)
        logmel = (jnp.log(melspec + 1e-5) + 4.5) * 0.2     # fused log + affine

        out = logmel[:, :target_t]
        if n_frames < target_t:   # static -> pad select only emitted if needed
            # torch zero-pads AFTER the log and BEFORE (x+4.5)/5 -> pad = 0.9
            t_idx = lax.broadcasted_iota(jnp.int32, (n_mels, target_t), 1)
            out = jnp.where(t_idx < n_frames, out, jnp.float32(0.9))
        out_ref[0] = out

    return kernel


# -----------------------------------------------------------------------------
# wrapper reproducing AugmentMelSTFT.forward (eval mode)
# -----------------------------------------------------------------------------
def augment_mel_stft(x, *, n_mels=64, sr=8000, win_length=192, hopsize=64,
                     n_fft=256, fmin=0.0, fmax=None, fmin_aug_range=10,
                     fmax_aug_range=200, target_t=1000):
    assert fmin_aug_range >= 1 and fmax_aug_range >= 1
    assert win_length <= n_fft and n_fft % 8 == 0
    if fmax is None:
        fmax = sr // 2 - fmax_aug_range // 2
    fmax = float(fmax)

    b, _ = x.shape
    x = x.astype(jnp.float32)

    # 1) preemphasis: conv1d with kernel [-0.97, 1] (cross-correlation, valid)
    xp = x[:, 1:] - 0.97 * x[:, :-1]                       # [B, T-1]

    # 2) torch.stft(center=True): reflect pad by n_fft//2 on both sides
    pad = n_fft // 2
    xp = jnp.pad(xp, ((0, 0), (pad, pad)), mode="reflect")
    wav_len = xp.shape[1]
    n_frames = 1 + (wav_len - n_fft) // hopsize            # true frame count

    # 3) chunk layout for the kernel: frames on the lane axis.
    n_col_blocks = -(-n_fft // hopsize)       # hop-wide column blocks per frame
    n_extra = n_col_blocks - 1                # extra chunks needed for overlap
    k_mm = n_col_blocks * hopsize             # DFT-matmul contraction length
    w_c = _round_up(target_t, 128)            # in-kernel compute width (lanes)
    w_in = w_c + _round_up(n_extra, 128)      # input lane width (covers overlap)

    need = w_in * hopsize
    if wav_len < need:
        xs = jnp.pad(xp, ((0, 0), (0, need - wav_len)))
    else:
        xs = xp[:, :need]
    # [B, hop, w_in] bf16: chunksT[b, r, c] = xp[b, c*hop + r]
    chunks_t = jnp.transpose(xs.reshape(b, w_in, hopsize),
                             (0, 2, 1)).astype(jnp.bfloat16)

    # deterministic constants. torch pads mel_basis with a zero Nyquist column,
    # so only the first n_fft//2 spectrogram bins are ever used.
    n_bins = n_fft // 2
    wcs_t = jnp.asarray(_windowed_dft_T(n_fft, win_length, n_bins, k_mm),
                        dtype=jnp.bfloat16)                # (2K, k_mm)
    mel_fb = jnp.asarray(
        _kaldi_mel_banks(n_mels, n_fft, float(sr), float(fmin), fmax),
        dtype=jnp.float32)                                 # (n_mels, K)

    kernel = _make_logmel_kernel(w_c=w_c, n_bins=n_bins, n_mels=n_mels,
                                 n_col_blocks=n_col_blocks, n_frames=n_frames,
                                 target_t=target_t)

    out = pl.pallas_call(
        kernel,
        out_shape=jax.ShapeDtypeStruct((b, n_mels, target_t), jnp.float32),
        grid_spec=pltpu.PrefetchScalarGridSpec(
            num_scalar_prefetch=0,
            grid=(b,),
            in_specs=[
                # all chunks (incl. overlap) of this batch item, one DMA/step
                pl.BlockSpec((1, hopsize, w_in), lambda bi: (bi, 0, 0)),
                # resident constants (index map constant -> fetched once)
                pl.BlockSpec((2 * n_bins, k_mm), lambda bi: (0, 0)),
                pl.BlockSpec((n_mels, n_bins), lambda bi: (0, 0)),
            ],
            out_specs=pl.BlockSpec((1, n_mels, target_t), lambda bi: (bi, 0, 0)),
        ),
        compiler_params=pltpu.CompilerParams(
            dimension_semantics=("parallel",)),
    )(chunks_t, wcs_t, mel_fb)
    return out


if __name__ == "__main__":
    key = jax.random.PRNGKey(0)
    B, T = 2, 2048                                         # small waveform input
    x = jax.random.normal(key, (B, T), dtype=jnp.float32)

    fn = jax.jit(lambda v: augment_mel_stft(
        v, n_mels=64, sr=8000, win_length=192, hopsize=64, n_fft=256,
        fmin=0.0, fmax=None, fmin_aug_range=10, fmax_aug_range=200))
    out = jax.block_until_ready(fn(x))

    assert out.shape == (B, 64, 1000), out.shape
    assert out.dtype == jnp.float32
    assert bool(jnp.all(jnp.isfinite(out)))
    print("KERNEL_OK")
</pallas_src>

<mosaic_0001>
module attributes {stable_mosaic.version = 11 : i64} {
  func.func @kernel(%arg0: i32, %arg1: memref<1x64x1152xbf16, #tpu.memory_space<vmem>>, %arg2: memref<256x256xbf16, #tpu.memory_space<vmem>>, %arg3: memref<64x128xf32, #tpu.memory_space<vmem>>, %arg4: memref<1x64x1000xf32, #tpu.memory_space<vmem>>) attributes {dimension_semantics = [#tpu.dimension_semantics<parallel>], iteration_bounds = array<i64: 2>, scalar_prefetch = 0 : i64, scratch_operands = 0 : i64, tpu.core_type = #tpu.core_type<tc>, window_params = [{transform_indices = @transform_0, window_bounds = array<i64: 1, 64, 1152>}, {pipeline_mode = #tpu.pipeline_mode<synchronous>, transform_indices = @transform_1, window_bounds = array<i64: 256, 256>}, {pipeline_mode = #tpu.pipeline_mode<synchronous>, transform_indices = @transform_2, window_bounds = array<i64: 64, 128>}, {transform_indices = @transform_3, window_bounds = array<i64: 1, 64, 1000>}]} {
    %c0 = arith.constant 0 : index
    %c0_0 = arith.constant 0 : index
    %c0_1 = arith.constant 0 : index
    %0 = vector.load %arg1[%c0, %c0_0, %c0_1] : memref<1x64x1152xbf16, #tpu.memory_space<vmem>>, vector<1x64x1152xbf16>
    %1 = vector.shape_cast %0 : vector<1x64x1152xbf16> to vector<64x1152xbf16>
    %2 = vector.extract_strided_slice %1 {offsets = [0, 0], sizes = [64, 1024], strides = [1, 1]} : vector<64x1152xbf16> to vector<64x1024xbf16>
    %3 = vector.extract_strided_slice %1 {offsets = [0, 1], sizes = [64, 1024], strides = [1, 1]} : vector<64x1152xbf16> to vector<64x1024xbf16>
    %4 = vector.extract_strided_slice %1 {offsets = [0, 2], sizes = [64, 1024], strides = [1, 1]} : vector<64x1152xbf16> to vector<64x1024xbf16>
    %5 = vector.extract_strided_slice %1 {offsets = [0, 3], sizes = [64, 1024], strides = [1, 1]} : vector<64x1152xbf16> to vector<64x1024xbf16>
    %6 = tpu.concatenate %2, %3, %4, %5 in 0 : vector<64x1024xbf16>, vector<64x1024xbf16>, vector<64x1024xbf16>, vector<64x1024xbf16> -> vector<256x1024xbf16>
    %c0_2 = arith.constant 0 : index
    %c0_3 = arith.constant 0 : index
    %7 = vector.load %arg2[%c0_2, %c0_3] : memref<256x256xbf16, #tpu.memory_space<vmem>>, vector<256x256xbf16>
    %cst = arith.constant dense<0.000000e+00> : vector<256x1024xf32>
    %8 = tpu.matmul %7, %6, %cst {dimension_numbers = #tpu.dot_dimension_numbers<[1], [0], [0], [1], [0, 0, 1, 1], [], []>} : vector<256x256xbf16>, vector<256x1024xbf16>, vector<256x1024xf32> -> vector<256x1024xf32>
    %9 = vector.extract_strided_slice %8 {offsets = [0, 0], sizes = [128, 1024], strides = [1, 1]} : vector<256x1024xf32> to vector<128x1024xf32>
    %10 = vector.extract_strided_slice %8 {offsets = [128, 0], sizes = [128, 1024], strides = [1, 1]} : vector<256x1024xf32> to vector<128x1024xf32>
    %11 = arith.mulf %9, %9 : vector<128x1024xf32>
    %12 = arith.mulf %10, %10 : vector<128x1024xf32>
    %13 = arith.addf %11, %12 : vector<128x1024xf32>
    %c0_4 = arith.constant 0 : index
    %c0_5 = arith.constant 0 : index
    %14 = vector.load %arg3[%c0_4, %c0_5] : memref<64x128xf32, #tpu.memory_space<vmem>>, vector<64x128xf32>
    %cst_6 = arith.constant dense<0.000000e+00> : vector<64x1024xf32>
    %15 = tpu.matmul %14, %13, %cst_6 {dimension_numbers = #tpu.dot_dimension_numbers<[1], [0], [0], [1], [0, 0, 1, 1], [], []>} : vector<64x128xf32>, vector<128x1024xf32>, vector<64x1024xf32> -> vector<64x1024xf32>
    %cst_7 = arith.constant 9.99999974E-6 : f32
    %16 = vector.broadcast %cst_7 : f32 to vector<64x1024xf32>
    %17 = arith.addf %15, %16 : vector<64x1024xf32>
    %18 = math.log %17 : vector<64x1024xf32>
    %cst_8 = arith.constant 4.500000e+00 : f32
    %19 = vector.broadcast %cst_8 : f32 to vector<64x1024xf32>
    %20 = arith.addf %18, %19 : vector<64x1024xf32>
    %cst_9 = arith.constant 2.000000e-01 : f32
    %21 = vector.broadcast %cst_9 : f32 to vector<64x1024xf32>
    %22 = arith.mulf %20, %21 : vector<64x1024xf32>
    %23 = vector.extract_strided_slice %22 {offsets = [0, 0], sizes = [64, 1000], strides = [1, 1]} : vector<64x1024xf32> to vector<64x1000xf32>
    %24 = tpu.iota {dimensions = array<i32: 1>} : vector<64x1000xi32>
    %c32_i32 = arith.constant 32 : i32
    %25 = vector.broadcast %c32_i32 : i32 to vector<64x1000xi32>
    %26 = arith.cmpi slt, %24, %25 : vector<64x1000xi32>
    %cst_10 = arith.constant 0.899999976 : f32
    %27 = vector.broadcast %cst_10 : f32 to vector<64x1000xf32>
    %28 = arith.select %26, %23, %27 : vector<64x1000xi1>, vector<64x1000xf32>
    %c0_11 = arith.constant 0 : index
    %c0_12 = arith.constant 0 : index
    %c0_13 = arith.constant 0 : index
    %29 = vector.load %arg4[%c0_11, %c0_12, %c0_13] : memref<1x64x1000xf32, #tpu.memory_space<vmem>>, vector<1x64x1000xf32>
    %30 = vector.shape_cast %29 : vector<1x64x1000xf32> to vector<64x1000xf32>
    %31 = vector.shape_cast %28 : vector<64x1000xf32> to vector<1x64x1000xf32>
    tpu.vector_store %arg4[%c0_11, %c0_12, %c0_13], %31 {strides = array<i32>} : memref<1x64x1000xf32, #tpu.memory_space<vmem>>, vector<1x64x1000xf32>,
    return
  }
  func.func @transform_0(%arg0: i32) -> (i32, i32, i32) {
    %c0_i32 = arith.constant 0 : i32
    %c0_i32_0 = arith.constant 0 : i32
    %c0_i32_1 = arith.constant 0 : i32
    return %arg0, %c0_i32, %c0_i32_0 : i32, i32, i32
  }
  func.func @transform_1(%arg0: i32) -> (i32, i32) {
    %c0_i32 = arith.constant 0 : i32
    %c0_i32_0 = arith.constant 0 : i32
    %c0_i32_1 = arith.constant 0 : i32
    return %c0_i32, %c0_i32_0 : i32, i32
  }
  func.func @transform_2(%arg0: i32) -> (i32, i32) {
    %c0_i32 = arith.constant 0 : i32
    %c0_i32_0 = arith.constant 0 : i32
    %c0_i32_1 = arith.constant 0 : i32
    return %c0_i32, %c0_i32_0 : i32, i32
  }
  func.func @transform_3(%arg0: i32) -> (i32, i32, i32) {
    %c0_i32 = arith.constant 0 : i32
    %c0_i32_0 = arith.constant 0 : i32
    %c0_i32_1 = arith.constant 0 : i32
    return %arg0, %c0_i32, %c0_i32_0 : i32, i32, i32
  }
}

</mosaic_0001>

<llo_original>
// kernel: _lambda_.1
$region0: #{_lambda_.1}
  #allocation0 [shape = 'u32[]', space=smem, size = 0x4, offset = 0x4, fixed_abs, tag = 'smem constant byte address 0x4 - core index']
  #allocation1 [shape = 'u32[72,128]{1,0:T(1,128)}', space=vmem, size = 0x9000, scoped, tag = 'internal scratch']
  %s0 = inlined_call_operand.vmem [shape: bf16[2,64,1152], index: 0, kind: input, shape index: {}]
  %s1 = inlined_call_operand.vmem [shape: bf16[256,256], index: 1, kind: input, shape index: {}]
  %s2 = inlined_call_operand.vmem [shape: f32[64,128], index: 2, kind: input, shape index: {}]
  %s3 = inlined_call_operand.hbm [shape: f32[2,64,1000], index: 3, kind: output, shape index: {}]
  %s4 = sld [smem:[#allocation0]]
  $region45: #{_lambda_.1} parent=0
    _
  %s6 = ssub.s32 1, %s4
  %s7 = scalar_select 0, %s6, %s4
  $region1: #{_lambda_.1} parent=0
    #allocation2 [shape = 'u8[524288]{0}', space=vmem, size = 0x80000, scoped, tag = 'output window, operand 0']
    #allocation3 [shape = 's32[2]{0}', space=sflag, size = 0x8, scoped, tag = 'scoped memory for _lambda_.1']
    %8 = vsyncpa [#allocation3], 0
    %s9 = scalar_lea.sflag [#allocation3], 1
    %10 = vsyncpa %s9, 0
    loop: start=0, step=1, limit=4
    $region2: #{_lambda_.1} parent=1 // loop_pre_header
      _
    $region3: #{_lambda_.1} parent=1 // loop_header
      %s12 = sphi 0, %s16
      %p13 = scmp.ge.s32.totalorder %s12, 4
      %s22 = sphi 0, %s24
      %s25 = sphi 0, %s22
      %s26 = sphi 0, %s25
      %s42 = sphi 0, %s26
      %s46 = sphi 0, %s46
      %s48 = sphi 0, %s46
      %s49 = sphi 0, %s48
      %s63 = sphi 0, %s49
      %s67 = sphi 0, %s67
      %s69 = sphi 0, %s67
      %s70 = sphi 0, %s69
      %s84 = sphi 0, %s70
      %s90 = sphi 0, %s92
      %s93 = sphi 0, %s90
      %s94 = sphi 0, %s93
      %s110 = sphi 0, %s94
    $region4: #{_lambda_.1} parent=1 // loop_header_branch
      %15 = sbr.rel (%p13) target = $region8
    $region5: #{_lambda_.1} parent=1 // loop_body
      %s17 = ssub.s32 %s12, 1
      %s18 = ssub.s32 %s12, 2
      %s19 = sadd.s32 %s12, 1
      %s20 = ssub.s32 %s12, %s19
      %p21 = scmp.eq.s32.totalorder %s20, 0
      %s23 = sadd.s32 %s22, 1
      %s24 = scalar_select %p21, %s22, %s23
      %p27 = pneg %p21
      %p28 = scmp.eq.s32.totalorder %s12, 1
      %p29 = por %p27, %p28
      %p30 = scmp.ne.s32.totalorder %s22, %s25
      %p31 = scmp.eq.s32.totalorder %s12, 0
      %p32 = por %p30, %p31
      %p33 = scmp.ne.s32.totalorder %s22, %s25
      %p34 = scmp.eq.s32.totalorder %s17, 1
      %p35 = por %p33, %p34
      %p36 = scmp.ne.s32.totalorder %s25, %s26
      %p37 = scmp.eq.s32.totalorder %s17, 0
      %p38 = por %p36, %p37
      %p39 = scmp.ne.s32.totalorder %s25, %s26
      %p40 = scmp.eq.s32.totalorder %s18, 1
      %p41 = por %p39, %p40
      %p43 = scmp.ne.s32.totalorder %s26, %s42
      %p44 = scmp.eq.s32.totalorder %s18, 0
      %p45 = por %p43, %p44
      %s47 = sadd.s32 %s46, 1
      %p50 = scmp.eq.s32.totalorder %s12, 1
      %p51 = scmp.ne.s32.totalorder %s46, %s48
      %p52 = scmp.eq.s32.totalorder %s12, 0
      %p53 = por %p51, %p52
      %p54 = scmp.ne.s32.totalorder %s46, %s48
      %p55 = scmp.eq.s32.totalorder %s17, 1
      %p56 = por %p54, %p55
      %p57 = scmp.ne.s32.totalorder %s48, %s49
      %p58 = scmp.eq.s32.totalorder %s17, 0
      %p59 = por %p57, %p58
      %p60 = scmp.ne.s32.totalorder %s48, %s49
      %p61 = scmp.eq.s32.totalorder %s18, 1
      %p62 = por %p60, %p61
      %p64 = scmp.ne.s32.totalorder %s49, %s63
      %p65 = scmp.eq.s32.totalorder %s18, 0
      %p66 = por %p64, %p65
      %s68 = sadd.s32 %s67, 1
      %p71 = scmp.eq.s32.totalorder %s12, 1
      %p72 = scmp.ne.s32.totalorder %s67, %s69
      %p73 = scmp.eq.s32.totalorder %s12, 0
      %p74 = por %p72, %p73
      %p75 = scmp.ne.s32.totalorder %s67, %s69
      %p76 = scmp.eq.s32.totalorder %s17, 1
      %p77 = por %p75, %p76
      %p78 = scmp.ne.s32.totalorder %s69, %s70
      %p79 = scmp.eq.s32.totalorder %s17, 0
      %p80 = por %p78, %p79
      %p81 = scmp.ne.s32.totalorder %s69, %s70
      %p82 = scmp.eq.s32.totalorder %s18, 1
      %p83 = por %p81, %p82
      %p85 = scmp.ne.s32.totalorder %s70, %s84
      %p86 = scmp.eq.s32.totalorder %s18, 0
      %p87 = por %p85, %p86
      %s88 = ssub.s32 %s12, %s19
      %p89 = scmp.eq.s32.totalorder %s88, 0
      %s91 = sadd.s32 %s90, 1
      %s92 = scalar_select %p89, %s90, %s91
      %p95 = pneg %p89
      %p96 = scmp.eq.s32.totalorder %s12, 1
      %p97 = por %p95, %p96
      %p98 = scmp.ne.s32.totalorder %s90, %s93
      %p99 = scmp.eq.s32.totalorder %s12, 0
      %p100 = por %p98, %p99
      %p101 = scmp.ne.s32.totalorder %s90, %s93
      %p102 = scmp.eq.s32.totalorder %s17, 1
      %p103 = por %p101, %p102
      %p104 = scmp.ne.s32.totalorder %s93, %s94
      %p105 = scmp.eq.s32.totalorder %s17, 0
      %p106 = por %p104, %p105
      %p107 = scmp.ne.s32.totalorder %s93, %s94
      %p108 = scmp.eq.s32.totalorder %s18, 1
      %p109 = por %p107, %p108
      %p111 = scmp.ne.s32.totalorder %s94, %s110
      %p112 = scmp.eq.s32.totalorder %s18, 0
      %p113 = por %p111, %p112
      %p114 = scmp.le.s32.totalorder 1, %s12
      %p115 = scmp.lt.s32.totalorder %s12, 3
      %p116 = pnand %p114, %p115
      %p117 = pneg %p116
      // Predicated region
      $region9: #{_lambda_.1} parent=5 // pred_check
        _
      $region10: #{_lambda_.1} parent=5 // pred_check_branch
        %119 = sbr.rel (%p116) target = $region12
      $region11: #{_lambda_.1} parent=5 // pred_region
        %s120 = ssub.s32 %s12, 1
        // Predicated region
        $region13: #{_lambda_.1} parent=11 // pred_check
          %p121 = pneg %p59
        $region14: #{_lambda_.1} parent=11 // pred_check_branch
          %123 = sbr.rel (%p121) target = $region16
        $region15: #{_lambda_.1} parent=11 // pred_region
          _
        $region16: #{_lambda_.1} parent=11 // pred_fallthru
          _
        // Predicated region
        $region17: #{_lambda_.1} parent=11 // pred_check
          %p124 = pneg %p80
        $region18: #{_lambda_.1} parent=11 // pred_check_branch
          %126 = sbr.rel (%p124) target = $region20
        $region19: #{_lambda_.1} parent=11 // pred_region
          _
        $region20: #{_lambda_.1} parent=11 // pred_fallthru
          _
      $region12: #{_lambda_.1} parent=5 // pred_fallthru
        _
      %p127 = scmp.lt.s32.totalorder %s12, 2
      // Predicated region
      $region21: #{_lambda_.1} parent=5 // pred_check
        %p128 = pneg %p127
      $region22: #{_lambda_.1} parent=5 // pred_check_branch
        %130 = sbr.rel (%p128) target = $region24
      $region23: #{_lambda_.1} parent=5 // pred_region
        // Predicated region
        $region25: #{_lambda_.1} parent=23 // pred_check
          %p131 = pneg %p32
        $region26: #{_lambda_.1} parent=23 // pred_check_branch
          %133 = sbr.rel (%p131) target = $region28
        $region27: #{_lambda_.1} parent=23 // pred_region
          %p134 = scmp.lt.s32.totalorder %s12, 1
          %s135 = scalar_select %p134, %s12, 1
          %s136 = smul.addr %s135, 72
          %s137 = smul.addr %s136, 4
          %s138 = scalar_lea.vmem %s0, %s137
        $region28: #{_lambda_.1} parent=23 // pred_fallthru
          _
      $region24: #{_lambda_.1} parent=5 // pred_fallthru
        _
      %p139 = scmp.le.s32.totalorder 1, %s12
      %p140 = scmp.lt.s32.totalorder %s12, 3
      %p141 = pnand %p139, %p140
      %p142 = pneg %p141
      // Predicated region
      $region29: #{_lambda_.1} parent=5 // pred_check
        _
      $region30: #{_lambda_.1} parent=5 // pred_check_branch
        %144 = sbr.rel (%p141) target = $region32
      $region31: #{_lambda_.1} parent=5 // pred_region
        %s145 = ssub.s32 %s12, 1
        %p146 = scmp.lt.s32.totalorder %s17, 1
        %s147 = scalar_select %p146, %s17, 1
        %s148 = smul.addr %s147, 72
        %s149 = smul.addr %s148, 4
        %s150 = scalar_lea.vmem %s0, %s149
        %p151 = pneg %p38
        %p152 = pneg %p35
        %p153 = pneg %p59
        %p154 = pneg %p56
        %p155 = pneg %p80
        %p156 = pneg %p77
        %p157 = pneg %p106
        %p158 = pneg %p103
        %s159 = sand.u32 %s93, 1
        %s160 = scalar_lea.sflag [#allocation3], %s159
        %s161 = sand.u32 %s93, 1
        %s162 = smul.addr %s161, 512
        %s163 = scalar_lea.vmem [#allocation2], %s162
        %p164 = scmp.lt.s32.totalorder %s17, 1
        %s165 = scalar_select %p164, %s17, 1
        %s166 = smul.addr %s165, 72
        %s167 = smul.addr %s166, 4
        %s168 = scalar_lea.vmem %s0, %s167
        %v169 = vld [vmem:[%s168] sm:$0xff]
        %v170 = vld [vmem:[%s168 + $0x8] sm:$0xff]
        %v171 = vld [vmem:[%s168 + $0x10] sm:$0xff]
        %v172 = vld [vmem:[%s168 + $0x18] sm:$0xff]
        %v173 = vld [vmem:[%s168 + $0x20] sm:$0xf]
        %v174 = vld [vmem:[%s168 + $0x24] sm:$0xff]
        %v175 = vld [vmem:[%s168 + $0x2c] sm:$0xff]
        %v176 = vld [vmem:[%s168 + $0x34] sm:$0xff]
        %v177 = vld [vmem:[%s168 + $0x3c] sm:$0xff]
        %v178 = vld [vmem:[%s168 + $0x44] sm:$0xf]
        %v179 = vld [vmem:[%s168 + $0x48] sm:$0xff]
        %v180 = vld [vmem:[%s168 + $0x50] sm:$0xff]
        %v181 = vld [vmem:[%s168 + $0x58] sm:$0xff]
        %v182 = vld [vmem:[%s168 + $0x60] sm:$0xff]
        %v183 = vld [vmem:[%s168 + $0x68] sm:$0xf]
        %v184 = vld [vmem:[%s168 + $0x6c] sm:$0xff]
        %v185 = vld [vmem:[%s168 + $0x74] sm:$0xff]
        %v186 = vld [vmem:[%s168 + $0x7c] sm:$0xff]
        %v187 = vld [vmem:[%s168 + $0x84] sm:$0xff]
        %v188 = vld [vmem:[%s168 + $0x8c] sm:$0xf]
        %v189 = vld [vmem:[%s168 + $0x90] sm:$0xff]
        %v190 = vld [vmem:[%s168 + $0x98] sm:$0xff]
        %v191 = vld [vmem:[%s168 + $0xa0] sm:$0xff]
        %v192 = vld [vmem:[%s168 + $0xa8] sm:$0xff]
        %v193 = vld [vmem:[%s168 + $0xb0] sm:$0xf]
        %v194 = vld [vmem:[%s168 + $0xb4] sm:$0xff]
        %v195 = vld [vmem:[%s168 + $0xbc] sm:$0xff]
        %v196 = vld [vmem:[%s168 + $0xc4] sm:$0xff]
        %v197 = vld [vmem:[%s168 + $0xcc] sm:$0xff]
        %v198 = vld [vmem:[%s168 + $0xd4] sm:$0xf]
        %v199 = vld [vmem:[%s168 + $0xd8] sm:$0xff]
        %v200 = vld [vmem:[%s168 + $0xe0] sm:$0xff]
        %v201 = vld [vmem:[%s168 + $0xe8] sm:$0xff]
        %v202 = vld [vmem:[%s168 + $0xf0] sm:$0xff]
        %v203 = vld [vmem:[%s168 + $0xf8] sm:$0xf]
        %v204 = vld [vmem:[%s168 + $0xfc] sm:$0xff]
        %v205 = vld [vmem:[%s168 + $0x104] sm:$0xff]
        %v206 = vld [vmem:[%s168 + $0x10c] sm:$0xff]
        %v207 = vld [vmem:[%s168 + $0x114] sm:$0xff]
        %v208 = vld [vmem:[%s168 + $0x11c] sm:$0xf]
        %v241 = vunpack.c.l.b16 %v169
        %v242 = vunpack.c.h.b16 %v169
        %v243 = vunpack.c.l.b16 %v170
        %v244 = vunpack.c.h.b16 %v170
        %v245 = vunpack.c.l.b16 %v171
        %v246 = vunpack.c.h.b16 %v171
        %v247 = vunpack.c.l.b16 %v172
        %v248 = vunpack.c.h.b16 %v172
        %v249 = vunpack.c.l.b16 %v174
        %v250 = vunpack.c.h.b16 %v174
        %v251 = vunpack.c.l.b16 %v175
        %v252 = vunpack.c.h.b16 %v175
        %v253 = vunpack.c.l.b16 %v176
        %v254 = vunpack.c.h.b16 %v176
        %v255 = vunpack.c.l.b16 %v177
        %v256 = vunpack.c.h.b16 %v177
        %v257 = vunpack.c.l.b16 %v179
        %v258 = vunpack.c.h.b16 %v179
        %v259 = vunpack.c.l.b16 %v180
        %v260 = vunpack.c.h.b16 %v180
        %v261 = vunpack.c.l.b16 %v181
        %v262 = vunpack.c.h.b16 %v181
        %v263 = vunpack.c.l.b16 %v182
        %v264 = vunpack.c.h.b16 %v182
        %v265 = vunpack.c.l.b16 %v184
        %v266 = vunpack.c.h.b16 %v184
        %v267 = vunpack.c.l.b16 %v185
        %v268 = vunpack.c.h.b16 %v185
        %v269 = vunpack.c.l.b16 %v186
        %v270 = vunpack.c.h.b16 %v186
        %v271 = vunpack.c.l.b16 %v187
        %v272 = vunpack.c.h.b16 %v187
        %v273 = vunpack.c.l.b16 %v189
        %v274 = vunpack.c.h.b16 %v189
        %v275 = vunpack.c.l.b16 %v190
        %v276 = vunpack.c.h.b16 %v190
        %v277 = vunpack.c.l.b16 %v191
        %v278 = vunpack.c.h.b16 %v191
        %v279 = vunpack.c.l.b16 %v192
        %v280 = vunpack.c.h.b16 %v192
        %v281 = vunpack.c.l.b16 %v194
        %v282 = vunpack.c.h.b16 %v194
        %v283 = vunpack.c.l.b16 %v195
        %v284 = vunpack.c.h.b16 %v195
        %v285 = vunpack.c.l.b16 %v196
        %v286 = vunpack.c.h.b16 %v196
        %v287 = vunpack.c.l.b16 %v197
        %v288 = vunpack.c.h.b16 %v197
        %v289 = vunpack.c.l.b16 %v199
        %v290 = vunpack.c.h.b16 %v199
        %v291 = vunpack.c.l.b16 %v200
        %v292 = vunpack.c.h.b16 %v200
        %v293 = vunpack.c.l.b16 %v201
        %v294 = vunpack.c.h.b16 %v201
        %v295 = vunpack.c.l.b16 %v202
        %v296 = vunpack.c.h.b16 %v202
        %v297 = vunpack.c.l.b16 %v204
        %v298 = vunpack.c.h.b16 %v204
        %v299 = vunpack.c.l.b16 %v205
        %v300 = vunpack.c.h.b16 %v205
        %v301 = vunpack.c.l.b16 %v206
        %v302 = vunpack.c.h.b16 %v206
        %v303 = vunpack.c.l.b16 %v207
        %v304 = vunpack.c.h.b16 %v207
        %v305 = vpack.c.b16 %v249, %v241
        %v306 = vpack.c.b16 %v250, %v242
        %v307 = vpack.c.b16 %v251, %v243
        %v308 = vpack.c.b16 %v252, %v244
        %v309 = vpack.c.b16 %v253, %v245
        %v310 = vpack.c.b16 %v254, %v246
        %v311 = vpack.c.b16 %v255, %v247
        %v312 = vpack.c.b16 %v256, %v248
        %v313 = vpack.c.b16 %v265, %v257
        %v314 = vpack.c.b16 %v266, %v258
        %v315 = vpack.c.b16 %v267, %v259
        %v316 = vpack.c.b16 %v268, %v260
        %v317 = vpack.c.b16 %v269, %v261
        %v318 = vpack.c.b16 %v270, %v262
        %v319 = vpack.c.b16 %v271, %v263
        %v320 = vpack.c.b16 %v272, %v264
        %v321 = vpack.c.b16 %v281, %v273
        %v322 = vpack.c.b16 %v282, %v274
        %v323 = vpack.c.b16 %v283, %v275
        %v324 = vpack.c.b16 %v284, %v276
        %v325 = vpack.c.b16 %v285, %v277
        %v326 = vpack.c.b16 %v286, %v278
        %v327 = vpack.c.b16 %v287, %v279
        %v328 = vpack.c.b16 %v288, %v280
        %v329 = vpack.c.b16 %v297, %v289
        %v330 = vpack.c.b16 %v298, %v290
        %v331 = vpack.c.b16 %v299, %v291
        %v332 = vpack.c.b16 %v300, %v292
        %v333 = vpack.c.b16 %v301, %v293
        %v334 = vpack.c.b16 %v302, %v294
        %v335 = vpack.c.b16 %v303, %v295
        %v336 = vpack.c.b16 %v304, %v296
        %v377 = vunpack.c.l.b16 %v173
        %v378 = vunpack.c.l.b16 %v178
        %v379 = vunpack.c.l.b16 %v183
        %v380 = vunpack.c.l.b16 %v188
        %v381 = vunpack.c.l.b16 %v193
        %v382 = vunpack.c.l.b16 %v198
        %v383 = vunpack.c.l.b16 %v203
        %v384 = vunpack.c.l.b16 %v208
        %v385 = vpack.c.b16 %v378, %v377
        %v386 = vpack.c.b16 %v380, %v379
        %v387 = vpack.c.b16 %v382, %v381
        %v388 = vpack.c.b16 %v384, %v383
        %389 = vrot.lane.b32.xlu0 %v305, 127
        %v390 = vpop.permute.xlu0 %389
        %391 = vrot.lane.b32.xlu0 %v306, 127
        %v392 = vpop.permute.xlu0 %391
        %393 = vrot.lane.b32.xlu0 %v307, 127
        %v394 = vpop.permute.xlu0 %393
        %395 = vrot.lane.b32.xlu0 %v308, 127
        %v396 = vpop.permute.xlu0 %395
        %397 = vrot.lane.b32.xlu0 %v309, 127
        %v398 = vpop.permute.xlu0 %397
        %399 = vrot.lane.b32.xlu0 %v310, 127
        %v400 = vpop.permute.xlu0 %399
        %401 = vrot.lane.b32.xlu0 %v311, 127
        %v402 = vpop.permute.xlu0 %401
        %403 = vrot.lane.b32.xlu0 %v312, 127
        %v404 = vpop.permute.xlu0 %403
        %405 = vrot.lane.b32.xlu0 %v385, 127
        %v406 = vpop.permute.xlu0 %405
        %407 = vrot.lane.b32.xlu0 %v313, 127
        %v408 = vpop.permute.xlu0 %407
        %409 = vrot.lane.b32.xlu0 %v314, 127
        %v410 = vpop.permute.xlu0 %409
        %411 = vrot.lane.b32.xlu0 %v315, 127
        %v412 = vpop.permute.xlu0 %411
        %413 = vrot.lane.b32.xlu0 %v316, 127
        %v414 = vpop.permute.xlu0 %413
        %415 = vrot.lane.b32.xlu0 %v317, 127
        %v416 = vpop.permute.xlu0 %415
        %417 = vrot.lane.b32.xlu0 %v318, 127
        %v418 = vpop.permute.xlu0 %417
        %419 = vrot.lane.b32.xlu0 %v319, 127
        %v420 = vpop.permute.xlu0 %419
        %421 = vrot.lane.b32.xlu0 %v320, 127
        %v422 = vpop.permute.xlu0 %421
        %423 = vrot.lane.b32.xlu0 %v386, 127
        %v424 = vpop.permute.xlu0 %423
        %425 = vrot.lane.b32.xlu0 %v321, 127
        %v426 = vpop.permute.xlu0 %425
        %427 = vrot.lane.b32.xlu0 %v322, 127
        %v428 = vpop.permute.xlu0 %427
        %429 = vrot.lane.b32.xlu0 %v323, 127
        %v430 = vpop.permute.xlu0 %429
        %431 = vrot.lane.b32.xlu0 %v324, 127
        %v432 = vpop.permute.xlu0 %431
        %433 = vrot.lane.b32.xlu0 %v325, 127
        %v434 = vpop.permute.xlu0 %433
        %435 = vrot.lane.b32.xlu0 %v326, 127
        %v436 = vpop.permute.xlu0 %435
        %437 = vrot.lane.b32.xlu0 %v327, 127
        %v438 = vpop.permute.xlu0 %437
        %439 = vrot.lane.b32.xlu0 %v328, 127
        %v440 = vpop.permute.xlu0 %439
        %441 = vrot.lane.b32.xlu0 %v387, 127
        %v442 = vpop.permute.xlu0 %441
        %443 = vrot.lane.b32.xlu0 %v329, 127
        %v444 = vpop.permute.xlu0 %443
        %445 = vrot.lane.b32.xlu0 %v330, 127
        %v446 = vpop.permute.xlu0 %445
        %447 = vrot.lane.b32.xlu0 %v331, 127
        %v448 = vpop.permute.xlu0 %447
        %449 = vrot.lane.b32.xlu0 %v332, 127
        %v450 = vpop.permute.xlu0 %449
        %451 = vrot.lane.b32.xlu0 %v333, 127
        %v452 = vpop.permute.xlu0 %451
        %453 = vrot.lane.b32.xlu0 %v334, 127
        %v454 = vpop.permute.xlu0 %453
        %455 = vrot.lane.b32.xlu0 %v335, 127
        %v456 = vpop.permute.xlu0 %455
        %457 = vrot.lane.b32.xlu0 %v336, 127
        %v458 = vpop.permute.xlu0 %457
        %459 = vrot.lane.b32.xlu0 %v388, 127
        %v460 = vpop.permute.xlu0 %459
        %vm461 = vcmask 1039360
        %v462 = vsel %vm461, %v390, %v392
        %v463 = vsel %vm461, %v392, %v394
        %v464 = vsel %vm461, %v394, %v396
        %v465 = vsel %vm461, %v396, %v398
        %v466 = vsel %vm461, %v398, %v400
        %v467 = vsel %vm461, %v400, %v402
        %v468 = vsel %vm461, %v402, %v404
        %v469 = vsel %vm461, %v404, %v406
        %v470 = vsel %vm461, %v408, %v410
        %v471 = vsel %vm461, %v410, %v412
        %v472 = vsel %vm461, %v412, %v414
        %v473 = vsel %vm461, %v414, %v416
        %v474 = vsel %vm461, %v416, %v418
        %v475 = vsel %vm461, %v418, %v420
        %v476 = vsel %vm461, %v420, %v422
        %v477 = vsel %vm461, %v422, %v424
        %v478 = vsel %vm461, %v426, %v428
        %v479 = vsel %vm461, %v428, %v430
        %v480 = vsel %vm461, %v430, %v432
        %v481 = vsel %vm461, %v432, %v434
        %v482 = vsel %vm461, %v434, %v436
        %v483 = vsel %vm461, %v436, %v438
        %v484 = vsel %vm461, %v438, %v440
        %v485 = vsel %vm461, %v440, %v442
        %v486 = vsel %vm461, %v444, %v446
        %v487 = vsel %vm461, %v446, %v448
        %v488 = vsel %vm461, %v448, %v450
        %v489 = vsel %vm461, %v450, %v452
        %v490 = vsel %vm461, %v452, %v454
        %v491 = vsel %vm461, %v454, %v456
        %v492 = vsel %vm461, %v456, %v458
        %v493 = vsel %vm461, %v458, %v460
        %526 = vrot.lane.b32.xlu0 %v305, 126
        %v527 = vpop.permute.xlu0 %526
        %528 = vrot.lane.b32.xlu0 %v306, 126
        %v529 = vpop.permute.xlu0 %528
        %530 = vrot.lane.b32.xlu0 %v307, 126
        %v531 = vpop.permute.xlu0 %530
        %532 = vrot.lane.b32.xlu0 %v308, 126
        %v533 = vpop.permute.xlu0 %532
        %534 = vrot.lane.b32.xlu0 %v309, 126
        %v535 = vpop.permute.xlu0 %534
        %536 = vrot.lane.b32.xlu0 %v310, 126
        %v537 = vpop.permute.xlu0 %536
        %538 = vrot.lane.b32.xlu0 %v311, 126
        %v539 = vpop.permute.xlu0 %538
        %540 = vrot.lane.b32.xlu0 %v312, 126
        %v541 = vpop.permute.xlu0 %540
        %542 = vrot.lane.b32.xlu0 %v385, 126
        %v543 = vpop.permute.xlu0 %542
        %544 = vrot.lane.b32.xlu0 %v313, 126
        %v545 = vpop.permute.xlu0 %544
        %546 = vrot.lane.b32.xlu0 %v314, 126
        %v547 = vpop.permute.xlu0 %546
        %548 = vrot.lane.b32.xlu0 %v315, 126
        %v549 = vpop.permute.xlu0 %548
        %550 = vrot.lane.b32.xlu0 %v316, 126
        %v551 = vpop.permute.xlu0 %550
        %552 = vrot.lane.b32.xlu0 %v317, 126
        %v553 = vpop.permute.xlu0 %552
        %554 = vrot.lane.b32.xlu0 %v318, 126
        %v555 = vpop.permute.xlu0 %554
        %556 = vrot.lane.b32.xlu0 %v319, 126
        %v557 = vpop.permute.xlu0 %556
        %558 = vrot.lane.b32.xlu0 %v320, 126
        %v559 = vpop.permute.xlu0 %558
        %560 = vrot.lane.b32.xlu0 %v386, 126
        %v561 = vpop.permute.xlu0 %560
        %562 = vrot.lane.b32.xlu0 %v321, 126
        %v563 = vpop.permute.xlu0 %562
        %564 = vrot.lane.b32.xlu0 %v322, 126
        %v565 = vpop.permute.xlu0 %564
        %566 = vrot.lane.b32.xlu0 %v323, 126
        %v567 = vpop.permute.xlu0 %566
        %568 = vrot.lane.b32.xlu0 %v324, 126
        %v569 = vpop.permute.xlu0 %568
        %570 = vrot.lane.b32.xlu0 %v325, 126
        %v571 = vpop.permute.xlu0 %570
        %572 = vrot.lane.b32.xlu0 %v326, 126
        %v573 = vpop.permute.xlu0 %572
        %574 = vrot.lane.b32.xlu0 %v327, 126
        %v575 = vpop.permute.xlu0 %574
        %576 = vrot.lane.b32.xlu0 %v328, 126
        %v577 = vpop.permute.xlu0 %576
        %578 = vrot.lane.b32.xlu0 %v387, 126
        %v579 = vpop.permute.xlu0 %578
        %580 = vrot.lane.b32.xlu0 %v329, 126
        %v581 = vpop.permute.xlu0 %580
        %582 = vrot.lane.b32.xlu0 %v330, 126
        %v583 = vpop.permute.xlu0 %582
        %584 = vrot.lane.b32.xlu0 %v331, 126
        %v585 = vpop.permute.xlu0 %584
        %586 = vrot.lane.b32.xlu0 %v332, 126
        %v587 = vpop.permute.xlu0 %586
        %588 = vrot.lane.b32.xlu0 %v333, 126
        %v589 = vpop.permute.xlu0 %588
        %590 = vrot.lane.b32.xlu0 %v334, 126
        %v591 = vpop.permute.xlu0 %590
        %592 = vrot.lane.b32.xlu0 %v335, 126
        %v593 = vpop.permute.xlu0 %592
        %594 = vrot.lane.b32.xlu0 %v336, 126
        %v595 = vpop.permute.xlu0 %594
        %596 = vrot.lane.b32.xlu0 %v388, 126
        %v597 = vpop.permute.xlu0 %596
        %vm598 = vcmask 1031168
        %v599 = vsel %vm598, %v527, %v529
        %v600 = vsel %vm598, %v529, %v531
        %v601 = vsel %vm598, %v531, %v533
        %v602 = vsel %vm598, %v533, %v535
        %v603 = vsel %vm598, %v535, %v537
        %v604 = vsel %vm598, %v537, %v539
        %v605 = vsel %vm598, %v539, %v541
        %v606 = vsel %vm598, %v541, %v543
        %v607 = vsel %vm598, %v545, %v547
        %v608 = vsel %vm598, %v547, %v549
        %v609 = vsel %vm598, %v549, %v551
        %v610 = vsel %vm598, %v551, %v553
        %v611 = vsel %vm598, %v553, %v555
        %v612 = vsel %vm598, %v555, %v557
        %v613 = vsel %vm598, %v557, %v559
        %v614 = vsel %vm598, %v559, %v561
        %v615 = vsel %vm598, %v563, %v565
        %v616 = vsel %vm598, %v565, %v567
        %v617 = vsel %vm598, %v567, %v569
        %v618 = vsel %vm598, %v569, %v571
        %v619 = vsel %vm598, %v571, %v573
        %v620 = vsel %vm598, %v573, %v575
        %v621 = vsel %vm598, %v575, %v577
        %v622 = vsel %vm598, %v577, %v579
        %v623 = vsel %vm598, %v581, %v583
        %v624 = vsel %vm598, %v583, %v585
        %v625 = vsel %vm598, %v585, %v587
        %v626 = vsel %vm598, %v587, %v589
        %v627 = vsel %vm598, %v589, %v591
        %v628 = vsel %vm598, %v591, %v593
        %v629 = vsel %vm598, %v593, %v595
        %v630 = vsel %vm598, %v595, %v597
        %663 = vrot.lane.b32.xlu0 %v305, 125
        %v664 = vpop.permute.xlu0 %663
        %665 = vrot.lane.b32.xlu0 %v306, 125
        %v666 = vpop.permute.xlu0 %665
        %667 = vrot.lane.b32.xlu0 %v307, 125
        %v668 = vpop.permute.xlu0 %667
        %669 = vrot.lane.b32.xlu0 %v308, 125
        %v670 = vpop.permute.xlu0 %669
        %671 = vrot.lane.b32.xlu0 %v309, 125
        %v672 = vpop.permute.xlu0 %671
        %673 = vrot.lane.b32.xlu0 %v310, 125
        %v674 = vpop.permute.xlu0 %673
        %675 = vrot.lane.b32.xlu0 %v311, 125
        %v676 = vpop.permute.xlu0 %675
        %677 = vrot.lane.b32.xlu0 %v312, 125
        %v678 = vpop.permute.xlu0 %677
        %679 = vrot.lane.b32.xlu0 %v385, 125
        %v680 = vpop.permute.xlu0 %679
        %681 = vrot.lane.b32.xlu0 %v313, 125
        %v682 = vpop.permute.xlu0 %681
        %683 = vrot.lane.b32.xlu0 %v314, 125
        %v684 = vpop.permute.xlu0 %683
        %685 = vrot.lane.b32.xlu0 %v315, 125
        %v686 = vpop.permute.xlu0 %685
        %687 = vrot.lane.b32.xlu0 %v316, 125
        %v688 = vpop.permute.xlu0 %687
        %689 = vrot.lane.b32.xlu0 %v317, 125
        %v690 = vpop.permute.xlu0 %689
        %691 = vrot.lane.b32.xlu0 %v318, 125
        %v692 = vpop.permute.xlu0 %691
        %693 = vrot.lane.b32.xlu0 %v319, 125
        %v694 = vpop.permute.xlu0 %693
        %695 = vrot.lane.b32.xlu0 %v320, 125
        %v696 = vpop.permute.xlu0 %695
        %697 = vrot.lane.b32.xlu0 %v386, 125
        %v698 = vpop.permute.xlu0 %697
        %699 = vrot.lane.b32.xlu0 %v321, 125
        %v700 = vpop.permute.xlu0 %699
        %701 = vrot.lane.b32.xlu0 %v322, 125
        %v702 = vpop.permute.xlu0 %701
        %703 = vrot.lane.b32.xlu0 %v323, 125
        %v704 = vpop.permute.xlu0 %703
        %705 = vrot.lane.b32.xlu0 %v324, 125
        %v706 = vpop.permute.xlu0 %705
        %707 = vrot.lane.b32.xlu0 %v325, 125
        %v708 = vpop.permute.xlu0 %707
        %709 = vrot.lane.b32.xlu0 %v326, 125
        %v710 = vpop.permute.xlu0 %709
        %711 = vrot.lane.b32.xlu0 %v327, 125
        %v712 = vpop.permute.xlu0 %711
        %713 = vrot.lane.b32.xlu0 %v328, 125
        %v714 = vpop.permute.xlu0 %713
        %715 = vrot.lane.b32.xlu0 %v387, 125
        %v716 = vpop.permute.xlu0 %715
        %717 = vrot.lane.b32.xlu0 %v329, 125
        %v718 = vpop.permute.xlu0 %717
        %719 = vrot.lane.b32.xlu0 %v330, 125
        %v720 = vpop.permute.xlu0 %719
        %721 = vrot.lane.b32.xlu0 %v331, 125
        %v722 = vpop.permute.xlu0 %721
        %723 = vrot.lane.b32.xlu0 %v332, 125
        %v724 = vpop.permute.xlu0 %723
        %725 = vrot.lane.b32.xlu0 %v333, 125
        %v726 = vpop.permute.xlu0 %725
        %727 = vrot.lane.b32.xlu0 %v334, 125
        %v728 = vpop.permute.xlu0 %727
        %729 = vrot.lane.b32.xlu0 %v335, 125
        %v730 = vpop.permute.xlu0 %729
        %731 = vrot.lane.b32.xlu0 %v336, 125
        %v732 = vpop.permute.xlu0 %731
        %733 = vrot.lane.b32.xlu0 %v388, 125
        %v734 = vpop.permute.xlu0 %733
        %vm735 = vcmask 1022976
        %v736 = vsel %vm735, %v664, %v666
        %v737 = vsel %vm735, %v666, %v668
        %v738 = vsel %vm735, %v668, %v670
        %v739 = vsel %vm735, %v670, %v672
        %v740 = vsel %vm735, %v672, %v674
        %v741 = vsel %vm735, %v674, %v676
        %v742 = vsel %vm735, %v676, %v678
        %v743 = vsel %vm735, %v678, %v680
        %v744 = vsel %vm735, %v682, %v684
        %v745 = vsel %vm735, %v684, %v686
        %v746 = vsel %vm735, %v686, %v688
        %v747 = vsel %vm735, %v688, %v690
        %v748 = vsel %vm735, %v690, %v692
        %v749 = vsel %vm735, %v692, %v694
        %v750 = vsel %vm735, %v694, %v696
        %v751 = vsel %vm735, %v696, %v698
        %v752 = vsel %vm735, %v700, %v702
        %v753 = vsel %vm735, %v702, %v704
        %v754 = vsel %vm735, %v704, %v706
        %v755 = vsel %vm735, %v706, %v708
        %v756 = vsel %vm735, %v708, %v710
        %v757 = vsel %vm735, %v710, %v712
        %v758 = vsel %vm735, %v712, %v714
        %v759 = vsel %vm735, %v714, %v716
        %v760 = vsel %vm735, %v718, %v720
        %v761 = vsel %vm735, %v720, %v722
        %v762 = vsel %vm735, %v722, %v724
        %v763 = vsel %vm735, %v724, %v726
        %v764 = vsel %vm735, %v726, %v728
        %v765 = vsel %vm735, %v728, %v730
        %v766 = vsel %vm735, %v730, %v732
        %v767 = vsel %vm735, %v732, %v734
        %v800 = vld [vmem:[%s1] sm:$0xff]
        %v801 = vld [vmem:[%s1 + $0x8] sm:$0xff]
        %v802 = vld [vmem:[%s1 + $0x10] sm:$0xff]
        %v803 = vld [vmem:[%s1 + $0x18] sm:$0xff]
        %v804 = vld [vmem:[%s1 + $0x20] sm:$0xff]
        %v805 = vld [vmem:[%s1 + $0x28] sm:$0xff]
        %v806 = vld [vmem:[%s1 + $0x30] sm:$0xff]
        %v807 = vld [vmem:[%s1 + $0x38] sm:$0xff]
        %v808 = vld [vmem:[%s1 + $0x40] sm:$0xff]
        %v809 = vld [vmem:[%s1 + $0x48] sm:$0xff]
        %v810 = vld [vmem:[%s1 + $0x50] sm:$0xff]
        %v811 = vld [vmem:[%s1 + $0x58] sm:$0xff]
        %v812 = vld [vmem:[%s1 + $0x60] sm:$0xff]
        %v813 = vld [vmem:[%s1 + $0x68] sm:$0xff]
        %v814 = vld [vmem:[%s1 + $0x70] sm:$0xff]
        %v815 = vld [vmem:[%s1 + $0x78] sm:$0xff]
        %v816 = vld [vmem:[%s1 + $0x80] sm:$0xff]
        %v817 = vld [vmem:[%s1 + $0x88] sm:$0xff]
        %v818 = vld [vmem:[%s1 + $0x90] sm:$0xff]
        %v819 = vld [vmem:[%s1 + $0x98] sm:$0xff]
        %v820 = vld [vmem:[%s1 + $0xa0] sm:$0xff]
        %v821 = vld [vmem:[%s1 + $0xa8] sm:$0xff]
        %v822 = vld [vmem:[%s1 + $0xb0] sm:$0xff]
        %v823 = vld [vmem:[%s1 + $0xb8] sm:$0xff]
        %v824 = vld [vmem:[%s1 + $0xc0] sm:$0xff]
        %v825 = vld [vmem:[%s1 + $0xc8] sm:$0xff]
        %v826 = vld [vmem:[%s1 + $0xd0] sm:$0xff]
        %v827 = vld [vmem:[%s1 + $0xd8] sm:$0xff]
        %v828 = vld [vmem:[%s1 + $0xe0] sm:$0xff]
        %v829 = vld [vmem:[%s1 + $0xe8] sm:$0xff]
        %v830 = vld [vmem:[%s1 + $0xf0] sm:$0xff]
        %v831 = vld [vmem:[%s1 + $0xf8] sm:$0xff]
        %v864 = vunpack.c.l.b16 %v800
        %v865 = vunpack.c.h.b16 %v800
        %v866 = vunpack.c.l.b16 %v801
        %v867 = vunpack.c.h.b16 %v801
        %v868 = vunpack.c.l.b16 %v802
        %v869 = vunpack.c.h.b16 %v802
        %v870 = vunpack.c.l.b16 %v803
        %v871 = vunpack.c.h.b16 %v803
        %v872 = vunpack.c.l.b16 %v804
        %v873 = vunpack.c.h.b16 %v804
        %v874 = vunpack.c.l.b16 %v805
        %v875 = vunpack.c.h.b16 %v805
        %v876 = vunpack.c.l.b16 %v806
        %v877 = vunpack.c.h.b16 %v806
        %v878 = vunpack.c.l.b16 %v807
        %v879 = vunpack.c.h.b16 %v807
        %v880 = vunpack.c.l.b16 %v808
        %v881 = vunpack.c.h.b16 %v808
        %v882 = vunpack.c.l.b16 %v809
        %v883 = vunpack.c.h.b16 %v809
        %v884 = vunpack.c.l.b16 %v810
        %v885 = vunpack.c.h.b16 %v810
        %v886 = vunpack.c.l.b16 %v811
        %v887 = vunpack.c.h.b16 %v811
        %v888 = vunpack.c.l.b16 %v812
        %v889 = vunpack.c.h.b16 %v812
        %v890 = vunpack.c.l.b16 %v813
        %v891 = vunpack.c.h.b16 %v813
        %v892 = vunpack.c.l.b16 %v814
        %v893 = vunpack.c.h.b16 %v814
        %v894 = vunpack.c.l.b16 %v815
        %v895 = vunpack.c.h.b16 %v815
        %v896 = vunpack.c.l.b16 %v816
        %v897 = vunpack.c.h.b16 %v816
        %v898 = vunpack.c.l.b16 %v817
        %v899 = vunpack.c.h.b16 %v817
        %v900 = vunpack.c.l.b16 %v818
        %v901 = vunpack.c.h.b16 %v818
        %v902 = vunpack.c.l.b16 %v819
        %v903 = vunpack.c.h.b16 %v819
        %v904 = vunpack.c.l.b16 %v820
        %v905 = vunpack.c.h.b16 %v820
        %v906 = vunpack.c.l.b16 %v821
        %v907 = vunpack.c.h.b16 %v821
        %v908 = vunpack.c.l.b16 %v822
        %v909 = vunpack.c.h.b16 %v822
        %v910 = vunpack.c.l.b16 %v823
        %v911 = vunpack.c.h.b16 %v823
        %v912 = vunpack.c.l.b16 %v824
        %v913 = vunpack.c.h.b16 %v824
        %v914 = vunpack.c.l.b16 %v825
        %v915 = vunpack.c.h.b16 %v825
        %v916 = vunpack.c.l.b16 %v826
        %v917 = vunpack.c.h.b16 %v826
        %v918 = vunpack.c.l.b16 %v827
        %v919 = vunpack.c.h.b16 %v827
        %v920 = vunpack.c.l.b16 %v828
        %v921 = vunpack.c.h.b16 %v828
        %v922 = vunpack.c.l.b16 %v829
        %v923 = vunpack.c.h.b16 %v829
        %v924 = vunpack.c.l.b16 %v830
        %v925 = vunpack.c.h.b16 %v830
        %v926 = vunpack.c.l.b16 %v831
        %v927 = vunpack.c.h.b16 %v831
        %v928 = vpack.c.b16 %v866, %v864
        %v929 = vpack.c.b16 %v867, %v865
        %v930 = vpack.c.b16 %v870, %v868
        %v931 = vpack.c.b16 %v871, %v869
        %v932 = vpack.c.b16 %v874, %v872
        %v933 = vpack.c.b16 %v875, %v873
        %v934 = vpack.c.b16 %v878, %v876
        %v935 = vpack.c.b16 %v879, %v877
        %v936 = vpack.c.b16 %v882, %v880
        %v937 = vpack.c.b16 %v883, %v881
        %v938 = vpack.c.b16 %v886, %v884
        %v939 = vpack.c.b16 %v887, %v885
        %v940 = vpack.c.b16 %v890, %v888
        %v941 = vpack.c.b16 %v891, %v889
        %v942 = vpack.c.b16 %v894, %v892
        %v943 = vpack.c.b16 %v895, %v893
        %v944 = vpack.c.b16 %v898, %v896
        %v945 = vpack.c.b16 %v899, %v897
        %v946 = vpack.c.b16 %v902, %v900
        %v947 = vpack.c.b16 %v903, %v901
        %v948 = vpack.c.b16 %v906, %v904
        %v949 = vpack.c.b16 %v907, %v905
        %v950 = vpack.c.b16 %v910, %v908
        %v951 = vpack.c.b16 %v911, %v909
        %v952 = vpack.c.b16 %v914, %v912
        %v953 = vpack.c.b16 %v915, %v913
        %v954 = vpack.c.b16 %v918, %v916
        %v955 = vpack.c.b16 %v919, %v917
        %v956 = vpack.c.b16 %v922, %v920
        %v957 = vpack.c.b16 %v923, %v921
        %v958 = vpack.c.b16 %v926, %v924
        %v959 = vpack.c.b16 %v927, %v925
        %992 = vmatpush.bf16.msra.mxu0 %v486
        %993 = vmatpush.bf16.msra.mxu0 %v478
        %994 = vmatpush.bf16.msra.mxu0 %v470
        %995 = vmatpush.bf16.msra.mxu0 %v462
        %996 = vmatpush.bf16.msra.mxu0 %v329
        %997 = vmatpush.bf16.msra.mxu0 %v321
        %998 = vmatpush.bf16.msra.mxu0 %v313
        %999 = vmatpush.bf16.msra.mxu0 %v305
        %1000 = vmatmul.bf16.gmra.mxu0 %v928
        %v1001 = vpop.f32.mrf.mxu0
        %v1002 = vadd.f32 0.0, %v1001
        %v1003 = vpop.f32.mrf.mxu0
        %v1004 = vadd.f32 0.0, %v1003
        %1005 = vmatmul.bf16.gmra.mxu0 %v930
        %v1006 = vpop.f32.mrf.mxu0
        %v1007 = vadd.f32 0.0, %v1006
        %v1008 = vpop.f32.mrf.mxu0
        %v1009 = vadd.f32 0.0, %v1008
        %1010 = vmatmul.bf16.gmra.mxu0 %v932
        %v1011 = vpop.f32.mrf.mxu0
        %v1012 = vadd.f32 0.0, %v1011
        %v1013 = vpop.f32.mrf.mxu0
        %v1014 = vadd.f32 0.0, %v1013
        %1015 = vmatmul.bf16.gmra.mxu0 %v934
        %v1016 = vpop.f32.mrf.mxu0
        %v1017 = vadd.f32 0.0, %v1016
        %v1018 = vpop.f32.mrf.mxu0
        %v1019 = vadd.f32 0.0, %v1018
        %1020 = vmatmul.bf16.gmra.mxu0 %v936
        %v1021 = vpop.f32.mrf.mxu0
        %v1022 = vadd.f32 0.0, %v1021
        %v1023 = vpop.f32.mrf.mxu0
        %v1024 = vadd.f32 0.0, %v1023
        %1025 = vmatmul.bf16.gmra.mxu0 %v938
        %v1026 = vpop.f32.mrf.mxu0
        %v1027 = vadd.f32 0.0, %v1026
        %v1028 = vpop.f32.mrf.mxu0
        %v1029 = vadd.f32 0.0, %v1028
        %1030 = vmatmul.bf16.gmra.mxu0 %v940
        %v1031 = vpop.f32.mrf.mxu0
        %v1032 = vadd.f32 0.0, %v1031
        %v1033 = vpop.f32.mrf.mxu0
        %v1034 = vadd.f32 0.0, %v1033
        %1035 = vmatmul.bf16.gmra.mxu0 %v942
        %v1036 = vpop.f32.mrf.mxu0
        %v1037 = vadd.f32 0.0, %v1036
        %v1038 = vpop.f32.mrf.mxu0
        %v1039 = vadd.f32 0.0, %v1038
        %1040 = vmatmul.bf16.gmra.mxu0 %v944
        %v1041 = vpop.f32.mrf.mxu0
        %v1042 = vadd.f32 0.0, %v1041
        %v1043 = vpop.f32.mrf.mxu0
        %v1044 = vadd.f32 0.0, %v1043
        %1045 = vmatmul.bf16.gmra.mxu0 %v946
        %v1046 = vpop.f32.mrf.mxu0
        %v1047 = vadd.f32 0.0, %v1046
        %v1048 = vpop.f32.mrf.mxu0
        %v1049 = vadd.f32 0.0, %v1048
        %1050 = vmatmul.bf16.gmra.mxu0 %v948
        %v1051 = vpop.f32.mrf.mxu0
        %v1052 = vadd.f32 0.0, %v1051
        %v1053 = vpop.f32.mrf.mxu0
        %v1054 = vadd.f32 0.0, %v1053
        %1055 = vmatmul.bf16.gmra.mxu0 %v950
        %v1056 = vpop.f32.mrf.mxu0
        %v1057 = vadd.f32 0.0, %v1056
        %v1058 = vpop.f32.mrf.mxu0
        %v1059 = vadd.f32 0.0, %v1058
        %1060 = vmatmul.bf16.gmra.mxu0 %v952
        %v1061 = vpop.f32.mrf.mxu0
        %v1062 = vadd.f32 0.0, %v1061
        %v1063 = vpop.f32.mrf.mxu0
        %v1064 = vadd.f32 0.0, %v1063
        %1065 = vmatmul.bf16.gmra.mxu0 %v954
        %v1066 = vpop.f32.mrf.mxu0
        %v1067 = vadd.f32 0.0, %v1066
        %v1068 = vpop.f32.mrf.mxu0
        %v1069 = vadd.f32 0.0, %v1068
        %1070 = vmatmul.bf16.gmra.mxu0 %v956
        %v1071 = vpop.f32.mrf.mxu0
        %v1072 = vadd.f32 0.0, %v1071
        %v1073 = vpop.f32.mrf.mxu0
        %v1074 = vadd.f32 0.0, %v1073
        %1075 = vmatmul.bf16.gmra.mxu0 %v958
        %v1076 = vpop.f32.mrf.mxu0
        %v1077 = vadd.f32 0.0, %v1076
        %v1078 = vpop.f32.mrf.mxu0
        %v1079 = vadd.f32 0.0, %v1078
        %1080 = vdwg.mxu0
        %1081 = vmatpush.bf16.msra.mxu0 %v760
        %1082 = vmatpush.bf16.msra.mxu0 %v752
        %1083 = vmatpush.bf16.msra.mxu0 %v744
        %1084 = vmatpush.bf16.msra.mxu0 %v736
        %1085 = vmatpush.bf16.msra.mxu0 %v623
        %1086 = vmatpush.bf16.msra.mxu0 %v615
        %1087 = vmatpush.bf16.msra.mxu0 %v607
        %1088 = vmatpush.bf16.msra.mxu0 %v599
        %1089 = vmatmul.bf16.gmra.mxu0 %v929
        %v1090 = vpop.f32.mrf.mxu0
        %v1091 = vadd.f32 %v1002, %v1090
        %v1092 = vpop.f32.mrf.mxu0
        %v1093 = vadd.f32 %v1004, %v1092
        %1094 = vmatmul.bf16.gmra.mxu0 %v931
        %v1095 = vpop.f32.mrf.mxu0
        %v1096 = vadd.f32 %v1007, %v1095
        %v1097 = vpop.f32.mrf.mxu0
        %v1098 = vadd.f32 %v1009, %v1097
        %1099 = vmatmul.bf16.gmra.mxu0 %v933
        %v1100 = vpop.f32.mrf.mxu0
        %v1101 = vadd.f32 %v1012, %v1100
        %v1102 = vpop.f32.mrf.mxu0
        %v1103 = vadd.f32 %v1014, %v1102
        %1104 = vmatmul.bf16.gmra.mxu0 %v935
        %v1105 = vpop.f32.mrf.mxu0
        %v1106 = vadd.f32 %v1017, %v1105
        %v1107 = vpop.f32.mrf.mxu0
        %v1108 = vadd.f32 %v1019, %v1107
        %1109 = vmatmul.bf16.gmra.mxu0 %v937
        %v1110 = vpop.f32.mrf.mxu0
        %v1111 = vadd.f32 %v1022, %v1110
        %v1112 = vpop.f32.mrf.mxu0
        %v1113 = vadd.f32 %v1024, %v1112
        %1114 = vmatmul.bf16.gmra.mxu0 %v939
        %v1115 = vpop.f32.mrf.mxu0
        %v1116 = vadd.f32 %v1027, %v1115
        %v1117 = vpop.f32.mrf.mxu0
        %v1118 = vadd.f32 %v1029, %v1117
        %1119 = vmatmul.bf16.gmra.mxu0 %v941
        %v1120 = vpop.f32.mrf.mxu0
        %v1121 = vadd.f32 %v1032, %v1120
        %v1122 = vpop.f32.mrf.mxu0
        %v1123 = vadd.f32 %v1034, %v1122
        %1124 = vmatmul.bf16.gmra.mxu0 %v943
        %v1125 = vpop.f32.mrf.mxu0
        %v1126 = vadd.f32 %v1037, %v1125
        %v1127 = vpop.f32.mrf.mxu0
        %v1128 = vadd.f32 %v1039, %v1127
        %1129 = vmatmul.bf16.gmra.mxu0 %v945
        %v1130 = vpop.f32.mrf.mxu0
        %v1131 = vadd.f32 %v1042, %v1130
        %v1132 = vpop.f32.mrf.mxu0
        %v1133 = vadd.f32 %v1044, %v1132
        %1134 = vmatmul.bf16.gmra.mxu0 %v947
        %v1135 = vpop.f32.mrf.mxu0
        %v1136 = vadd.f32 %v1047, %v1135
        %v1137 = vpop.f32.mrf.mxu0
        %v1138 = vadd.f32 %v1049, %v1137
        %1139 = vmatmul.bf16.gmra.mxu0 %v949
        %v1140 = vpop.f32.mrf.mxu0
        %v1141 = vadd.f32 %v1052, %v1140
        %v1142 = vpop.f32.mrf.mxu0
        %v1143 = vadd.f32 %v1054, %v1142
        %1144 = vmatmul.bf16.gmra.mxu0 %v951
        %v1145 = vpop.f32.mrf.mxu0
        %v1146 = vadd.f32 %v1057, %v1145
        %v1147 = vpop.f32.mrf.mxu0
        %v1148 = vadd.f32 %v1059, %v1147
        %1149 = vmatmul.bf16.gmra.mxu0 %v953
        %v1150 = vpop.f32.mrf.mxu0
        %v1151 = vadd.f32 %v1062, %v1150
        %v1152 = vpop.f32.mrf.mxu0
        %v1153 = vadd.f32 %v1064, %v1152
        %1154 = vmatmul.bf16.gmra.mxu0 %v955
        %v1155 = vpop.f32.mrf.mxu0
        %v1156 = vadd.f32 %v1067, %v1155
        %v1157 = vpop.f32.mrf.mxu0
        %v1158 = vadd.f32 %v1069, %v1157
        %1159 = vmatmul.bf16.gmra.mxu0 %v957
        %v1160 = vpop.f32.mrf.mxu0
        %v1161 = vadd.f32 %v1072, %v1160
        %v1162 = vpop.f32.mrf.mxu0
        %v1163 = vadd.f32 %v1074, %v1162
        %1164 = vmatmul.bf16.gmra.mxu0 %v959
        %v1165 = vpop.f32.mrf.mxu0
        %v1166 = vadd.f32 %v1077, %v1165
        %v1167 = vpop.f32.mrf.mxu0
        %v1168 = vadd.f32 %v1079, %v1167
        %1169 = vdwg.mxu0
        %1170 = vmatpush.bf16.msra.mxu0 %v487
        %1171 = vmatpush.bf16.msra.mxu0 %v479
        %1172 = vmatpush.bf16.msra.mxu0 %v471
        %1173 = vmatpush.bf16.msra.mxu0 %v463
        %1174 = vmatpush.bf16.msra.mxu0 %v330
        %1175 = vmatpush.bf16.msra.mxu0 %v322
        %1176 = vmatpush.bf16.msra.mxu0 %v314
        %1177 = vmatpush.bf16.msra.mxu0 %v306
        %1178 = vmatmul.bf16.gmra.mxu0 %v928
        %v1179 = vpop.f32.mrf.mxu0
        %v1180 = vadd.f32 0.0, %v1179
        %v1181 = vpop.f32.mrf.mxu0
        %v1182 = vadd.f32 0.0, %v1181
        %1183 = vmatmul.bf16.gmra.mxu0 %v930
        %v1184 = vpop.f32.mrf.mxu0
        %v1185 = vadd.f32 0.0, %v1184
        %v1186 = vpop.f32.mrf.mxu0
        %v1187 = vadd.f32 0.0, %v1186
        %1188 = vmatmul.bf16.gmra.mxu0 %v932
        %v1189 = vpop.f32.mrf.mxu0
        %v1190 = vadd.f32 0.0, %v1189
        %v1191 = vpop.f32.mrf.mxu0
        %v1192 = vadd.f32 0.0, %v1191
        %1193 = vmatmul.bf16.gmra.mxu0 %v934
        %v1194 = vpop.f32.mrf.mxu0
        %v1195 = vadd.f32 0.0, %v1194
        %v1196 = vpop.f32.mrf.mxu0
        %v1197 = vadd.f32 0.0, %v1196
        %1198 = vmatmul.bf16.gmra.mxu0 %v936
        %v1199 = vpop.f32.mrf.mxu0
        %v1200 = vadd.f32 0.0, %v1199
        %v1201 = vpop.f32.mrf.mxu0
        %v1202 = vadd.f32 0.0, %v1201
        %1203 = vmatmul.bf16.gmra.mxu0 %v938
        %v1204 = vpop.f32.mrf.mxu0
        %v1205 = vadd.f32 0.0, %v1204
        %v1206 = vpop.f32.mrf.mxu0
        %v1207 = vadd.f32 0.0, %v1206
        %1208 = vmatmul.bf16.gmra.mxu0 %v940
        %v1209 = vpop.f32.mrf.mxu0
        %v1210 = vadd.f32 0.0, %v1209
        %v1211 = vpop.f32.mrf.mxu0
        %v1212 = vadd.f32 0.0, %v1211
        %1213 = vmatmul.bf16.gmra.mxu0 %v942
        %v1214 = vpop.f32.mrf.mxu0
        %v1215 = vadd.f32 0.0, %v1214
        %v1216 = vpop.f32.mrf.mxu0
        %v1217 = vadd.f32 0.0, %v1216
        %1218 = vmatmul.bf16.gmra.mxu0 %v944
        %v1219 = vpop.f32.mrf.mxu0
        %v1220 = vadd.f32 0.0, %v1219
        %v1221 = vpop.f32.mrf.mxu0
        %v1222 = vadd.f32 0.0, %v1221
        %1223 = vmatmul.bf16.gmra.mxu0 %v946
        %v1224 = vpop.f32.mrf.mxu0
        %v1225 = vadd.f32 0.0, %v1224
        %v1226 = vpop.f32.mrf.mxu0
        %v1227 = vadd.f32 0.0, %v1226
        %1228 = vmatmul.bf16.gmra.mxu0 %v948
        %v1229 = vpop.f32.mrf.mxu0
        %v1230 = vadd.f32 0.0, %v1229
        %v1231 = vpop.f32.mrf.mxu0
        %v1232 = vadd.f32 0.0, %v1231
        %1233 = vmatmul.bf16.gmra.mxu0 %v950
        %v1234 = vpop.f32.mrf.mxu0
        %v1235 = vadd.f32 0.0, %v1234
        %v1236 = vpop.f32.mrf.mxu0
        %v1237 = vadd.f32 0.0, %v1236
        %1238 = vmatmul.bf16.gmra.mxu0 %v952
        %v1239 = vpop.f32.mrf.mxu0
        %v1240 = vadd.f32 0.0, %v1239
        %v1241 = vpop.f32.mrf.mxu0
        %v1242 = vadd.f32 0.0, %v1241
        %1243 = vmatmul.bf16.gmra.mxu0 %v954
        %v1244 = vpop.f32.mrf.mxu0
        %v1245 = vadd.f32 0.0, %v1244
        %v1246 = vpop.f32.mrf.mxu0
        %v1247 = vadd.f32 0.0, %v1246
        %1248 = vmatmul.bf16.gmra.mxu0 %v956
        %v1249 = vpop.f32.mrf.mxu0
        %v1250 = vadd.f32 0.0, %v1249
        %v1251 = vpop.f32.mrf.mxu0
        %v1252 = vadd.f32 0.0, %v1251
        %1253 = vmatmul.bf16.gmra.mxu0 %v958
        %v1254 = vpop.f32.mrf.mxu0
        %v1255 = vadd.f32 0.0, %v1254
        %v1256 = vpop.f32.mrf.mxu0
        %v1257 = vadd.f32 0.0, %v1256
        %1258 = vdwg.mxu0
        %1259 = vmatpush.bf16.msra.mxu0 %v761
        %1260 = vmatpush.bf16.msra.mxu0 %v753
        %1261 = vmatpush.bf16.msra.mxu0 %v745
        %1262 = vmatpush.bf16.msra.mxu0 %v737
        %1263 = vmatpush.bf16.msra.mxu0 %v624
        %1264 = vmatpush.bf16.msra.mxu0 %v616
        %1265 = vmatpush.bf16.msra.mxu0 %v608
        %1266 = vmatpush.bf16.msra.mxu0 %v600
        %1267 = vmatmul.bf16.gmra.mxu0 %v929
        %v1268 = vpop.f32.mrf.mxu0
        %v1269 = vadd.f32 %v1180, %v1268
        %v1270 = vpop.f32.mrf.mxu0
        %v1271 = vadd.f32 %v1182, %v1270
        %1272 = vmatmul.bf16.gmra.mxu0 %v931
        %v1273 = vpop.f32.mrf.mxu0
        %v1274 = vadd.f32 %v1185, %v1273
        %v1275 = vpop.f32.mrf.mxu0
        %v1276 = vadd.f32 %v1187, %v1275
        %1277 = vmatmul.bf16.gmra.mxu0 %v933
        %v1278 = vpop.f32.mrf.mxu0
        %v1279 = vadd.f32 %v1190, %v1278
        %v1280 = vpop.f32.mrf.mxu0
        %v1281 = vadd.f32 %v1192, %v1280
        %1282 = vmatmul.bf16.gmra.mxu0 %v935
        %v1283 = vpop.f32.mrf.mxu0
        %v1284 = vadd.f32 %v1195, %v1283
        %v1285 = vpop.f32.mrf.mxu0
        %v1286 = vadd.f32 %v1197, %v1285
        %1287 = vmatmul.bf16.gmra.mxu0 %v937
        %v1288 = vpop.f32.mrf.mxu0
        %v1289 = vadd.f32 %v1200, %v1288
        %v1290 = vpop.f32.mrf.mxu0
        %v1291 = vadd.f32 %v1202, %v1290
        %1292 = vmatmul.bf16.gmra.mxu0 %v939
        %v1293 = vpop.f32.mrf.mxu0
        %v1294 = vadd.f32 %v1205, %v1293
        %v1295 = vpop.f32.mrf.mxu0
        %v1296 = vadd.f32 %v1207, %v1295
        %1297 = vmatmul.bf16.gmra.mxu0 %v941
        %v1298 = vpop.f32.mrf.mxu0
        %v1299 = vadd.f32 %v1210, %v1298
        %v1300 = vpop.f32.mrf.mxu0
        %v1301 = vadd.f32 %v1212, %v1300
        %1302 = vmatmul.bf16.gmra.mxu0 %v943
        %v1303 = vpop.f32.mrf.mxu0
        %v1304 = vadd.f32 %v1215, %v1303
        %v1305 = vpop.f32.mrf.mxu0
        %v1306 = vadd.f32 %v1217, %v1305
        %1307 = vmatmul.bf16.gmra.mxu0 %v945
        %v1308 = vpop.f32.mrf.mxu0
        %v1309 = vadd.f32 %v1220, %v1308
        %v1310 = vpop.f32.mrf.mxu0
        %v1311 = vadd.f32 %v1222, %v1310
        %1312 = vmatmul.bf16.gmra.mxu0 %v947
        %v1313 = vpop.f32.mrf.mxu0
        %v1314 = vadd.f32 %v1225, %v1313
        %v1315 = vpop.f32.mrf.mxu0
        %v1316 = vadd.f32 %v1227, %v1315
        %1317 = vmatmul.bf16.gmra.mxu0 %v949
        %v1318 = vpop.f32.mrf.mxu0
        %v1319 = vadd.f32 %v1230, %v1318
        %v1320 = vpop.f32.mrf.mxu0
        %v1321 = vadd.f32 %v1232, %v1320
        %1322 = vmatmul.bf16.gmra.mxu0 %v951
        %v1323 = vpop.f32.mrf.mxu0
        %v1324 = vadd.f32 %v1235, %v1323
        %v1325 = vpop.f32.mrf.mxu0
        %v1326 = vadd.f32 %v1237, %v1325
        %1327 = vmatmul.bf16.gmra.mxu0 %v953
        %v1328 = vpop.f32.mrf.mxu0
        %v1329 = vadd.f32 %v1240, %v1328
        %v1330 = vpop.f32.mrf.mxu0
        %v1331 = vadd.f32 %v1242, %v1330
        %1332 = vmatmul.bf16.gmra.mxu0 %v955
        %v1333 = vpop.f32.mrf.mxu0
        %v1334 = vadd.f32 %v1245, %v1333
        %v1335 = vpop.f32.mrf.mxu0
        %v1336 = vadd.f32 %v1247, %v1335
        %1337 = vmatmul.bf16.gmra.mxu0 %v957
        %v1338 = vpop.f32.mrf.mxu0
        %v1339 = vadd.f32 %v1250, %v1338
        %v1340 = vpop.f32.mrf.mxu0
        %v1341 = vadd.f32 %v1252, %v1340
        %1342 = vmatmul.bf16.gmra.mxu0 %v959
        %v1343 = vpop.f32.mrf.mxu0
        %v1344 = vadd.f32 %v1255, %v1343
        %v1345 = vpop.f32.mrf.mxu0
        %v1346 = vadd.f32 %v1257, %v1345
        %1347 = vdwg.mxu0
        %1348 = vmatpush.bf16.msra.mxu0 %v488
        %1349 = vmatpush.bf16.msra.mxu0 %v480
        %1350 = vmatpush.bf16.msra.mxu0 %v472
        %1351 = vmatpush.bf16.msra.mxu0 %v464
        %1352 = vmatpush.bf16.msra.mxu0 %v331
        %1353 = vmatpush.bf16.msra.mxu0 %v323
        %1354 = vmatpush.bf16.msra.mxu0 %v315
        %1355 = vmatpush.bf16.msra.mxu0 %v307
        %1356 = vmatmul.bf16.gmra.mxu0 %v928
        %v1357 = vpop.f32.mrf.mxu0
        %v1358 = vadd.f32 0.0, %v1357
        %v1359 = vpop.f32.mrf.mxu0
        %v1360 = vadd.f32 0.0, %v1359
        %1361 = vmatmul.bf16.gmra.mxu0 %v930
        %v1362 = vpop.f32.mrf.mxu0
        %v1363 = vadd.f32 0.0, %v1362
        %v1364 = vpop.f32.mrf.mxu0
        %v1365 = vadd.f32 0.0, %v1364
        %1366 = vmatmul.bf16.gmra.mxu0 %v932
        %v1367 = vpop.f32.mrf.mxu0
        %v1368 = vadd.f32 0.0, %v1367
        %v1369 = vpop.f32.mrf.mxu0
        %v1370 = vadd.f32 0.0, %v1369
        %1371 = vmatmul.bf16.gmra.mxu0 %v934
        %v1372 = vpop.f32.mrf.mxu0
        %v1373 = vadd.f32 0.0, %v1372
        %v1374 = vpop.f32.mrf.mxu0
        %v1375 = vadd.f32 0.0, %v1374
        %1376 = vmatmul.bf16.gmra.mxu0 %v936
        %v1377 = vpop.f32.mrf.mxu0
        %v1378 = vadd.f32 0.0, %v1377
        %v1379 = vpop.f32.mrf.mxu0
        %v1380 = vadd.f32 0.0, %v1379
        %1381 = vmatmul.bf16.gmra.mxu0 %v938
        %v1382 = vpop.f32.mrf.mxu0
        %v1383 = vadd.f32 0.0, %v1382
        %v1384 = vpop.f32.mrf.mxu0
        %v1385 = vadd.f32 0.0, %v1384
        %1386 = vmatmul.bf16.gmra.mxu0 %v940
        %v1387 = vpop.f32.mrf.mxu0
        %v1388 = vadd.f32 0.0, %v1387
        %v1389 = vpop.f32.mrf.mxu0
        %v1390 = vadd.f32 0.0, %v1389
        %1391 = vmatmul.bf16.gmra.mxu0 %v942
        %v1392 = vpop.f32.mrf.mxu0
        %v1393 = vadd.f32 0.0, %v1392
        %v1394 = vpop.f32.mrf.mxu0
        %v1395 = vadd.f32 0.0, %v1394
        %1396 = vmatmul.bf16.gmra.mxu0 %v944
        %v1397 = vpop.f32.mrf.mxu0
        %v1398 = vadd.f32 0.0, %v1397
        %v1399 = vpop.f32.mrf.mxu0
        %v1400 = vadd.f32 0.0, %v1399
        %1401 = vmatmul.bf16.gmra.mxu0 %v946
        %v1402 = vpop.f32.mrf.mxu0
        %v1403 = vadd.f32 0.0, %v1402
        %v1404 = vpop.f32.mrf.mxu0
        %v1405 = vadd.f32 0.0, %v1404
        %1406 = vmatmul.bf16.gmra.mxu0 %v948
        %v1407 = vpop.f32.mrf.mxu0
        %v1408 = vadd.f32 0.0, %v1407
        %v1409 = vpop.f32.mrf.mxu0
        %v1410 = vadd.f32 0.0, %v1409
        %1411 = vmatmul.bf16.gmra.mxu0 %v950
        %v1412 = vpop.f32.mrf.mxu0
        %v1413 = vadd.f32 0.0, %v1412
        %v1414 = vpop.f32.mrf.mxu0
        %v1415 = vadd.f32 0.0, %v1414
        %1416 = vmatmul.bf16.gmra.mxu0 %v952
        %v1417 = vpop.f32.mrf.mxu0
        %v1418 = vadd.f32 0.0, %v1417
        %v1419 = vpop.f32.mrf.mxu0
        %v1420 = vadd.f32 0.0, %v1419
        %1421 = vmatmul.bf16.gmra.mxu0 %v954
        %v1422 = vpop.f32.mrf.mxu0
        %v1423 = vadd.f32 0.0, %v1422
        %v1424 = vpop.f32.mrf.mxu0
        %v1425 = vadd.f32 0.0, %v1424
        %1426 = vmatmul.bf16.gmra.mxu0 %v956
        %v1427 = vpop.f32.mrf.mxu0
        %v1428 = vadd.f32 0.0, %v1427
        %v1429 = vpop.f32.mrf.mxu0
        %v1430 = vadd.f32 0.0, %v1429
        %1431 = vmatmul.bf16.gmra.mxu0 %v958
        %v1432 = vpop.f32.mrf.mxu0
        %v1433 = vadd.f32 0.0, %v1432
        %v1434 = vpop.f32.mrf.mxu0
        %v1435 = vadd.f32 0.0, %v1434
        %1436 = vdwg.mxu0
        %1437 = vmatpush.bf16.msra.mxu0 %v762
        %1438 = vmatpush.bf16.msra.mxu0 %v754
        %1439 = vmatpush.bf16.msra.mxu0 %v746
        %1440 = vmatpush.bf16.msra.mxu0 %v738
        %1441 = vmatpush.bf16.msra.mxu0 %v625
        %1442 = vmatpush.bf16.msra.mxu0 %v617
        %1443 = vmatpush.bf16.msra.mxu0 %v609
        %1444 = vmatpush.bf16.msra.mxu0 %v601
        %1445 = vmatmul.bf16.gmra.mxu0 %v929
        %v1446 = vpop.f32.mrf.mxu0
        %v1447 = vadd.f32 %v1358, %v1446
        %v1448 = vpop.f32.mrf.mxu0
        %v1449 = vadd.f32 %v1360, %v1448
        %1450 = vmatmul.bf16.gmra.mxu0 %v931
        %v1451 = vpop.f32.mrf.mxu0
        %v1452 = vadd.f32 %v1363, %v1451
        %v1453 = vpop.f32.mrf.mxu0
        %v1454 = vadd.f32 %v1365, %v1453
        %1455 = vmatmul.bf16.gmra.mxu0 %v933
        %v1456 = vpop.f32.mrf.mxu0
        %v1457 = vadd.f32 %v1368, %v1456
        %v1458 = vpop.f32.mrf.mxu0
        %v1459 = vadd.f32 %v1370, %v1458
        %1460 = vmatmul.bf16.gmra.mxu0 %v935
        %v1461 = vpop.f32.mrf.mxu0
        %v1462 = vadd.f32 %v1373, %v1461
        %v1463 = vpop.f32.mrf.mxu0
        %v1464 = vadd.f32 %v1375, %v1463
        %1465 = vmatmul.bf16.gmra.mxu0 %v937
        %v1466 = vpop.f32.mrf.mxu0
        %v1467 = vadd.f32 %v1378, %v1466
        %v1468 = vpop.f32.mrf.mxu0
        %v1469 = vadd.f32 %v1380, %v1468
        %1470 = vmatmul.bf16.gmra.mxu0 %v939
        %v1471 = vpop.f32.mrf.mxu0
        %v1472 = vadd.f32 %v1383, %v1471
        %v1473 = vpop.f32.mrf.mxu0
        %v1474 = vadd.f32 %v1385, %v1473
        %1475 = vmatmul.bf16.gmra.mxu0 %v941
        %v1476 = vpop.f32.mrf.mxu0
        %v1477 = vadd.f32 %v1388, %v1476
        %v1478 = vpop.f32.mrf.mxu0
        %v1479 = vadd.f32 %v1390, %v1478
        %1480 = vmatmul.bf16.gmra.mxu0 %v943
        %v1481 = vpop.f32.mrf.mxu0
        %v1482 = vadd.f32 %v1393, %v1481
        %v1483 = vpop.f32.mrf.mxu0
        %v1484 = vadd.f32 %v1395, %v1483
        %1485 = vmatmul.bf16.gmra.mxu0 %v945
        %v1486 = vpop.f32.mrf.mxu0
        %v1487 = vadd.f32 %v1398, %v1486
        %v1488 = vpop.f32.mrf.mxu0
        %v1489 = vadd.f32 %v1400, %v1488
        %1490 = vmatmul.bf16.gmra.mxu0 %v947
        %v1491 = vpop.f32.mrf.mxu0
        %v1492 = vadd.f32 %v1403, %v1491
        %v1493 = vpop.f32.mrf.mxu0
        %v1494 = vadd.f32 %v1405, %v1493
        %1495 = vmatmul.bf16.gmra.mxu0 %v949
        %v1496 = vpop.f32.mrf.mxu0
        %v1497 = vadd.f32 %v1408, %v1496
        %v1498 = vpop.f32.mrf.mxu0
        %v1499 = vadd.f32 %v1410, %v1498
        %1500 = vmatmul.bf16.gmra.mxu0 %v951
        %v1501 = vpop.f32.mrf.mxu0
        %v1502 = vadd.f32 %v1413, %v1501
        %v1503 = vpop.f32.mrf.mxu0
        %v1504 = vadd.f32 %v1415, %v1503
        %1505 = vmatmul.bf16.gmra.mxu0 %v953
        %v1506 = vpop.f32.mrf.mxu0
        %v1507 = vadd.f32 %v1418, %v1506
        %v1508 = vpop.f32.mrf.mxu0
        %v1509 = vadd.f32 %v1420, %v1508
        %1510 = vmatmul.bf16.gmra.mxu0 %v955
        %v1511 = vpop.f32.mrf.mxu0
        %v1512 = vadd.f32 %v1423, %v1511
        %v1513 = vpop.f32.mrf.mxu0
        %v1514 = vadd.f32 %v1425, %v1513
        %1515 = vmatmul.bf16.gmra.mxu0 %v957
        %v1516 = vpop.f32.mrf.mxu0
        %v1517 = vadd.f32 %v1428, %v1516
        %v1518 = vpop.f32.mrf.mxu0
        %v1519 = vadd.f32 %v1430, %v1518
        %1520 = vmatmul.bf16.gmra.mxu0 %v959
        %v1521 = vpop.f32.mrf.mxu0
        %v1522 = vadd.f32 %v1433, %v1521
        %v1523 = vpop.f32.mrf.mxu0
        %v1524 = vadd.f32 %v1435, %v1523
        %1525 = vdwg.mxu0
        %1526 = vmatpush.bf16.msra.mxu0 %v489
        %1527 = vmatpush.bf16.msra.mxu0 %v481
        %1528 = vmatpush.bf16.msra.mxu0 %v473
        %1529 = vmatpush.bf16.msra.mxu0 %v465
        %1530 = vmatpush.bf16.msra.mxu0 %v332
        %1531 = vmatpush.bf16.msra.mxu0 %v324
        %1532 = vmatpush.bf16.msra.mxu0 %v316
        %1533 = vmatpush.bf16.msra.mxu0 %v308
        %1534 = vmatmul.bf16.gmra.mxu0 %v928
        %v1535 = vpop.f32.mrf.mxu0
        %v1536 = vadd.f32 0.0, %v1535
        %v1537 = vpop.f32.mrf.mxu0
        %v1538 = vadd.f32 0.0, %v1537
        %1539 = vmatmul.bf16.gmra.mxu0 %v930
        %v1540 = vpop.f32.mrf.mxu0
        %v1541 = vadd.f32 0.0, %v1540
        %v1542 = vpop.f32.mrf.mxu0
        %v1543 = vadd.f32 0.0, %v1542
        %1544 = vmatmul.bf16.gmra.mxu0 %v932
        %v1545 = vpop.f32.mrf.mxu0
        %v1546 = vadd.f32 0.0, %v1545
        %v1547 = vpop.f32.mrf.mxu0
        %v1548 = vadd.f32 0.0, %v1547
        %1549 = vmatmul.bf16.gmra.mxu0 %v934
        %v1550 = vpop.f32.mrf.mxu0
        %v1551 = vadd.f32 0.0, %v1550
        %v1552 = vpop.f32.mrf.mxu0
        %v1553 = vadd.f32 0.0, %v1552
        %1554 = vmatmul.bf16.gmra.mxu0 %v936
        %v1555 = vpop.f32.mrf.mxu0
        %v1556 = vadd.f32 0.0, %v1555
        %v1557 = vpop.f32.mrf.mxu0
        %v1558 = vadd.f32 0.0, %v1557
        %1559 = vmatmul.bf16.gmra.mxu0 %v938
        %v1560 = vpop.f32.mrf.mxu0
        %v1561 = vadd.f32 0.0, %v1560
        %v1562 = vpop.f32.mrf.mxu0
        %v1563 = vadd.f32 0.0, %v1562
        %1564 = vmatmul.bf16.gmra.mxu0 %v940
        %v1565 = vpop.f32.mrf.mxu0
        %v1566 = vadd.f32 0.0, %v1565
        %v1567 = vpop.f32.mrf.mxu0
        %v1568 = vadd.f32 0.0, %v1567
        %1569 = vmatmul.bf16.gmra.mxu0 %v942
        %v1570 = vpop.f32.mrf.mxu0
        %v1571 = vadd.f32 0.0, %v1570
        %v1572 = vpop.f32.mrf.mxu0
        %v1573 = vadd.f32 0.0, %v1572
        %1574 = vmatmul.bf16.gmra.mxu0 %v944
        %v1575 = vpop.f32.mrf.mxu0
        %v1576 = vadd.f32 0.0, %v1575
        %v1577 = vpop.f32.mrf.mxu0
        %v1578 = vadd.f32 0.0, %v1577
        %1579 = vmatmul.bf16.gmra.mxu0 %v946
        %v1580 = vpop.f32.mrf.mxu0
        %v1581 = vadd.f32 0.0, %v1580
        %v1582 = vpop.f32.mrf.mxu0
        %v1583 = vadd.f32 0.0, %v1582
        %1584 = vmatmul.bf16.gmra.mxu0 %v948
        %v1585 = vpop.f32.mrf.mxu0
        %v1586 = vadd.f32 0.0, %v1585
        %v1587 = vpop.f32.mrf.mxu0
        %v1588 = vadd.f32 0.0, %v1587
        %1589 = vmatmul.bf16.gmra.mxu0 %v950
        %v1590 = vpop.f32.mrf.mxu0
        %v1591 = vadd.f32 0.0, %v1590
        %v1592 = vpop.f32.mrf.mxu0
        %v1593 = vadd.f32 0.0, %v1592
        %1594 = vmatmul.bf16.gmra.mxu0 %v952
        %v1595 = vpop.f32.mrf.mxu0
        %v1596 = vadd.f32 0.0, %v1595
        %v1597 = vpop.f32.mrf.mxu0
        %v1598 = vadd.f32 0.0, %v1597
        %1599 = vmatmul.bf16.gmra.mxu0 %v954
        %v1600 = vpop.f32.mrf.mxu0
        %v1601 = vadd.f32 0.0, %v1600
        %v1602 = vpop.f32.mrf.mxu0
        %v1603 = vadd.f32 0.0, %v1602
        %1604 = vmatmul.bf16.gmra.mxu0 %v956
        %v1605 = vpop.f32.mrf.mxu0
        %v1606 = vadd.f32 0.0, %v1605
        %v1607 = vpop.f32.mrf.mxu0
        %v1608 = vadd.f32 0.0, %v1607
        %1609 = vmatmul.bf16.gmra.mxu0 %v958
        %v1610 = vpop.f32.mrf.mxu0
        %v1611 = vadd.f32 0.0, %v1610
        %v1612 = vpop.f32.mrf.mxu0
        %v1613 = vadd.f32 0.0, %v1612
        %1614 = vdwg.mxu0
        %1615 = vmatpush.bf16.msra.mxu0 %v763
        %1616 = vmatpush.bf16.msra.mxu0 %v755
        %1617 = vmatpush.bf16.msra.mxu0 %v747
        %1618 = vmatpush.bf16.msra.mxu0 %v739
        %1619 = vmatpush.bf16.msra.mxu0 %v626
        %1620 = vmatpush.bf16.msra.mxu0 %v618
        %1621 = vmatpush.bf16.msra.mxu0 %v610
        %1622 = vmatpush.bf16.msra.mxu0 %v602
        %1623 = vmatmul.bf16.gmra.mxu0 %v929
        %v1624 = vpop.f32.mrf.mxu0
        %v1625 = vadd.f32 %v1536, %v1624
        %v1626 = vpop.f32.mrf.mxu0
        %v1627 = vadd.f32 %v1538, %v1626
        %1628 = vmatmul.bf16.gmra.mxu0 %v931
        %v1629 = vpop.f32.mrf.mxu0
        %v1630 = vadd.f32 %v1541, %v1629
        %v1631 = vpop.f32.mrf.mxu0
        %v1632 = vadd.f32 %v1543, %v1631
        %1633 = vmatmul.bf16.gmra.mxu0 %v933
        %v1634 = vpop.f32.mrf.mxu0
        %v1635 = vadd.f32 %v1546, %v1634
        %v1636 = vpop.f32.mrf.mxu0
        %v1637 = vadd.f32 %v1548, %v1636
        %1638 = vmatmul.bf16.gmra.mxu0 %v935
        %v1639 = vpop.f32.mrf.mxu0
        %v1640 = vadd.f32 %v1551, %v1639
        %v1641 = vpop.f32.mrf.mxu0
        %v1642 = vadd.f32 %v1553, %v1641
        %1643 = vmatmul.bf16.gmra.mxu0 %v937
        %v1644 = vpop.f32.mrf.mxu0
        %v1645 = vadd.f32 %v1556, %v1644
        %v1646 = vpop.f32.mrf.mxu0
        %v1647 = vadd.f32 %v1558, %v1646
        %1648 = vmatmul.bf16.gmra.mxu0 %v939
        %v1649 = vpop.f32.mrf.mxu0
        %v1650 = vadd.f32 %v1561, %v1649
        %v1651 = vpop.f32.mrf.mxu0
        %v1652 = vadd.f32 %v1563, %v1651
        %1653 = vmatmul.bf16.gmra.mxu0 %v941
        %v1654 = vpop.f32.mrf.mxu0
        %v1655 = vadd.f32 %v1566, %v1654
        %v1656 = vpop.f32.mrf.mxu0
        %v1657 = vadd.f32 %v1568, %v1656
        %1658 = vmatmul.bf16.gmra.mxu0 %v943
        %v1659 = vpop.f32.mrf.mxu0
        %v1660 = vadd.f32 %v1571, %v1659
        %v1661 = vpop.f32.mrf.mxu0
        %v1662 = vadd.f32 %v1573, %v1661
        %1663 = vmatmul.bf16.gmra.mxu0 %v945
        %v1664 = vpop.f32.mrf.mxu0
        %v1665 = vadd.f32 %v1576, %v1664
        %v1666 = vpop.f32.mrf.mxu0
        %v1667 = vadd.f32 %v1578, %v1666
        %1668 = vmatmul.bf16.gmra.mxu0 %v947
        %v1669 = vpop.f32.mrf.mxu0
        %v1670 = vadd.f32 %v1581, %v1669
        %v1671 = vpop.f32.mrf.mxu0
        %v1672 = vadd.f32 %v1583, %v1671
        %1673 = vmatmul.bf16.gmra.mxu0 %v949
        %v1674 = vpop.f32.mrf.mxu0
        %v1675 = vadd.f32 %v1586, %v1674
        %v1676 = vpop.f32.mrf.mxu0
        %v1677 = vadd.f32 %v1588, %v1676
        %1678 = vmatmul.bf16.gmra.mxu0 %v951
        %v1679 = vpop.f32.mrf.mxu0
        %v1680 = vadd.f32 %v1591, %v1679
        %v1681 = vpop.f32.mrf.mxu0
        %v1682 = vadd.f32 %v1593, %v1681
        %1683 = vmatmul.bf16.gmra.mxu0 %v953
        %v1684 = vpop.f32.mrf.mxu0
        %v1685 = vadd.f32 %v1596, %v1684
        %v1686 = vpop.f32.mrf.mxu0
        %v1687 = vadd.f32 %v1598, %v1686
        %1688 = vmatmul.bf16.gmra.mxu0 %v955
        %v1689 = vpop.f32.mrf.mxu0
        %v1690 = vadd.f32 %v1601, %v1689
        %v1691 = vpop.f32.mrf.mxu0
        %v1692 = vadd.f32 %v1603, %v1691
        %1693 = vmatmul.bf16.gmra.mxu0 %v957
        %v1694 = vpop.f32.mrf.mxu0
        %v1695 = vadd.f32 %v1606, %v1694
        %v1696 = vpop.f32.mrf.mxu0
        %v1697 = vadd.f32 %v1608, %v1696
        %1698 = vmatmul.bf16.gmra.mxu0 %v959
        %v1699 = vpop.f32.mrf.mxu0
        %v1700 = vadd.f32 %v1611, %v1699
        %v1701 = vpop.f32.mrf.mxu0
        %v1702 = vadd.f32 %v1613, %v1701
        %1703 = vdwg.mxu0
        %1704 = vmatpush.bf16.msra.mxu0 %v490
        %1705 = vmatpush.bf16.msra.mxu0 %v482
        %1706 = vmatpush.bf16.msra.mxu0 %v474
        %1707 = vmatpush.bf16.msra.mxu0 %v466
        %1708 = vmatpush.bf16.msra.mxu0 %v333
        %1709 = vmatpush.bf16.msra.mxu0 %v325
        %1710 = vmatpush.bf16.msra.mxu0 %v317
        %1711 = vmatpush.bf16.msra.mxu0 %v309
        %1712 = vmatmul.bf16.gmra.mxu0 %v928
        %v1713 = vpop.f32.mrf.mxu0
        %v1714 = vadd.f32 0.0, %v1713
        %v1715 = vpop.f32.mrf.mxu0
        %v1716 = vadd.f32 0.0, %v1715
        %1717 = vmatmul.bf16.gmra.mxu0 %v930
        %v1718 = vpop.f32.mrf.mxu0
        %v1719 = vadd.f32 0.0, %v1718
        %v1720 = vpop.f32.mrf.mxu0
        %v1721 = vadd.f32 0.0, %v1720
        %1722 = vmatmul.bf16.gmra.mxu0 %v932
        %v1723 = vpop.f32.mrf.mxu0
        %v1724 = vadd.f32 0.0, %v1723
        %v1725 = vpop.f32.mrf.mxu0
        %v1726 = vadd.f32 0.0, %v1725
        %1727 = vmatmul.bf16.gmra.mxu0 %v934
        %v1728 = vpop.f32.mrf.mxu0
        %v1729 = vadd.f32 0.0, %v1728
        %v1730 = vpop.f32.mrf.mxu0
        %v1731 = vadd.f32 0.0, %v1730
        %1732 = vmatmul.bf16.gmra.mxu0 %v936
        %v1733 = vpop.f32.mrf.mxu0
        %v1734 = vadd.f32 0.0, %v1733
        %v1735 = vpop.f32.mrf.mxu0
        %v1736 = vadd.f32 0.0, %v1735
        %1737 = vmatmul.bf16.gmra.mxu0 %v938
        %v1738 = vpop.f32.mrf.mxu0
        %v1739 = vadd.f32 0.0, %v1738
        %v1740 = vpop.f32.mrf.mxu0
        %v1741 = vadd.f32 0.0, %v1740
        %1742 = vmatmul.bf16.gmra.mxu0 %v940
        %v1743 = vpop.f32.mrf.mxu0
        %v1744 = vadd.f32 0.0, %v1743
        %v1745 = vpop.f32.mrf.mxu0
        %v1746 = vadd.f32 0.0, %v1745
        %1747 = vmatmul.bf16.gmra.mxu0 %v942
        %v1748 = vpop.f32.mrf.mxu0
        %v1749 = vadd.f32 0.0, %v1748
        %v1750 = vpop.f32.mrf.mxu0
        %v1751 = vadd.f32 0.0, %v1750
        %1752 = vmatmul.bf16.gmra.mxu0 %v944
        %v1753 = vpop.f32.mrf.mxu0
        %v1754 = vadd.f32 0.0, %v1753
        %v1755 = vpop.f32.mrf.mxu0
        %v1756 = vadd.f32 0.0, %v1755
        %1757 = vmatmul.bf16.gmra.mxu0 %v946
        %v1758 = vpop.f32.mrf.mxu0
        %v1759 = vadd.f32 0.0, %v1758
        %v1760 = vpop.f32.mrf.mxu0
        %v1761 = vadd.f32 0.0, %v1760
        %1762 = vmatmul.bf16.gmra.mxu0 %v948
        %v1763 = vpop.f32.mrf.mxu0
        %v1764 = vadd.f32 0.0, %v1763
        %v1765 = vpop.f32.mrf.mxu0
        %v1766 = vadd.f32 0.0, %v1765
        %1767 = vmatmul.bf16.gmra.mxu0 %v950
        %v1768 = vpop.f32.mrf.mxu0
        %v1769 = vadd.f32 0.0, %v1768
        %v1770 = vpop.f32.mrf.mxu0
        %v1771 = vadd.f32 0.0, %v1770
        %1772 = vmatmul.bf16.gmra.mxu0 %v952
        %v1773 = vpop.f32.mrf.mxu0
        %v1774 = vadd.f32 0.0, %v1773
        %v1775 = vpop.f32.mrf.mxu0
        %v1776 = vadd.f32 0.0, %v1775
        %1777 = vmatmul.bf16.gmra.mxu0 %v954
        %v1778 = vpop.f32.mrf.mxu0
        %v1779 = vadd.f32 0.0, %v1778
        %v1780 = vpop.f32.mrf.mxu0
        %v1781 = vadd.f32 0.0, %v1780
        %1782 = vmatmul.bf16.gmra.mxu0 %v956
        %v1783 = vpop.f32.mrf.mxu0
        %v1784 = vadd.f32 0.0, %v1783
        %v1785 = vpop.f32.mrf.mxu0
        %v1786 = vadd.f32 0.0, %v1785
        %1787 = vmatmul.bf16.gmra.mxu0 %v958
        %v1788 = vpop.f32.mrf.mxu0
        %v1789 = vadd.f32 0.0, %v1788
        %v1790 = vpop.f32.mrf.mxu0
        %v1791 = vadd.f32 0.0, %v1790
        %1792 = vdwg.mxu0
        %1793 = vmatpush.bf16.msra.mxu0 %v764
        %1794 = vmatpush.bf16.msra.mxu0 %v756
        %1795 = vmatpush.bf16.msra.mxu0 %v748
        %1796 = vmatpush.bf16.msra.mxu0 %v740
        %1797 = vmatpush.bf16.msra.mxu0 %v627
        %1798 = vmatpush.bf16.msra.mxu0 %v619
        %1799 = vmatpush.bf16.msra.mxu0 %v611
        %1800 = vmatpush.bf16.msra.mxu0 %v603
        %1801 = vmatmul.bf16.gmra.mxu0 %v929
        %v1802 = vpop.f32.mrf.mxu0
        %v1803 = vadd.f32 %v1714, %v1802
        %v1804 = vpop.f32.mrf.mxu0
        %v1805 = vadd.f32 %v1716, %v1804
        %1806 = vmatmul.bf16.gmra.mxu0 %v931
        %v1807 = vpop.f32.mrf.mxu0
        %v1808 = vadd.f32 %v1719, %v1807
        %v1809 = vpop.f32.mrf.mxu0
        %v1810 = vadd.f32 %v1721, %v1809
        %1811 = vmatmul.bf16.gmra.mxu0 %v933
        %v1812 = vpop.f32.mrf.mxu0
        %v1813 = vadd.f32 %v1724, %v1812
        %v1814 = vpop.f32.mrf.mxu0
        %v1815 = vadd.f32 %v1726, %v1814
        %1816 = vmatmul.bf16.gmra.mxu0 %v935
        %v1817 = vpop.f32.mrf.mxu0
        %v1818 = vadd.f32 %v1729, %v1817
        %v1819 = vpop.f32.mrf.mxu0
        %v1820 = vadd.f32 %v1731, %v1819
        %1821 = vmatmul.bf16.gmra.mxu0 %v937
        %v1822 = vpop.f32.mrf.mxu0
        %v1823 = vadd.f32 %v1734, %v1822
        %v1824 = vpop.f32.mrf.mxu0
        %v1825 = vadd.f32 %v1736, %v1824
        %1826 = vmatmul.bf16.gmra.mxu0 %v939
        %v1827 = vpop.f32.mrf.mxu0
        %v1828 = vadd.f32 %v1739, %v1827
        %v1829 = vpop.f32.mrf.mxu0
        %v1830 = vadd.f32 %v1741, %v1829
        %1831 = vmatmul.bf16.gmra.mxu0 %v941
        %v1832 = vpop.f32.mrf.mxu0
        %v1833 = vadd.f32 %v1744, %v1832
        %v1834 = vpop.f32.mrf.mxu0
        %v1835 = vadd.f32 %v1746, %v1834
        %1836 = vmatmul.bf16.gmra.mxu0 %v943
        %v1837 = vpop.f32.mrf.mxu0
        %v1838 = vadd.f32 %v1749, %v1837
        %v1839 = vpop.f32.mrf.mxu0
        %v1840 = vadd.f32 %v1751, %v1839
        %1841 = vmatmul.bf16.gmra.mxu0 %v945
        %v1842 = vpop.f32.mrf.mxu0
        %v1843 = vadd.f32 %v1754, %v1842
        %v1844 = vpop.f32.mrf.mxu0
        %v1845 = vadd.f32 %v1756, %v1844
        %1846 = vmatmul.bf16.gmra.mxu0 %v947
        %v1847 = vpop.f32.mrf.mxu0
        %v1848 = vadd.f32 %v1759, %v1847
        %v1849 = vpop.f32.mrf.mxu0
        %v1850 = vadd.f32 %v1761, %v1849
        %1851 = vmatmul.bf16.gmra.mxu0 %v949
        %v1852 = vpop.f32.mrf.mxu0
        %v1853 = vadd.f32 %v1764, %v1852
        %v1854 = vpop.f32.mrf.mxu0
        %v1855 = vadd.f32 %v1766, %v1854
        %1856 = vmatmul.bf16.gmra.mxu0 %v951
        %v1857 = vpop.f32.mrf.mxu0
        %v1858 = vadd.f32 %v1769, %v1857
        %v1859 = vpop.f32.mrf.mxu0
        %v1860 = vadd.f32 %v1771, %v1859
        %1861 = vmatmul.bf16.gmra.mxu0 %v953
        %v1862 = vpop.f32.mrf.mxu0
        %v1863 = vadd.f32 %v1774, %v1862
        %v1864 = vpop.f32.mrf.mxu0
        %v1865 = vadd.f32 %v1776, %v1864
        %1866 = vmatmul.bf16.gmra.mxu0 %v955
        %v1867 = vpop.f32.mrf.mxu0
        %v1868 = vadd.f32 %v1779, %v1867
        %v1869 = vpop.f32.mrf.mxu0
        %v1870 = vadd.f32 %v1781, %v1869
        %1871 = vmatmul.bf16.gmra.mxu0 %v957
        %v1872 = vpop.f32.mrf.mxu0
        %v1873 = vadd.f32 %v1784, %v1872
        %v1874 = vpop.f32.mrf.mxu0
        %v1875 = vadd.f32 %v1786, %v1874
        %1876 = vmatmul.bf16.gmra.mxu0 %v959
        %v1877 = vpop.f32.mrf.mxu0
        %v1878 = vadd.f32 %v1789, %v1877
        %v1879 = vpop.f32.mrf.mxu0
        %v1880 = vadd.f32 %v1791, %v1879
        %1881 = vdwg.mxu0
        %1882 = vmatpush.bf16.msra.mxu0 %v491
        %1883 = vmatpush.bf16.msra.mxu0 %v483
        %1884 = vmatpush.bf16.msra.mxu0 %v475
        %1885 = vmatpush.bf16.msra.mxu0 %v467
        %1886 = vmatpush.bf16.msra.mxu0 %v334
        %1887 = vmatpush.bf16.msra.mxu0 %v326
        %1888 = vmatpush.bf16.msra.mxu0 %v318
        %1889 = vmatpush.bf16.msra.mxu0 %v310
        %1890 = vmatmul.bf16.gmra.mxu0 %v928
        %v1891 = vpop.f32.mrf.mxu0
        %v1892 = vadd.f32 0.0, %v1891
        %v1893 = vpop.f32.mrf.mxu0
        %v1894 = vadd.f32 0.0, %v1893
        %1895 = vmatmul.bf16.gmra.mxu0 %v930
        %v1896 = vpop.f32.mrf.mxu0
        %v1897 = vadd.f32 0.0, %v1896
        %v1898 = vpop.f32.mrf.mxu0
        %v1899 = vadd.f32 0.0, %v1898
        %1900 = vmatmul.bf16.gmra.mxu0 %v932
        %v1901 = vpop.f32.mrf.mxu0
        %v1902 = vadd.f32 0.0, %v1901
        %v1903 = vpop.f32.mrf.mxu0
        %v1904 = vadd.f32 0.0, %v1903
        %1905 = vmatmul.bf16.gmra.mxu0 %v934
        %v1906 = vpop.f32.mrf.mxu0
        %v1907 = vadd.f32 0.0, %v1906
        %v1908 = vpop.f32.mrf.mxu0
        %v1909 = vadd.f32 0.0, %v1908
        %1910 = vmatmul.bf16.gmra.mxu0 %v936
        %v1911 = vpop.f32.mrf.mxu0
        %v1912 = vadd.f32 0.0, %v1911
        %v1913 = vpop.f32.mrf.mxu0
        %v1914 = vadd.f32 0.0, %v1913
        %1915 = vmatmul.bf16.gmra.mxu0 %v938
        %v1916 = vpop.f32.mrf.mxu0
        %v1917 = vadd.f32 0.0, %v1916
        %v1918 = vpop.f32.mrf.mxu0
        %v1919 = vadd.f32 0.0, %v1918
        %1920 = vmatmul.bf16.gmra.mxu0 %v940
        %v1921 = vpop.f32.mrf.mxu0
        %v1922 = vadd.f32 0.0, %v1921
        %v1923 = vpop.f32.mrf.mxu0
        %v1924 = vadd.f32 0.0, %v1923
        %1925 = vmatmul.bf16.gmra.mxu0 %v942
        %v1926 = vpop.f32.mrf.mxu0
        %v1927 = vadd.f32 0.0, %v1926
        %v1928 = vpop.f32.mrf.mxu0
        %v1929 = vadd.f32 0.0, %v1928
        %1930 = vmatmul.bf16.gmra.mxu0 %v944
        %v1931 = vpop.f32.mrf.mxu0
        %v1932 = vadd.f32 0.0, %v1931
        %v1933 = vpop.f32.mrf.mxu0
        %v1934 = vadd.f32 0.0, %v1933
        %1935 = vmatmul.bf16.gmra.mxu0 %v946
        %v1936 = vpop.f32.mrf.mxu0
        %v1937 = vadd.f32 0.0, %v1936
        %v1938 = vpop.f32.mrf.mxu0
        %v1939 = vadd.f32 0.0, %v1938
        %1940 = vmatmul.bf16.gmra.mxu0 %v948
        %v1941 = vpop.f32.mrf.mxu0
        %v1942 = vadd.f32 0.0, %v1941
        %v1943 = vpop.f32.mrf.mxu0
        %v1944 = vadd.f32 0.0, %v1943
        %1945 = vmatmul.bf16.gmra.mxu0 %v950
        %v1946 = vpop.f32.mrf.mxu0
        %v1947 = vadd.f32 0.0, %v1946
        %v1948 = vpop.f32.mrf.mxu0
        %v1949 = vadd.f32 0.0, %v1948
        %1950 = vmatmul.bf16.gmra.mxu0 %v952
        %v1951 = vpop.f32.mrf.mxu0
        %v1952 = vadd.f32 0.0, %v1951
        %v1953 = vpop.f32.mrf.mxu0
        %v1954 = vadd.f32 0.0, %v1953
        %1955 = vmatmul.bf16.gmra.mxu0 %v954
        %v1956 = vpop.f32.mrf.mxu0
        %v1957 = vadd.f32 0.0, %v1956
        %v1958 = vpop.f32.mrf.mxu0
        %v1959 = vadd.f32 0.0, %v1958
        %1960 = vmatmul.bf16.gmra.mxu0 %v956
        %v1961 = vpop.f32.mrf.mxu0
        %v1962 = vadd.f32 0.0, %v1961
        %v1963 = vpop.f32.mrf.mxu0
        %v1964 = vadd.f32 0.0, %v1963
        %1965 = vmatmul.bf16.gmra.mxu0 %v958
        %v1966 = vpop.f32.mrf.mxu0
        %v1967 = vadd.f32 0.0, %v1966
        %v1968 = vpop.f32.mrf.mxu0
        %v1969 = vadd.f32 0.0, %v1968
        %1970 = vdwg.mxu0
        %1971 = vmatpush.bf16.msra.mxu0 %v765
        %1972 = vmatpush.bf16.msra.mxu0 %v757
        %1973 = vmatpush.bf16.msra.mxu0 %v749
        %1974 = vmatpush.bf16.msra.mxu0 %v741
        %1975 = vmatpush.bf16.msra.mxu0 %v628
        %1976 = vmatpush.bf16.msra.mxu0 %v620
        %1977 = vmatpush.bf16.msra.mxu0 %v612
        %1978 = vmatpush.bf16.msra.mxu0 %v604
        %1979 = vmatmul.bf16.gmra.mxu0 %v929
        %v1980 = vpop.f32.mrf.mxu0
        %v1981 = vadd.f32 %v1892, %v1980
        %v1982 = vpop.f32.mrf.mxu0
        %v1983 = vadd.f32 %v1894, %v1982
        %1984 = vmatmul.bf16.gmra.mxu0 %v931
        %v1985 = vpop.f32.mrf.mxu0
        %v1986 = vadd.f32 %v1897, %v1985
        %v1987 = vpop.f32.mrf.mxu0
        %v1988 = vadd.f32 %v1899, %v1987
        %1989 = vmatmul.bf16.gmra.mxu0 %v933
        %v1990 = vpop.f32.mrf.mxu0
        %v1991 = vadd.f32 %v1902, %v1990
        %v1992 = vpop.f32.mrf.mxu0
        %v1993 = vadd.f32 %v1904, %v1992
        %1994 = vmatmul.bf16.gmra.mxu0 %v935
        %v1995 = vpop.f32.mrf.mxu0
        %v1996 = vadd.f32 %v1907, %v1995
        %v1997 = vpop.f32.mrf.mxu0
        %v1998 = vadd.f32 %v1909, %v1997
        %1999 = vmatmul.bf16.gmra.mxu0 %v937
        %v2000 = vpop.f32.mrf.mxu0
        %v2001 = vadd.f32 %v1912, %v2000
        %v2002 = vpop.f32.mrf.mxu0
        %v2003 = vadd.f32 %v1914, %v2002
        %2004 = vmatmul.bf16.gmra.mxu0 %v939
        %v2005 = vpop.f32.mrf.mxu0
        %v2006 = vadd.f32 %v1917, %v2005
        %v2007 = vpop.f32.mrf.mxu0
        %v2008 = vadd.f32 %v1919, %v2007
        %2009 = vmatmul.bf16.gmra.mxu0 %v941
        %v2010 = vpop.f32.mrf.mxu0
        %v2011 = vadd.f32 %v1922, %v2010
        %v2012 = vpop.f32.mrf.mxu0
        %v2013 = vadd.f32 %v1924, %v2012
        %2014 = vmatmul.bf16.gmra.mxu0 %v943
        %v2015 = vpop.f32.mrf.mxu0
        %v2016 = vadd.f32 %v1927, %v2015
        %v2017 = vpop.f32.mrf.mxu0
        %v2018 = vadd.f32 %v1929, %v2017
        %2019 = vmatmul.bf16.gmra.mxu0 %v945
        %v2020 = vpop.f32.mrf.mxu0
        %v2021 = vadd.f32 %v1932, %v2020
        %v2022 = vpop.f32.mrf.mxu0
        %v2023 = vadd.f32 %v1934, %v2022
        %2024 = vmatmul.bf16.gmra.mxu0 %v947
        %v2025 = vpop.f32.mrf.mxu0
        %v2026 = vadd.f32 %v1937, %v2025
        %v2027 = vpop.f32.mrf.mxu0
        %v2028 = vadd.f32 %v1939, %v2027
        %2029 = vmatmul.bf16.gmra.mxu0 %v949
        %v2030 = vpop.f32.mrf.mxu0
        %v2031 = vadd.f32 %v1942, %v2030
        %v2032 = vpop.f32.mrf.mxu0
        %v2033 = vadd.f32 %v1944, %v2032
        %2034 = vmatmul.bf16.gmra.mxu0 %v951
        %v2035 = vpop.f32.mrf.mxu0
        %v2036 = vadd.f32 %v1947, %v2035
        %v2037 = vpop.f32.mrf.mxu0
        %v2038 = vadd.f32 %v1949, %v2037
        %2039 = vmatmul.bf16.gmra.mxu0 %v953
        %v2040 = vpop.f32.mrf.mxu0
        %v2041 = vadd.f32 %v1952, %v2040
        %v2042 = vpop.f32.mrf.mxu0
        %v2043 = vadd.f32 %v1954, %v2042
        %2044 = vmatmul.bf16.gmra.mxu0 %v955
        %v2045 = vpop.f32.mrf.mxu0
        %v2046 = vadd.f32 %v1957, %v2045
        %v2047 = vpop.f32.mrf.mxu0
        %v2048 = vadd.f32 %v1959, %v2047
        %2049 = vmatmul.bf16.gmra.mxu0 %v957
        %v2050 = vpop.f32.mrf.mxu0
        %v2051 = vadd.f32 %v1962, %v2050
        %v2052 = vpop.f32.mrf.mxu0
        %v2053 = vadd.f32 %v1964, %v2052
        %2054 = vmatmul.bf16.gmra.mxu0 %v959
        %v2055 = vpop.f32.mrf.mxu0
        %v2056 = vadd.f32 %v1967, %v2055
        %v2057 = vpop.f32.mrf.mxu0
        %v2058 = vadd.f32 %v1969, %v2057
        %2059 = vdwg.mxu0
        %2060 = vmatpush.bf16.msra.mxu0 %v492
        %2061 = vmatpush.bf16.msra.mxu0 %v484
        %2062 = vmatpush.bf16.msra.mxu0 %v476
        %2063 = vmatpush.bf16.msra.mxu0 %v468
        %2064 = vmatpush.bf16.msra.mxu0 %v335
        %2065 = vmatpush.bf16.msra.mxu0 %v327
        %2066 = vmatpush.bf16.msra.mxu0 %v319
        %2067 = vmatpush.bf16.msra.mxu0 %v311
        %2068 = vmatmul.bf16.gmra.mxu0 %v928
        %v2069 = vpop.f32.mrf.mxu0
        %v2070 = vadd.f32 0.0, %v2069
        %v2071 = vpop.f32.mrf.mxu0
        %v2072 = vadd.f32 0.0, %v2071
        %2073 = vmatmul.bf16.gmra.mxu0 %v930
        %v2074 = vpop.f32.mrf.mxu0
        %v2075 = vadd.f32 0.0, %v2074
        %v2076 = vpop.f32.mrf.mxu0
        %v2077 = vadd.f32 0.0, %v2076
        %2078 = vmatmul.bf16.gmra.mxu0 %v932
        %v2079 = vpop.f32.mrf.mxu0
        %v2080 = vadd.f32 0.0, %v2079
        %v2081 = vpop.f32.mrf.mxu0
        %v2082 = vadd.f32 0.0, %v2081
        %2083 = vmatmul.bf16.gmra.mxu0 %v934
        %v2084 = vpop.f32.mrf.mxu0
        %v2085 = vadd.f32 0.0, %v2084
        %v2086 = vpop.f32.mrf.mxu0
        %v2087 = vadd.f32 0.0, %v2086
        %2088 = vmatmul.bf16.gmra.mxu0 %v936
        %v2089 = vpop.f32.mrf.mxu0
        %v2090 = vadd.f32 0.0, %v2089
        %v2091 = vpop.f32.mrf.mxu0
        %v2092 = vadd.f32 0.0, %v2091
        %2093 = vmatmul.bf16.gmra.mxu0 %v938
        %v2094 = vpop.f32.mrf.mxu0
        %v2095 = vadd.f32 0.0, %v2094
        %v2096 = vpop.f32.mrf.mxu0
        %v2097 = vadd.f32 0.0, %v2096
        %2098 = vmatmul.bf16.gmra.mxu0 %v940
        %v2099 = vpop.f32.mrf.mxu0
        %v2100 = vadd.f32 0.0, %v2099
        %v2101 = vpop.f32.mrf.mxu0
        %v2102 = vadd.f32 0.0, %v2101
        %2103 = vmatmul.bf16.gmra.mxu0 %v942
        %v2104 = vpop.f32.mrf.mxu0
        %v2105 = vadd.f32 0.0, %v2104
        %v2106 = vpop.f32.mrf.mxu0
        %v2107 = vadd.f32 0.0, %v2106
        %2108 = vmatmul.bf16.gmra.mxu0 %v944
        %v2109 = vpop.f32.mrf.mxu0
        %v2110 = vadd.f32 0.0, %v2109
        %v2111 = vpop.f32.mrf.mxu0
        %v2112 = vadd.f32 0.0, %v2111
        %2113 = vmatmul.bf16.gmra.mxu0 %v946
        %v2114 = vpop.f32.mrf.mxu0
        %v2115 = vadd.f32 0.0, %v2114
        %v2116 = vpop.f32.mrf.mxu0
        %v2117 = vadd.f32 0.0, %v2116
        %2118 = vmatmul.bf16.gmra.mxu0 %v948
        %v2119 = vpop.f32.mrf.mxu0
        %v2120 = vadd.f32 0.0, %v2119
        %v2121 = vpop.f32.mrf.mxu0
        %v2122 = vadd.f32 0.0, %v2121
        %2123 = vmatmul.bf16.gmra.mxu0 %v950
        %v2124 = vpop.f32.mrf.mxu0
        %v2125 = vadd.f32 0.0, %v2124
        %v2126 = vpop.f32.mrf.mxu0
        %v2127 = vadd.f32 0.0, %v2126
        %2128 = vmatmul.bf16.gmra.mxu0 %v952
        %v2129 = vpop.f32.mrf.mxu0
        %v2130 = vadd.f32 0.0, %v2129
        %v2131 = vpop.f32.mrf.mxu0
        %v2132 = vadd.f32 0.0, %v2131
        %2133 = vmatmul.bf16.gmra.mxu0 %v954
        %v2134 = vpop.f32.mrf.mxu0
        %v2135 = vadd.f32 0.0, %v2134
        %v2136 = vpop.f32.mrf.mxu0
        %v2137 = vadd.f32 0.0, %v2136
        %2138 = vmatmul.bf16.gmra.mxu0 %v956
        %v2139 = vpop.f32.mrf.mxu0
        %v2140 = vadd.f32 0.0, %v2139
        %v2141 = vpop.f32.mrf.mxu0
        %v2142 = vadd.f32 0.0, %v2141
        %2143 = vmatmul.bf16.gmra.mxu0 %v958
        %v2144 = vpop.f32.mrf.mxu0
        %v2145 = vadd.f32 0.0, %v2144
        %v2146 = vpop.f32.mrf.mxu0
        %v2147 = vadd.f32 0.0, %v2146
        %2148 = vdwg.mxu0
        %2149 = vmatpush.bf16.msra.mxu0 %v766
        %2150 = vmatpush.bf16.msra.mxu0 %v758
        %2151 = vmatpush.bf16.msra.mxu0 %v750
        %2152 = vmatpush.bf16.msra.mxu0 %v742
        %2153 = vmatpush.bf16.msra.mxu0 %v629
        %2154 = vmatpush.bf16.msra.mxu0 %v621
        %2155 = vmatpush.bf16.msra.mxu0 %v613
        %2156 = vmatpush.bf16.msra.mxu0 %v605
        %2157 = vmatmul.bf16.gmra.mxu0 %v929
        %v2158 = vpop.f32.mrf.mxu0
        %v2159 = vadd.f32 %v2070, %v2158
        %v2160 = vpop.f32.mrf.mxu0
        %v2161 = vadd.f32 %v2072, %v2160
        %2162 = vmatmul.bf16.gmra.mxu0 %v931
        %v2163 = vpop.f32.mrf.mxu0
        %v2164 = vadd.f32 %v2075, %v2163
        %v2165 = vpop.f32.mrf.mxu0
        %v2166 = vadd.f32 %v2077, %v2165
        %2167 = vmatmul.bf16.gmra.mxu0 %v933
        %v2168 = vpop.f32.mrf.mxu0
        %v2169 = vadd.f32 %v2080, %v2168
        %v2170 = vpop.f32.mrf.mxu0
        %v2171 = vadd.f32 %v2082, %v2170
        %2172 = vmatmul.bf16.gmra.mxu0 %v935
        %v2173 = vpop.f32.mrf.mxu0
        %v2174 = vadd.f32 %v2085, %v2173
        %v2175 = vpop.f32.mrf.mxu0
        %v2176 = vadd.f32 %v2087, %v2175
        %2177 = vmatmul.bf16.gmra.mxu0 %v937
        %v2178 = vpop.f32.mrf.mxu0
        %v2179 = vadd.f32 %v2090, %v2178
        %v2180 = vpop.f32.mrf.mxu0
        %v2181 = vadd.f32 %v2092, %v2180
        %2182 = vmatmul.bf16.gmra.mxu0 %v939
        %v2183 = vpop.f32.mrf.mxu0
        %v2184 = vadd.f32 %v2095, %v2183
        %v2185 = vpop.f32.mrf.mxu0
        %v2186 = vadd.f32 %v2097, %v2185
        %2187 = vmatmul.bf16.gmra.mxu0 %v941
        %v2188 = vpop.f32.mrf.mxu0
        %v2189 = vadd.f32 %v2100, %v2188
        %v2190 = vpop.f32.mrf.mxu0
        %v2191 = vadd.f32 %v2102, %v2190
        %2192 = vmatmul.bf16.gmra.mxu0 %v943
        %v2193 = vpop.f32.mrf.mxu0
        %v2194 = vadd.f32 %v2105, %v2193
        %v2195 = vpop.f32.mrf.mxu0
        %v2196 = vadd.f32 %v2107, %v2195
        %2197 = vmatmul.bf16.gmra.mxu0 %v945
        %v2198 = vpop.f32.mrf.mxu0
        %v2199 = vadd.f32 %v2110, %v2198
        %v2200 = vpop.f32.mrf.mxu0
        %v2201 = vadd.f32 %v2112, %v2200
        %2202 = vmatmul.bf16.gmra.mxu0 %v947
        %v2203 = vpop.f32.mrf.mxu0
        %v2204 = vadd.f32 %v2115, %v2203
        %v2205 = vpop.f32.mrf.mxu0
        %v2206 = vadd.f32 %v2117, %v2205
        %2207 = vmatmul.bf16.gmra.mxu0 %v949
        %v2208 = vpop.f32.mrf.mxu0
        %v2209 = vadd.f32 %v2120, %v2208
        %v2210 = vpop.f32.mrf.mxu0
        %v2211 = vadd.f32 %v2122, %v2210
        %2212 = vmatmul.bf16.gmra.mxu0 %v951
        %v2213 = vpop.f32.mrf.mxu0
        %v2214 = vadd.f32 %v2125, %v2213
        %v2215 = vpop.f32.mrf.mxu0
        %v2216 = vadd.f32 %v2127, %v2215
        %2217 = vmatmul.bf16.gmra.mxu0 %v953
        %v2218 = vpop.f32.mrf.mxu0
        %v2219 = vadd.f32 %v2130, %v2218
        %v2220 = vpop.f32.mrf.mxu0
        %v2221 = vadd.f32 %v2132, %v2220
        %2222 = vmatmul.bf16.gmra.mxu0 %v955
        %v2223 = vpop.f32.mrf.mxu0
        %v2224 = vadd.f32 %v2135, %v2223
        %v2225 = vpop.f32.mrf.mxu0
        %v2226 = vadd.f32 %v2137, %v2225
        %2227 = vmatmul.bf16.gmra.mxu0 %v957
        %v2228 = vpop.f32.mrf.mxu0
        %v2229 = vadd.f32 %v2140, %v2228
        %v2230 = vpop.f32.mrf.mxu0
        %v2231 = vadd.f32 %v2142, %v2230
        %2232 = vmatmul.bf16.gmra.mxu0 %v959
        %v2233 = vpop.f32.mrf.mxu0
        %v2234 = vadd.f32 %v2145, %v2233
        %v2235 = vpop.f32.mrf.mxu0
        %v2236 = vadd.f32 %v2147, %v2235
        %2237 = vdwg.mxu0
        %2238 = vmatpush.bf16.msra.mxu0 %v493
        %2239 = vmatpush.bf16.msra.mxu0 %v485
        %2240 = vmatpush.bf16.msra.mxu0 %v477
        %2241 = vmatpush.bf16.msra.mxu0 %v469
        %2242 = vmatpush.bf16.msra.mxu0 %v336
        %2243 = vmatpush.bf16.msra.mxu0 %v328
        %2244 = vmatpush.bf16.msra.mxu0 %v320
        %2245 = vmatpush.bf16.msra.mxu0 %v312
        %2246 = vmatmul.bf16.gmra.mxu0 %v928
        %v2247 = vpop.f32.mrf.mxu0
        %v2248 = vadd.f32 0.0, %v2247
        %v2249 = vpop.f32.mrf.mxu0
        %v2250 = vadd.f32 0.0, %v2249
        %2251 = vmatmul.bf16.gmra.mxu0 %v930
        %v2252 = vpop.f32.mrf.mxu0
        %v2253 = vadd.f32 0.0, %v2252
        %v2254 = vpop.f32.mrf.mxu0
        %v2255 = vadd.f32 0.0, %v2254
        %2256 = vmatmul.bf16.gmra.mxu0 %v932
        %v2257 = vpop.f32.mrf.mxu0
        %v2258 = vadd.f32 0.0, %v2257
        %v2259 = vpop.f32.mrf.mxu0
        %v2260 = vadd.f32 0.0, %v2259
        %2261 = vmatmul.bf16.gmra.mxu0 %v934
        %v2262 = vpop.f32.mrf.mxu0
        %v2263 = vadd.f32 0.0, %v2262
        %v2264 = vpop.f32.mrf.mxu0
        %v2265 = vadd.f32 0.0, %v2264
        %2266 = vmatmul.bf16.gmra.mxu0 %v936
        %v2267 = vpop.f32.mrf.mxu0
        %v2268 = vadd.f32 0.0, %v2267
        %v2269 = vpop.f32.mrf.mxu0
        %v2270 = vadd.f32 0.0, %v2269
        %2271 = vmatmul.bf16.gmra.mxu0 %v938
        %v2272 = vpop.f32.mrf.mxu0
        %v2273 = vadd.f32 0.0, %v2272
        %v2274 = vpop.f32.mrf.mxu0
        %v2275 = vadd.f32 0.0, %v2274
        %2276 = vmatmul.bf16.gmra.mxu0 %v940
        %v2277 = vpop.f32.mrf.mxu0
        %v2278 = vadd.f32 0.0, %v2277
        %v2279 = vpop.f32.mrf.mxu0
        %v2280 = vadd.f32 0.0, %v2279
        %2281 = vmatmul.bf16.gmra.mxu0 %v942
        %v2282 = vpop.f32.mrf.mxu0
        %v2283 = vadd.f32 0.0, %v2282
        %v2284 = vpop.f32.mrf.mxu0
        %v2285 = vadd.f32 0.0, %v2284
        %2286 = vmatmul.bf16.gmra.mxu0 %v944
        %v2287 = vpop.f32.mrf.mxu0
        %v2288 = vadd.f32 0.0, %v2287
        %v2289 = vpop.f32.mrf.mxu0
        %v2290 = vadd.f32 0.0, %v2289
        %2291 = vmatmul.bf16.gmra.mxu0 %v946
        %v2292 = vpop.f32.mrf.mxu0
        %v2293 = vadd.f32 0.0, %v2292
        %v2294 = vpop.f32.mrf.mxu0
        %v2295 = vadd.f32 0.0, %v2294
        %2296 = vmatmul.bf16.gmra.mxu0 %v948
        %v2297 = vpop.f32.mrf.mxu0
        %v2298 = vadd.f32 0.0, %v2297
        %v2299 = vpop.f32.mrf.mxu0
        %v2300 = vadd.f32 0.0, %v2299
        %2301 = vmatmul.bf16.gmra.mxu0 %v950
        %v2302 = vpop.f32.mrf.mxu0
        %v2303 = vadd.f32 0.0, %v2302
        %v2304 = vpop.f32.mrf.mxu0
        %v2305 = vadd.f32 0.0, %v2304
        %2306 = vmatmul.bf16.gmra.mxu0 %v952
        %v2307 = vpop.f32.mrf.mxu0
        %v2308 = vadd.f32 0.0, %v2307
        %v2309 = vpop.f32.mrf.mxu0
        %v2310 = vadd.f32 0.0, %v2309
        %2311 = vmatmul.bf16.gmra.mxu0 %v954
        %v2312 = vpop.f32.mrf.mxu0
        %v2313 = vadd.f32 0.0, %v2312
        %v2314 = vpop.f32.mrf.mxu0
        %v2315 = vadd.f32 0.0, %v2314
        %2316 = vmatmul.bf16.gmra.mxu0 %v956
        %v2317 = vpop.f32.mrf.mxu0
        %v2318 = vadd.f32 0.0, %v2317
        %v2319 = vpop.f32.mrf.mxu0
        %v2320 = vadd.f32 0.0, %v2319
        %2321 = vmatmul.bf16.gmra.mxu0 %v958
        %v2322 = vpop.f32.mrf.mxu0
        %v2323 = vadd.f32 0.0, %v2322
        %v2324 = vpop.f32.mrf.mxu0
        %v2325 = vadd.f32 0.0, %v2324
        %2326 = vdwg.mxu0
        %2327 = vmatpush.bf16.msra.mxu0 %v767
        %2328 = vmatpush.bf16.msra.mxu0 %v759
        %2329 = vmatpush.bf16.msra.mxu0 %v751
        %2330 = vmatpush.bf16.msra.mxu0 %v743
        %2331 = vmatpush.bf16.msra.mxu0 %v630
        %2332 = vmatpush.bf16.msra.mxu0 %v622
        %2333 = vmatpush.bf16.msra.mxu0 %v614
        %2334 = vmatpush.bf16.msra.mxu0 %v606
        %2335 = vmatmul.bf16.gmra.mxu0 %v929
        %v2336 = vpop.f32.mrf.mxu0
        %v2337 = vadd.f32 %v2248, %v2336
        %v2338 = vpop.f32.mrf.mxu0
        %v2339 = vadd.f32 %v2250, %v2338
        %2340 = vmatmul.bf16.gmra.mxu0 %v931
        %v2341 = vpop.f32.mrf.mxu0
        %v2342 = vadd.f32 %v2253, %v2341
        %v2343 = vpop.f32.mrf.mxu0
        %v2344 = vadd.f32 %v2255, %v2343
        %2345 = vmatmul.bf16.gmra.mxu0 %v933
        %v2346 = vpop.f32.mrf.mxu0
        %v2347 = vadd.f32 %v2258, %v2346
        %v2348 = vpop.f32.mrf.mxu0
        %v2349 = vadd.f32 %v2260, %v2348
        %2350 = vmatmul.bf16.gmra.mxu0 %v935
        %v2351 = vpop.f32.mrf.mxu0
        %v2352 = vadd.f32 %v2263, %v2351
        %v2353 = vpop.f32.mrf.mxu0
        %v2354 = vadd.f32 %v2265, %v2353
        %2355 = vmatmul.bf16.gmra.mxu0 %v937
        %v2356 = vpop.f32.mrf.mxu0
        %v2357 = vadd.f32 %v2268, %v2356
        %v2358 = vpop.f32.mrf.mxu0
        %v2359 = vadd.f32 %v2270, %v2358
        %2360 = vmatmul.bf16.gmra.mxu0 %v939
        %v2361 = vpop.f32.mrf.mxu0
        %v2362 = vadd.f32 %v2273, %v2361
        %v2363 = vpop.f32.mrf.mxu0
        %v2364 = vadd.f32 %v2275, %v2363
        %2365 = vmatmul.bf16.gmra.mxu0 %v941
        %v2366 = vpop.f32.mrf.mxu0
        %v2367 = vadd.f32 %v2278, %v2366
        %v2368 = vpop.f32.mrf.mxu0
        %v2369 = vadd.f32 %v2280, %v2368
        %2370 = vmatmul.bf16.gmra.mxu0 %v943
        %v2371 = vpop.f32.mrf.mxu0
        %v2372 = vadd.f32 %v2283, %v2371
        %v2373 = vpop.f32.mrf.mxu0
        %v2374 = vadd.f32 %v2285, %v2373
        %2375 = vmatmul.bf16.gmra.mxu0 %v945
        %v2376 = vpop.f32.mrf.mxu0
        %v2377 = vadd.f32 %v2288, %v2376
        %v2378 = vpop.f32.mrf.mxu0
        %v2379 = vadd.f32 %v2290, %v2378
        %2380 = vmatmul.bf16.gmra.mxu0 %v947
        %v2381 = vpop.f32.mrf.mxu0
        %v2382 = vadd.f32 %v2293, %v2381
        %v2383 = vpop.f32.mrf.mxu0
        %v2384 = vadd.f32 %v2295, %v2383
        %2385 = vmatmul.bf16.gmra.mxu0 %v949
        %v2386 = vpop.f32.mrf.mxu0
        %v2387 = vadd.f32 %v2298, %v2386
        %v2388 = vpop.f32.mrf.mxu0
        %v2389 = vadd.f32 %v2300, %v2388
        %2390 = vmatmul.bf16.gmra.mxu0 %v951
        %v2391 = vpop.f32.mrf.mxu0
        %v2392 = vadd.f32 %v2303, %v2391
        %v2393 = vpop.f32.mrf.mxu0
        %v2394 = vadd.f32 %v2305, %v2393
        %2395 = vmatmul.bf16.gmra.mxu0 %v953
        %v2396 = vpop.f32.mrf.mxu0
        %v2397 = vadd.f32 %v2308, %v2396
        %v2398 = vpop.f32.mrf.mxu0
        %v2399 = vadd.f32 %v2310, %v2398
        %2400 = vmatmul.bf16.gmra.mxu0 %v955
        %v2401 = vpop.f32.mrf.mxu0
        %v2402 = vadd.f32 %v2313, %v2401
        %v2403 = vpop.f32.mrf.mxu0
        %v2404 = vadd.f32 %v2315, %v2403
        %2405 = vmatmul.bf16.gmra.mxu0 %v957
        %v2406 = vpop.f32.mrf.mxu0
        %v2407 = vadd.f32 %v2318, %v2406
        %v2408 = vpop.f32.mrf.mxu0
        %v2409 = vadd.f32 %v2320, %v2408
        %2410 = vmatmul.bf16.gmra.mxu0 %v959
        %v2411 = vpop.f32.mrf.mxu0
        %v2412 = vadd.f32 %v2323, %v2411
        %v2413 = vpop.f32.mrf.mxu0
        %v2414 = vadd.f32 %v2325, %v2413
        %2415 = vdwg.mxu0
        %v2416 = vmul.f32 %v1091, %v1091
        %v2417 = vmul.f32 %v1269, %v1269
        %v2418 = vmul.f32 %v1447, %v1447
        %v2419 = vmul.f32 %v1625, %v1625
        %v2420 = vmul.f32 %v1803, %v1803
        %v2421 = vmul.f32 %v1981, %v1981
        %v2422 = vmul.f32 %v2159, %v2159
        %v2423 = vmul.f32 %v2337, %v2337
        %v2424 = vmul.f32 %v1093, %v1093
        %v2425 = vmul.f32 %v1271, %v1271
        %v2426 = vmul.f32 %v1449, %v1449
        %v2427 = vmul.f32 %v1627, %v1627
        %v2428 = vmul.f32 %v1805, %v1805
        %v2429 = vmul.f32 %v1983, %v1983
        %v2430 = vmul.f32 %v2161, %v2161
        %v2431 = vmul.f32 %v2339, %v2339
        %v2432 = vmul.f32 %v1096, %v1096
        %v2433 = vmul.f32 %v1274, %v1274
        %v2434 = vmul.f32 %v1452, %v1452
        %v2435 = vmul.f32 %v1630, %v1630
        %v2436 = vmul.f32 %v1808, %v1808
        %v2437 = vmul.f32 %v1986, %v1986
        %v2438 = vmul.f32 %v2164, %v2164
        %v2439 = vmul.f32 %v2342, %v2342
        %v2440 = vmul.f32 %v1098, %v1098
        %v2441 = vmul.f32 %v1276, %v1276
        %v2442 = vmul.f32 %v1454, %v1454
        %v2443 = vmul.f32 %v1632, %v1632
        %v2444 = vmul.f32 %v1810, %v1810
        %v2445 = vmul.f32 %v1988, %v1988
        %v2446 = vmul.f32 %v2166, %v2166
        %v2447 = vmul.f32 %v2344, %v2344
        %v2448 = vmul.f32 %v1101, %v1101
        %v2449 = vmul.f32 %v1279, %v1279
        %v2450 = vmul.f32 %v1457, %v1457
        %v2451 = vmul.f32 %v1635, %v1635
        %v2452 = vmul.f32 %v1813, %v1813
        %v2453 = vmul.f32 %v1991, %v1991
        %v2454 = vmul.f32 %v2169, %v2169
        %v2455 = vmul.f32 %v2347, %v2347
        %v2456 = vmul.f32 %v1103, %v1103
        %v2457 = vmul.f32 %v1281, %v1281
        %v2458 = vmul.f32 %v1459, %v1459
        %v2459 = vmul.f32 %v1637, %v1637
        %v2460 = vmul.f32 %v1815, %v1815
        %v2461 = vmul.f32 %v1993, %v1993
        %v2462 = vmul.f32 %v2171, %v2171
        %v2463 = vmul.f32 %v2349, %v2349
        %v2464 = vmul.f32 %v1106, %v1106
        %v2465 = vmul.f32 %v1284, %v1284
        %v2466 = vmul.f32 %v1462, %v1462
        %v2467 = vmul.f32 %v1640, %v1640
        %v2468 = vmul.f32 %v1818, %v1818
        %v2469 = vmul.f32 %v1996, %v1996
        %v2470 = vmul.f32 %v2174, %v2174
        %v2471 = vmul.f32 %v2352, %v2352
        %v2472 = vmul.f32 %v1108, %v1108
        %v2473 = vmul.f32 %v1286, %v1286
        %v2474 = vmul.f32 %v1464, %v1464
        %v2475 = vmul.f32 %v1642, %v1642
        %v2476 = vmul.f32 %v1820, %v1820
        %v2477 = vmul.f32 %v1998, %v1998
        %v2478 = vmul.f32 %v2176, %v2176
        %v2479 = vmul.f32 %v2354, %v2354
        %v2480 = vmul.f32 %v1111, %v1111
        %v2481 = vmul.f32 %v1289, %v1289
        %v2482 = vmul.f32 %v1467, %v1467
        %v2483 = vmul.f32 %v1645, %v1645
        %v2484 = vmul.f32 %v1823, %v1823
        %v2485 = vmul.f32 %v2001, %v2001
        %v2486 = vmul.f32 %v2179, %v2179
        %v2487 = vmul.f32 %v2357, %v2357
        %v2488 = vmul.f32 %v1113, %v1113
        %v2489 = vmul.f32 %v1291, %v1291
        %v2490 = vmul.f32 %v1469, %v1469
        %v2491 = vmul.f32 %v1647, %v1647
        %v2492 = vmul.f32 %v1825, %v1825
        %v2493 = vmul.f32 %v2003, %v2003
        %v2494 = vmul.f32 %v2181, %v2181
        %v2495 = vmul.f32 %v2359, %v2359
        %v2496 = vmul.f32 %v1116, %v1116
        %v2497 = vmul.f32 %v1294, %v1294
        %v2498 = vmul.f32 %v1472, %v1472
        %v2499 = vmul.f32 %v1650, %v1650
        %v2500 = vmul.f32 %v1828, %v1828
        %v2501 = vmul.f32 %v2006, %v2006
        %v2502 = vmul.f32 %v2184, %v2184
        %v2503 = vmul.f32 %v2362, %v2362
        %v2504 = vmul.f32 %v1118, %v1118
        %v2505 = vmul.f32 %v1296, %v1296
        %v2506 = vmul.f32 %v1474, %v1474
        %v2507 = vmul.f32 %v1652, %v1652
        %v2508 = vmul.f32 %v1830, %v1830
        %v2509 = vmul.f32 %v2008, %v2008
        %v2510 = vmul.f32 %v2186, %v2186
        %v2511 = vmul.f32 %v2364, %v2364
        %v2512 = vmul.f32 %v1121, %v1121
        %v2513 = vmul.f32 %v1299, %v1299
        %v2514 = vmul.f32 %v1477, %v1477
        %v2515 = vmul.f32 %v1655, %v1655
        %v2516 = vmul.f32 %v1833, %v1833
        %v2517 = vmul.f32 %v2011, %v2011
        %v2518 = vmul.f32 %v2189, %v2189
        %v2519 = vmul.f32 %v2367, %v2367
        %v2520 = vmul.f32 %v1123, %v1123
        %v2521 = vmul.f32 %v1301, %v1301
        %v2522 = vmul.f32 %v1479, %v1479
        %v2523 = vmul.f32 %v1657, %v1657
        %v2524 = vmul.f32 %v1835, %v1835
        %v2525 = vmul.f32 %v2013, %v2013
        %v2526 = vmul.f32 %v2191, %v2191
        %v2527 = vmul.f32 %v2369, %v2369
        %v2528 = vmul.f32 %v1126, %v1126
        %v2529 = vmul.f32 %v1304, %v1304
        %v2530 = vmul.f32 %v1482, %v1482
        %v2531 = vmul.f32 %v1660, %v1660
        %v2532 = vmul.f32 %v1838, %v1838
        %v2533 = vmul.f32 %v2016, %v2016
        %v2534 = vmul.f32 %v2194, %v2194
        %v2535 = vmul.f32 %v2372, %v2372
        %v2536 = vmul.f32 %v1128, %v1128
        %v2537 = vmul.f32 %v1306, %v1306
        %v2538 = vmul.f32 %v1484, %v1484
        %v2539 = vmul.f32 %v1662, %v1662
        %v2540 = vmul.f32 %v1840, %v1840
        %v2541 = vmul.f32 %v2018, %v2018
        %v2542 = vmul.f32 %v2196, %v2196
        %v2543 = vmul.f32 %v2374, %v2374
        %v2544 = vmul.f32 %v1131, %v1131
        %v2545 = vmul.f32 %v1309, %v1309
        %v2546 = vmul.f32 %v1487, %v1487
        %v2547 = vmul.f32 %v1665, %v1665
        %v2548 = vmul.f32 %v1843, %v1843
        %v2549 = vmul.f32 %v2021, %v2021
        %v2550 = vmul.f32 %v2199, %v2199
        %v2551 = vmul.f32 %v2377, %v2377
        %v2552 = vmul.f32 %v1133, %v1133
        %v2553 = vmul.f32 %v1311, %v1311
        %v2554 = vmul.f32 %v1489, %v1489
        %v2555 = vmul.f32 %v1667, %v1667
        %v2556 = vmul.f32 %v1845, %v1845
        %v2557 = vmul.f32 %v2023, %v2023
        %v2558 = vmul.f32 %v2201, %v2201
        %v2559 = vmul.f32 %v2379, %v2379
        %v2560 = vmul.f32 %v1136, %v1136
        %v2561 = vmul.f32 %v1314, %v1314
        %v2562 = vmul.f32 %v1492, %v1492
        %v2563 = vmul.f32 %v1670, %v1670
        %v2564 = vmul.f32 %v1848, %v1848
        %v2565 = vmul.f32 %v2026, %v2026
        %v2566 = vmul.f32 %v2204, %v2204
        %v2567 = vmul.f32 %v2382, %v2382
        %v2568 = vmul.f32 %v1138, %v1138
        %v2569 = vmul.f32 %v1316, %v1316
        %v2570 = vmul.f32 %v1494, %v1494
        %v2571 = vmul.f32 %v1672, %v1672
        %v2572 = vmul.f32 %v1850, %v1850
        %v2573 = vmul.f32 %v2028, %v2028
        %v2574 = vmul.f32 %v2206, %v2206
        %v2575 = vmul.f32 %v2384, %v2384
        %v2576 = vmul.f32 %v1141, %v1141
        %v2577 = vmul.f32 %v1319, %v1319
        %v2578 = vmul.f32 %v1497, %v1497
        %v2579 = vmul.f32 %v1675, %v1675
        %v2580 = vmul.f32 %v1853, %v1853
        %v2581 = vmul.f32 %v2031, %v2031
        %v2582 = vmul.f32 %v2209, %v2209
        %v2583 = vmul.f32 %v2387, %v2387
        %v2584 = vmul.f32 %v1143, %v1143
        %v2585 = vmul.f32 %v1321, %v1321
        %v2586 = vmul.f32 %v1499, %v1499
        %v2587 = vmul.f32 %v1677, %v1677
        %v2588 = vmul.f32 %v1855, %v1855
        %v2589 = vmul.f32 %v2033, %v2033
        %v2590 = vmul.f32 %v2211, %v2211
        %v2591 = vmul.f32 %v2389, %v2389
        %v2592 = vmul.f32 %v1146, %v1146
        %v2593 = vmul.f32 %v1324, %v1324
        %v2594 = vmul.f32 %v1502, %v1502
        %v2595 = vmul.f32 %v1680, %v1680
        %v2596 = vmul.f32 %v1858, %v1858
        %v2597 = vmul.f32 %v2036, %v2036
        %v2598 = vmul.f32 %v2214, %v2214
        %v2599 = vmul.f32 %v2392, %v2392
        %v2600 = vmul.f32 %v1148, %v1148
        %v2601 = vmul.f32 %v1326, %v1326
        %v2602 = vmul.f32 %v1504, %v1504
        %v2603 = vmul.f32 %v1682, %v1682
        %v2604 = vmul.f32 %v1860, %v1860
        %v2605 = vmul.f32 %v2038, %v2038
        %v2606 = vmul.f32 %v2216, %v2216
        %v2607 = vmul.f32 %v2394, %v2394
        %v2608 = vmul.f32 %v1151, %v1151
        %v2609 = vmul.f32 %v1329, %v1329
        %v2610 = vmul.f32 %v1507, %v1507
        %v2611 = vmul.f32 %v1685, %v1685
        %v2612 = vmul.f32 %v1863, %v1863
        %v2613 = vmul.f32 %v2041, %v2041
        %v2614 = vmul.f32 %v2219, %v2219
        %v2615 = vmul.f32 %v2397, %v2397
        %v2616 = vmul.f32 %v1153, %v1153
        %v2617 = vmul.f32 %v1331, %v1331
        %v2618 = vmul.f32 %v1509, %v1509
        %v2619 = vmul.f32 %v1687, %v1687
        %v2620 = vmul.f32 %v1865, %v1865
        %v2621 = vmul.f32 %v2043, %v2043
        %v2622 = vmul.f32 %v2221, %v2221
        %v2623 = vmul.f32 %v2399, %v2399
        %v2624 = vmul.f32 %v1156, %v1156
        %v2625 = vmul.f32 %v1334, %v1334
        %v2626 = vmul.f32 %v1512, %v1512
        %v2627 = vmul.f32 %v1690, %v1690
        %v2628 = vmul.f32 %v1868, %v1868
        %v2629 = vmul.f32 %v2046, %v2046
        %v2630 = vmul.f32 %v2224, %v2224
        %v2631 = vmul.f32 %v2402, %v2402
        %v2632 = vmul.f32 %v1158, %v1158
        %v2633 = vmul.f32 %v1336, %v1336
        %v2634 = vmul.f32 %v1514, %v1514
        %v2635 = vmul.f32 %v1692, %v1692
        %v2636 = vmul.f32 %v1870, %v1870
        %v2637 = vmul.f32 %v2048, %v2048
        %v2638 = vmul.f32 %v2226, %v2226
        %v2639 = vmul.f32 %v2404, %v2404
        %v2640 = vmul.f32 %v1161, %v1161
        %v2641 = vmul.f32 %v1339, %v1339
        %v2642 = vmul.f32 %v1517, %v1517
        %v2643 = vmul.f32 %v1695, %v1695
        %v2644 = vmul.f32 %v1873, %v1873
        %v2645 = vmul.f32 %v2051, %v2051
        %v2646 = vmul.f32 %v2229, %v2229
        %v2647 = vmul.f32 %v2407, %v2407
        %v2648 = vmul.f32 %v1163, %v1163
        %v2649 = vmul.f32 %v1341, %v1341
        %v2650 = vmul.f32 %v1519, %v1519
        %v2651 = vmul.f32 %v1697, %v1697
        %v2652 = vmul.f32 %v1875, %v1875
        %v2653 = vmul.f32 %v2053, %v2053
        %v2654 = vmul.f32 %v2231, %v2231
        %v2655 = vmul.f32 %v2409, %v2409
        %v2656 = vmul.f32 %v1166, %v1166
        %v2657 = vmul.f32 %v1344, %v1344
        %v2658 = vmul.f32 %v1522, %v1522
        %v2659 = vmul.f32 %v1700, %v1700
        %v2660 = vmul.f32 %v1878, %v1878
        %v2661 = vmul.f32 %v2056, %v2056
        %v2662 = vmul.f32 %v2234, %v2234
        %v2663 = vmul.f32 %v2412, %v2412
        %v2664 = vmul.f32 %v1168, %v1168
        %v2665 = vmul.f32 %v1346, %v1346
        %v2666 = vmul.f32 %v1524, %v1524
        %v2667 = vmul.f32 %v1702, %v1702
        %v2668 = vmul.f32 %v1880, %v1880
        %v2669 = vmul.f32 %v2058, %v2058
        %v2670 = vmul.f32 %v2236, %v2236
        %v2671 = vmul.f32 %v2414, %v2414
        %v2672 = vadd.f32 %v2416, %v2544
        %v2673 = vadd.f32 %v2417, %v2545
        %v2674 = vadd.f32 %v2418, %v2546
        %v2675 = vadd.f32 %v2419, %v2547
        %v2676 = vadd.f32 %v2420, %v2548
        %v2677 = vadd.f32 %v2421, %v2549
        %v2678 = vadd.f32 %v2422, %v2550
        %v2679 = vadd.f32 %v2423, %v2551
        %v2680 = vadd.f32 %v2424, %v2552
        %v2681 = vadd.f32 %v2425, %v2553
        %v2682 = vadd.f32 %v2426, %v2554
        %v2683 = vadd.f32 %v2427, %v2555
        %v2684 = vadd.f32 %v2428, %v2556
        %v2685 = vadd.f32 %v2429, %v2557
        %v2686 = vadd.f32 %v2430, %v2558
        %v2687 = vadd.f32 %v2431, %v2559
        %v2688 = vadd.f32 %v2432, %v2560
        %v2689 = vadd.f32 %v2433, %v2561
        %v2690 = vadd.f32 %v2434, %v2562
        %v2691 = vadd.f32 %v2435, %v2563
        %v2692 = vadd.f32 %v2436, %v2564
        %v2693 = vadd.f32 %v2437, %v2565
        %v2694 = vadd.f32 %v2438, %v2566
        %v2695 = vadd.f32 %v2439, %v2567
        %v2696 = vadd.f32 %v2440, %v2568
        %v2697 = vadd.f32 %v2441, %v2569
        %v2698 = vadd.f32 %v2442, %v2570
        %v2699 = vadd.f32 %v2443, %v2571
        %v2700 = vadd.f32 %v2444, %v2572
        %v2701 = vadd.f32 %v2445, %v2573
        %v2702 = vadd.f32 %v2446, %v2574
        %v2703 = vadd.f32 %v2447, %v2575
        %v2704 = vadd.f32 %v2448, %v2576
        %v2705 = vadd.f32 %v2449, %v2577
        %v2706 = vadd.f32 %v2450, %v2578
        %v2707 = vadd.f32 %v2451, %v2579
        %v2708 = vadd.f32 %v2452, %v2580
        %v2709 = vadd.f32 %v2453, %v2581
        %v2710 = vadd.f32 %v2454, %v2582
        %v2711 = vadd.f32 %v2455, %v2583
        %v2712 = vadd.f32 %v2456, %v2584
        %v2713 = vadd.f32 %v2457, %v2585
        %v2714 = vadd.f32 %v2458, %v2586
        %v2715 = vadd.f32 %v2459, %v2587
        %v2716 = vadd.f32 %v2460, %v2588
        %v2717 = vadd.f32 %v2461, %v2589
        %v2718 = vadd.f32 %v2462, %v2590
        %v2719 = vadd.f32 %v2463, %v2591
        %v2720 = vadd.f32 %v2464, %v2592
        %v2721 = vadd.f32 %v2465, %v2593
        %v2722 = vadd.f32 %v2466, %v2594
        %v2723 = vadd.f32 %v2467, %v2595
        %v2724 = vadd.f32 %v2468, %v2596
        %v2725 = vadd.f32 %v2469, %v2597
        %v2726 = vadd.f32 %v2470, %v2598
        %v2727 = vadd.f32 %v2471, %v2599
        %v2728 = vadd.f32 %v2472, %v2600
        %v2729 = vadd.f32 %v2473, %v2601
        %v2730 = vadd.f32 %v2474, %v2602
        %v2731 = vadd.f32 %v2475, %v2603
        %v2732 = vadd.f32 %v2476, %v2604
        %v2733 = vadd.f32 %v2477, %v2605
        %v2734 = vadd.f32 %v2478, %v2606
        %v2735 = vadd.f32 %v2479, %v2607
        %v2736 = vadd.f32 %v2480, %v2608
        %v2737 = vadd.f32 %v2481, %v2609
        %v2738 = vadd.f32 %v2482, %v2610
        %v2739 = vadd.f32 %v2483, %v2611
        %v2740 = vadd.f32 %v2484, %v2612
        %v2741 = vadd.f32 %v2485, %v2613
        %v2742 = vadd.f32 %v2486, %v2614
        %v2743 = vadd.f32 %v2487, %v2615
        %v2744 = vadd.f32 %v2488, %v2616
        %v2745 = vadd.f32 %v2489, %v2617
        %v2746 = vadd.f32 %v2490, %v2618
        %v2747 = vadd.f32 %v2491, %v2619
        %v2748 = vadd.f32 %v2492, %v2620
        %v2749 = vadd.f32 %v2493, %v2621
        %v2750 = vadd.f32 %v2494, %v2622
        %v2751 = vadd.f32 %v2495, %v2623
        %v2752 = vadd.f32 %v2496, %v2624
        %v2753 = vadd.f32 %v2497, %v2625
        %v2754 = vadd.f32 %v2498, %v2626
        %v2755 = vadd.f32 %v2499, %v2627
        %v2756 = vadd.f32 %v2500, %v2628
        %v2757 = vadd.f32 %v2501, %v2629
        %v2758 = vadd.f32 %v2502, %v2630
        %v2759 = vadd.f32 %v2503, %v2631
        %v2760 = vadd.f32 %v2504, %v2632
        %v2761 = vadd.f32 %v2505, %v2633
        %v2762 = vadd.f32 %v2506, %v2634
        %v2763 = vadd.f32 %v2507, %v2635
        %v2764 = vadd.f32 %v2508, %v2636
        %v2765 = vadd.f32 %v2509, %v2637
        %v2766 = vadd.f32 %v2510, %v2638
        %v2767 = vadd.f32 %v2511, %v2639
        %v2768 = vadd.f32 %v2512, %v2640
        %v2769 = vadd.f32 %v2513, %v2641
        %v2770 = vadd.f32 %v2514, %v2642
        %v2771 = vadd.f32 %v2515, %v2643
        %v2772 = vadd.f32 %v2516, %v2644
        %v2773 = vadd.f32 %v2517, %v2645
        %v2774 = vadd.f32 %v2518, %v2646
        %v2775 = vadd.f32 %v2519, %v2647
        %v2776 = vadd.f32 %v2520, %v2648
        %v2777 = vadd.f32 %v2521, %v2649
        %v2778 = vadd.f32 %v2522, %v2650
        %v2779 = vadd.f32 %v2523, %v2651
        %v2780 = vadd.f32 %v2524, %v2652
        %v2781 = vadd.f32 %v2525, %v2653
        %v2782 = vadd.f32 %v2526, %v2654
        %v2783 = vadd.f32 %v2527, %v2655
        %v2784 = vadd.f32 %v2528, %v2656
        %v2785 = vadd.f32 %v2529, %v2657
        %v2786 = vadd.f32 %v2530, %v2658
        %v2787 = vadd.f32 %v2531, %v2659
        %v2788 = vadd.f32 %v2532, %v2660
        %v2789 = vadd.f32 %v2533, %v2661
        %v2790 = vadd.f32 %v2534, %v2662
        %v2791 = vadd.f32 %v2535, %v2663
        %v2792 = vadd.f32 %v2536, %v2664
        %v2793 = vadd.f32 %v2537, %v2665
        %v2794 = vadd.f32 %v2538, %v2666
        %v2795 = vadd.f32 %v2539, %v2667
        %v2796 = vadd.f32 %v2540, %v2668
        %v2797 = vadd.f32 %v2541, %v2669
        %v2798 = vadd.f32 %v2542, %v2670
        %v2799 = vadd.f32 %v2543, %v2671
        %v2800 = vld [vmem:[%s2] sm:$0xff]
        %v2801 = vld [vmem:[%s2 + $0x8] sm:$0xff]
        %v2802 = vld [vmem:[%s2 + $0x10] sm:$0xff]
        %v2803 = vld [vmem:[%s2 + $0x18] sm:$0xff]
        %v2804 = vld [vmem:[%s2 + $0x20] sm:$0xff]
        %v2805 = vld [vmem:[%s2 + $0x28] sm:$0xff]
        %v2806 = vld [vmem:[%s2 + $0x30] sm:$0xff]
        %v2807 = vld [vmem:[%s2 + $0x38] sm:$0xff]
        %2808 = vmatpush.msra.mxu0 %v2792
        %2809 = vmatpush.msra.mxu0 %v2784
        %2810 = vmatpush.msra.mxu0 %v2776
        %2811 = vmatpush.msra.mxu0 %v2768
        %2812 = vmatpush.msra.mxu0 %v2760
        %2813 = vmatpush.msra.mxu0 %v2752
        %2814 = vmatpush.msra.mxu0 %v2744
        %2815 = vmatpush.msra.mxu0 %v2736
        %2816 = vmatpush.msra.mxu0 %v2728
        %2817 = vmatpush.msra.mxu0 %v2720
        %2818 = vmatpush.msra.mxu0 %v2712
        %2819 = vmatpush.msra.mxu0 %v2704
        %2820 = vmatpush.msra.mxu0 %v2696
        %2821 = vmatpush.msra.mxu0 %v2688
        %2822 = vmatpush.msra.mxu0 %v2680
        %2823 = vmatpush.msra.mxu0 %v2672
        %2824 = vmatmul.f32.gmra.mxu0 %v2800
        %v2825 = vpop.f32.mrf.mxu0
        %v2826 = vadd.f32 1e-05, %v2825
        %2827 = vmatmul.f32.gmra.mxu0 %v2801
        %v2828 = vpop.f32.mrf.mxu0
        %v2829 = vadd.f32 1e-05, %v2828
        %2830 = vmatmul.f32.gmra.mxu0 %v2802
        %v2831 = vpop.f32.mrf.mxu0
        %v2832 = vadd.f32 1e-05, %v2831
        %2833 = vmatmul.f32.gmra.mxu0 %v2803
        %v2834 = vpop.f32.mrf.mxu0
        %v2835 = vadd.f32 1e-05, %v2834
        %2836 = vmatmul.f32.gmra.mxu0 %v2804
        %v2837 = vpop.f32.mrf.mxu0
        %v2838 = vadd.f32 1e-05, %v2837
        %2839 = vmatmul.f32.gmra.mxu0 %v2805
        %v2840 = vpop.f32.mrf.mxu0
        %v2841 = vadd.f32 1e-05, %v2840
        %2842 = vmatmul.f32.gmra.mxu0 %v2806
        %v2843 = vpop.f32.mrf.mxu0
        %v2844 = vadd.f32 1e-05, %v2843
        %2845 = vmatmul.f32.gmra.mxu0 %v2807
        %v2846 = vpop.f32.mrf.mxu0
        %v2847 = vadd.f32 1e-05, %v2846
        %2848 = vdwg.mxu0
        %2849 = vmatpush.msra.mxu0 %v2793
        %2850 = vmatpush.msra.mxu0 %v2785
        %2851 = vmatpush.msra.mxu0 %v2777
        %2852 = vmatpush.msra.mxu0 %v2769
        %2853 = vmatpush.msra.mxu0 %v2761
        %2854 = vmatpush.msra.mxu0 %v2753
        %2855 = vmatpush.msra.mxu0 %v2745
        %2856 = vmatpush.msra.mxu0 %v2737
        %2857 = vmatpush.msra.mxu0 %v2729
        %2858 = vmatpush.msra.mxu0 %v2721
        %2859 = vmatpush.msra.mxu0 %v2713
        %2860 = vmatpush.msra.mxu0 %v2705
        %2861 = vmatpush.msra.mxu0 %v2697
        %2862 = vmatpush.msra.mxu0 %v2689
        %2863 = vmatpush.msra.mxu0 %v2681
        %2864 = vmatpush.msra.mxu0 %v2673
        %2865 = vmatmul.f32.gmra.mxu0 %v2800
        %v2866 = vpop.f32.mrf.mxu0
        %v2867 = vadd.f32 1e-05, %v2866
        %2868 = vmatmul.f32.gmra.mxu0 %v2801
        %v2869 = vpop.f32.mrf.mxu0
        %v2870 = vadd.f32 1e-05, %v2869
        %2871 = vmatmul.f32.gmra.mxu0 %v2802
        %v2872 = vpop.f32.mrf.mxu0
        %v2873 = vadd.f32 1e-05, %v2872
        %2874 = vmatmul.f32.gmra.mxu0 %v2803
        %v2875 = vpop.f32.mrf.mxu0
        %v2876 = vadd.f32 1e-05, %v2875
        %2877 = vmatmul.f32.gmra.mxu0 %v2804
        %v2878 = vpop.f32.mrf.mxu0
        %v2879 = vadd.f32 1e-05, %v2878
        %2880 = vmatmul.f32.gmra.mxu0 %v2805
        %v2881 = vpop.f32.mrf.mxu0
        %v2882 = vadd.f32 1e-05, %v2881
        %2883 = vmatmul.f32.gmra.mxu0 %v2806
        %v2884 = vpop.f32.mrf.mxu0
        %v2885 = vadd.f32 1e-05, %v2884
        %2886 = vmatmul.f32.gmra.mxu0 %v2807
        %v2887 = vpop.f32.mrf.mxu0
        %v2888 = vadd.f32 1e-05, %v2887
        %2889 = vdwg.mxu0
        %2890 = vmatpush.msra.mxu0 %v2794
        %2891 = vmatpush.msra.mxu0 %v2786
        %2892 = vmatpush.msra.mxu0 %v2778
        %2893 = vmatpush.msra.mxu0 %v2770
        %2894 = vmatpush.msra.mxu0 %v2762
        %2895 = vmatpush.msra.mxu0 %v2754
        %2896 = vmatpush.msra.mxu0 %v2746
        %2897 = vmatpush.msra.mxu0 %v2738
        %2898 = vmatpush.msra.mxu0 %v2730
        %2899 = vmatpush.msra.mxu0 %v2722
        %2900 = vmatpush.msra.mxu0 %v2714
        %2901 = vmatpush.msra.mxu0 %v2706
        %2902 = vmatpush.msra.mxu0 %v2698
        %2903 = vmatpush.msra.mxu0 %v2690
        %2904 = vmatpush.msra.mxu0 %v2682
        %2905 = vmatpush.msra.mxu0 %v2674
        %2906 = vmatmul.f32.gmra.mxu0 %v2800
        %v2907 = vpop.f32.mrf.mxu0
        %v2908 = vadd.f32 1e-05, %v2907
        %2909 = vmatmul.f32.gmra.mxu0 %v2801
        %v2910 = vpop.f32.mrf.mxu0
        %v2911 = vadd.f32 1e-05, %v2910
        %2912 = vmatmul.f32.gmra.mxu0 %v2802
        %v2913 = vpop.f32.mrf.mxu0
        %v2914 = vadd.f32 1e-05, %v2913
        %2915 = vmatmul.f32.gmra.mxu0 %v2803
        %v2916 = vpop.f32.mrf.mxu0
        %v2917 = vadd.f32 1e-05, %v2916
        %2918 = vmatmul.f32.gmra.mxu0 %v2804
        %v2919 = vpop.f32.mrf.mxu0
        %v2920 = vadd.f32 1e-05, %v2919
        %2921 = vmatmul.f32.gmra.mxu0 %v2805
        %v2922 = vpop.f32.mrf.mxu0
        %v2923 = vadd.f32 1e-05, %v2922
        %2924 = vmatmul.f32.gmra.mxu0 %v2806
        %v2925 = vpop.f32.mrf.mxu0
        %v2926 = vadd.f32 1e-05, %v2925
        %2927 = vmatmul.f32.gmra.mxu0 %v2807
        %v2928 = vpop.f32.mrf.mxu0
        %v2929 = vadd.f32 1e-05, %v2928
        %2930 = vdwg.mxu0
        %2931 = vmatpush.msra.mxu0 %v2795
        %2932 = vmatpush.msra.mxu0 %v2787
        %2933 = vmatpush.msra.mxu0 %v2779
        %2934 = vmatpush.msra.mxu0 %v2771
        %2935 = vmatpush.msra.mxu0 %v2763
        %2936 = vmatpush.msra.mxu0 %v2755
        %2937 = vmatpush.msra.mxu0 %v2747
        %2938 = vmatpush.msra.mxu0 %v2739
        %2939 = vmatpush.msra.mxu0 %v2731
        %2940 = vmatpush.msra.mxu0 %v2723
        %2941 = vmatpush.msra.mxu0 %v2715
        %2942 = vmatpush.msra.mxu0 %v2707
        %2943 = vmatpush.msra.mxu0 %v2699
        %2944 = vmatpush.msra.mxu0 %v2691
        %2945 = vmatpush.msra.mxu0 %v2683
        %2946 = vmatpush.msra.mxu0 %v2675
        %2947 = vmatmul.f32.gmra.mxu0 %v2800
        %v2948 = vpop.f32.mrf.mxu0
        %v2949 = vadd.f32 1e-05, %v2948
        %2950 = vmatmul.f32.gmra.mxu0 %v2801
        %v2951 = vpop.f32.mrf.mxu0
        %v2952 = vadd.f32 1e-05, %v2951
        %2953 = vmatmul.f32.gmra.mxu0 %v2802
        %v2954 = vpop.f32.mrf.mxu0
        %v2955 = vadd.f32 1e-05, %v2954
        %2956 = vmatmul.f32.gmra.mxu0 %v2803
        %v2957 = vpop.f32.mrf.mxu0
        %v2958 = vadd.f32 1e-05, %v2957
        %2959 = vmatmul.f32.gmra.mxu0 %v2804
        %v2960 = vpop.f32.mrf.mxu0
        %v2961 = vadd.f32 1e-05, %v2960
        %2962 = vmatmul.f32.gmra.mxu0 %v2805
        %v2963 = vpop.f32.mrf.mxu0
        %v2964 = vadd.f32 1e-05, %v2963
        %2965 = vmatmul.f32.gmra.mxu0 %v2806
        %v2966 = vpop.f32.mrf.mxu0
        %v2967 = vadd.f32 1e-05, %v2966
        %2968 = vmatmul.f32.gmra.mxu0 %v2807
        %v2969 = vpop.f32.mrf.mxu0
        %v2970 = vadd.f32 1e-05, %v2969
        %2971 = vdwg.mxu0
        %2972 = vmatpush.msra.mxu0 %v2796
        %2973 = vmatpush.msra.mxu0 %v2788
        %2974 = vmatpush.msra.mxu0 %v2780
        %2975 = vmatpush.msra.mxu0 %v2772
        %2976 = vmatpush.msra.mxu0 %v2764
        %2977 = vmatpush.msra.mxu0 %v2756
        %2978 = vmatpush.msra.mxu0 %v2748
        %2979 = vmatpush.msra.mxu0 %v2740
        %2980 = vmatpush.msra.mxu0 %v2732
        %2981 = vmatpush.msra.mxu0 %v2724
        %2982 = vmatpush.msra.mxu0 %v2716
        %2983 = vmatpush.msra.mxu0 %v2708
        %2984 = vmatpush.msra.mxu0 %v2700
        %2985 = vmatpush.msra.mxu0 %v2692
        %2986 = vmatpush.msra.mxu0 %v2684
        %2987 = vmatpush.msra.mxu0 %v2676
        %2988 = vmatmul.f32.gmra.mxu0 %v2800
        %v2989 = vpop.f32.mrf.mxu0
        %v2990 = vadd.f32 1e-05, %v2989
        %2991 = vmatmul.f32.gmra.mxu0 %v2801
        %v2992 = vpop.f32.mrf.mxu0
        %v2993 = vadd.f32 1e-05, %v2992
        %2994 = vmatmul.f32.gmra.mxu0 %v2802
        %v2995 = vpop.f32.mrf.mxu0
        %v2996 = vadd.f32 1e-05, %v2995
        %2997 = vmatmul.f32.gmra.mxu0 %v2803
        %v2998 = vpop.f32.mrf.mxu0
        %v2999 = vadd.f32 1e-05, %v2998
        %3000 = vmatmul.f32.gmra.mxu0 %v2804
        %v3001 = vpop.f32.mrf.mxu0
        %v3002 = vadd.f32 1e-05, %v3001
        %3003 = vmatmul.f32.gmra.mxu0 %v2805
        %v3004 = vpop.f32.mrf.mxu0
        %v3005 = vadd.f32 1e-05, %v3004
        %3006 = vmatmul.f32.gmra.mxu0 %v2806
        %v3007 = vpop.f32.mrf.mxu0
        %v3008 = vadd.f32 1e-05, %v3007
        %3009 = vmatmul.f32.gmra.mxu0 %v2807
        %v3010 = vpop.f32.mrf.mxu0
        %v3011 = vadd.f32 1e-05, %v3010
        %3012 = vdwg.mxu0
        %3013 = vmatpush.msra.mxu0 %v2797
        %3014 = vmatpush.msra.mxu0 %v2789
        %3015 = vmatpush.msra.mxu0 %v2781
        %3016 = vmatpush.msra.mxu0 %v2773
        %3017 = vmatpush.msra.mxu0 %v2765
        %3018 = vmatpush.msra.mxu0 %v2757
        %3019 = vmatpush.msra.mxu0 %v2749
        %3020 = vmatpush.msra.mxu0 %v2741
        %3021 = vmatpush.msra.mxu0 %v2733
        %3022 = vmatpush.msra.mxu0 %v2725
        %3023 = vmatpush.msra.mxu0 %v2717
        %3024 = vmatpush.msra.mxu0 %v2709
        %3025 = vmatpush.msra.mxu0 %v2701
        %3026 = vmatpush.msra.mxu0 %v2693
        %3027 = vmatpush.msra.mxu0 %v2685
        %3028 = vmatpush.msra.mxu0 %v2677
        %3029 = vmatmul.f32.gmra.mxu0 %v2800
        %v3030 = vpop.f32.mrf.mxu0
        %v3031 = vadd.f32 1e-05, %v3030
        %3032 = vmatmul.f32.gmra.mxu0 %v2801
        %v3033 = vpop.f32.mrf.mxu0
        %v3034 = vadd.f32 1e-05, %v3033
        %3035 = vmatmul.f32.gmra.mxu0 %v2802
        %v3036 = vpop.f32.mrf.mxu0
        %v3037 = vadd.f32 1e-05, %v3036
        %3038 = vmatmul.f32.gmra.mxu0 %v2803
        %v3039 = vpop.f32.mrf.mxu0
        %v3040 = vadd.f32 1e-05, %v3039
        %3041 = vmatmul.f32.gmra.mxu0 %v2804
        %v3042 = vpop.f32.mrf.mxu0
        %v3043 = vadd.f32 1e-05, %v3042
        %3044 = vmatmul.f32.gmra.mxu0 %v2805
        %v3045 = vpop.f32.mrf.mxu0
        %v3046 = vadd.f32 1e-05, %v3045
        %3047 = vmatmul.f32.gmra.mxu0 %v2806
        %v3048 = vpop.f32.mrf.mxu0
        %v3049 = vadd.f32 1e-05, %v3048
        %3050 = vmatmul.f32.gmra.mxu0 %v2807
        %v3051 = vpop.f32.mrf.mxu0
        %v3052 = vadd.f32 1e-05, %v3051
        %3053 = vdwg.mxu0
        %3054 = vmatpush.msra.mxu0 %v2798
        %3055 = vmatpush.msra.mxu0 %v2790
        %3056 = vmatpush.msra.mxu0 %v2782
        %3057 = vmatpush.msra.mxu0 %v2774
        %3058 = vmatpush.msra.mxu0 %v2766
        %3059 = vmatpush.msra.mxu0 %v2758
        %3060 = vmatpush.msra.mxu0 %v2750
        %3061 = vmatpush.msra.mxu0 %v2742
        %3062 = vmatpush.msra.mxu0 %v2734
        %3063 = vmatpush.msra.mxu0 %v2726
        %3064 = vmatpush.msra.mxu0 %v2718
        %3065 = vmatpush.msra.mxu0 %v2710
        %3066 = vmatpush.msra.mxu0 %v2702
        %3067 = vmatpush.msra.mxu0 %v2694
        %3068 = vmatpush.msra.mxu0 %v2686
        %3069 = vmatpush.msra.mxu0 %v2678
        %3070 = vmatmul.f32.gmra.mxu0 %v2800
        %v3071 = vpop.f32.mrf.mxu0
        %v3072 = vadd.f32 1e-05, %v3071
        %3073 = vmatmul.f32.gmra.mxu0 %v2801
        %v3074 = vpop.f32.mrf.mxu0
        %v3075 = vadd.f32 1e-05, %v3074
        %3076 = vmatmul.f32.gmra.mxu0 %v2802
        %v3077 = vpop.f32.mrf.mxu0
        %v3078 = vadd.f32 1e-05, %v3077
        %3079 = vmatmul.f32.gmra.mxu0 %v2803
        %v3080 = vpop.f32.mrf.mxu0
        %v3081 = vadd.f32 1e-05, %v3080
        %3082 = vmatmul.f32.gmra.mxu0 %v2804
        %v3083 = vpop.f32.mrf.mxu0
        %v3084 = vadd.f32 1e-05, %v3083
        %3085 = vmatmul.f32.gmra.mxu0 %v2805
        %v3086 = vpop.f32.mrf.mxu0
        %v3087 = vadd.f32 1e-05, %v3086
        %3088 = vmatmul.f32.gmra.mxu0 %v2806
        %v3089 = vpop.f32.mrf.mxu0
        %v3090 = vadd.f32 1e-05, %v3089
        %3091 = vmatmul.f32.gmra.mxu0 %v2807
        %v3092 = vpop.f32.mrf.mxu0
        %v3093 = vadd.f32 1e-05, %v3092
        %3094 = vdwg.mxu0
        %3095 = vmatpush.msra.mxu0 %v2799
        %3096 = vmatpush.msra.mxu0 %v2791
        %3097 = vmatpush.msra.mxu0 %v2783
        %3098 = vmatpush.msra.mxu0 %v2775
        %3099 = vmatpush.msra.mxu0 %v2767
        %3100 = vmatpush.msra.mxu0 %v2759
        %3101 = vmatpush.msra.mxu0 %v2751
        %3102 = vmatpush.msra.mxu0 %v2743
        %3103 = vmatpush.msra.mxu0 %v2735
        %3104 = vmatpush.msra.mxu0 %v2727
        %3105 = vmatpush.msra.mxu0 %v2719
        %3106 = vmatpush.msra.mxu0 %v2711
        %3107 = vmatpush.msra.mxu0 %v2703
        %3108 = vmatpush.msra.mxu0 %v2695
        %3109 = vmatpush.msra.mxu0 %v2687
        %3110 = vmatpush.msra.mxu0 %v2679
        %3111 = vmatmul.f32.gmra.mxu0 %v2800
        %v3112 = vpop.f32.mrf.mxu0
        %v3113 = vadd.f32 1e-05, %v3112
        %3114 = vmatmul.f32.gmra.mxu0 %v2801
        %v3115 = vpop.f32.mrf.mxu0
        %v3116 = vadd.f32 1e-05, %v3115
        %3117 = vmatmul.f32.gmra.mxu0 %v2802
        %v3118 = vpop.f32.mrf.mxu0
        %v3119 = vadd.f32 1e-05, %v3118
        %3120 = vmatmul.f32.gmra.mxu0 %v2803
        %v3121 = vpop.f32.mrf.mxu0
        %v3122 = vadd.f32 1e-05, %v3121
        %3123 = vmatmul.f32.gmra.mxu0 %v2804
        %v3124 = vpop.f32.mrf.mxu0
        %v3125 = vadd.f32 1e-05, %v3124
        %3126 = vmatmul.f32.gmra.mxu0 %v2805
        %v3127 = vpop.f32.mrf.mxu0
        %v3128 = vadd.f32 1e-05, %v3127
        %3129 = vmatmul.f32.gmra.mxu0 %v2806
        %v3130 = vpop.f32.mrf.mxu0
        %v3131 = vadd.f32 1e-05, %v3130
        %3132 = vmatmul.f32.gmra.mxu0 %v2807
        %v3133 = vpop.f32.mrf.mxu0
        %v3134 = vadd.f32 1e-05, %v3133
        %3135 = vdwg.mxu0
        %v3136 = vlog2.pop %v2826
        %v3137 = vmul.f32 %v3136, 0.6931472
        %v3138 = vlog2.pop %v2867
        %v3139 = vmul.f32 %v3138, 0.6931472
        %v3140 = vlog2.pop %v2908
        %v3141 = vmul.f32 %v3140, 0.6931472
        %v3142 = vlog2.pop %v2949
        %v3143 = vmul.f32 %v3142, 0.6931472
        %v3144 = vlog2.pop %v2990
        %v3145 = vmul.f32 %v3144, 0.6931472
        %v3146 = vlog2.pop %v3031
        %v3147 = vmul.f32 %v3146, 0.6931472
        %v3148 = vlog2.pop %v3072
        %v3149 = vmul.f32 %v3148, 0.6931472
        %v3150 = vlog2.pop %v3113
        %v3151 = vmul.f32 %v3150, 0.6931472
        %v3152 = vlog2.pop %v2829
        %v3153 = vmul.f32 %v3152, 0.6931472
        %v3154 = vlog2.pop %v2870
        %v3155 = vmul.f32 %v3154, 0.6931472
        %v3156 = vlog2.pop %v2911
        %v3157 = vmul.f32 %v3156, 0.6931472
        %v3158 = vlog2.pop %v2952
        %v3159 = vmul.f32 %v3158, 0.6931472
        %v3160 = vlog2.pop %v2993
        %v3161 = vmul.f32 %v3160, 0.6931472
        %v3162 = vlog2.pop %v3034
        %v3163 = vmul.f32 %v3162, 0.6931472
        %v3164 = vlog2.pop %v3075
        %v3165 = vmul.f32 %v3164, 0.6931472
        %v3166 = vlog2.pop %v3116
        %v3167 = vmul.f32 %v3166, 0.6931472
        %v3168 = vlog2.pop %v2832
        %v3169 = vmul.f32 %v3168, 0.6931472
        %v3170 = vlog2.pop %v2873
        %v3171 = vmul.f32 %v3170, 0.6931472
        %v3172 = vlog2.pop %v2914
        %v3173 = vmul.f32 %v3172, 0.6931472
        %v3174 = vlog2.pop %v2955
        %v3175 = vmul.f32 %v3174, 0.6931472
        %v3176 = vlog2.pop %v2996
        %v3177 = vmul.f32 %v3176, 0.6931472
        %v3178 = vlog2.pop %v3037
        %v3179 = vmul.f32 %v3178, 0.6931472
        %v3180 = vlog2.pop %v3078
        %v3181 = vmul.f32 %v3180, 0.6931472
        %v3182 = vlog2.pop %v3119
        %v3183 = vmul.f32 %v3182, 0.6931472
        %v3184 = vlog2.pop %v2835
        %v3185 = vmul.f32 %v3184, 0.6931472
        %v3186 = vlog2.pop %v2876
        %v3187 = vmul.f32 %v3186, 0.6931472
        %v3188 = vlog2.pop %v2917
        %v3189 = vmul.f32 %v3188, 0.6931472
        %v3190 = vlog2.pop %v2958
        %v3191 = vmul.f32 %v3190, 0.6931472
        %v3192 = vlog2.pop %v2999
        %v3193 = vmul.f32 %v3192, 0.6931472
        %v3194 = vlog2.pop %v3040
        %v3195 = vmul.f32 %v3194, 0.6931472
        %v3196 = vlog2.pop %v3081
        %v3197 = vmul.f32 %v3196, 0.6931472
        %v3198 = vlog2.pop %v3122
        %v3199 = vmul.f32 %v3198, 0.6931472
        %v3200 = vlog2.pop %v2838
        %v3201 = vmul.f32 %v3200, 0.6931472
        %v3202 = vlog2.pop %v2879
        %v3203 = vmul.f32 %v3202, 0.6931472
        %v3204 = vlog2.pop %v2920
        %v3205 = vmul.f32 %v3204, 0.6931472
        %v3206 = vlog2.pop %v2961
        %v3207 = vmul.f32 %v3206, 0.6931472
        %v3208 = vlog2.pop %v3002
        %v3209 = vmul.f32 %v3208, 0.6931472
        %v3210 = vlog2.pop %v3043
        %v3211 = vmul.f32 %v3210, 0.6931472
        %v3212 = vlog2.pop %v3084
        %v3213 = vmul.f32 %v3212, 0.6931472
        %v3214 = vlog2.pop %v3125
        %v3215 = vmul.f32 %v3214, 0.6931472
        %v3216 = vlog2.pop %v2841
        %v3217 = vmul.f32 %v3216, 0.6931472
        %v3218 = vlog2.pop %v2882
        %v3219 = vmul.f32 %v3218, 0.6931472
        %v3220 = vlog2.pop %v2923
        %v3221 = vmul.f32 %v3220, 0.6931472
        %v3222 = vlog2.pop %v2964
        %v3223 = vmul.f32 %v3222, 0.6931472
        %v3224 = vlog2.pop %v3005
        %v3225 = vmul.f32 %v3224, 0.6931472
        %v3226 = vlog2.pop %v3046
        %v3227 = vmul.f32 %v3226, 0.6931472
        %v3228 = vlog2.pop %v3087
        %v3229 = vmul.f32 %v3228, 0.6931472
        %v3230 = vlog2.pop %v3128
        %v3231 = vmul.f32 %v3230, 0.6931472
        %v3232 = vlog2.pop %v2844
        %v3233 = vmul.f32 %v3232, 0.6931472
        %v3234 = vlog2.pop %v2885
        %v3235 = vmul.f32 %v3234, 0.6931472
        %v3236 = vlog2.pop %v2926
        %v3237 = vmul.f32 %v3236, 0.6931472
        %v3238 = vlog2.pop %v2967
        %v3239 = vmul.f32 %v3238, 0.6931472
        %v3240 = vlog2.pop %v3008
        %v3241 = vmul.f32 %v3240, 0.6931472
        %v3242 = vlog2.pop %v3049
        %v3243 = vmul.f32 %v3242, 0.6931472
        %v3244 = vlog2.pop %v3090
        %v3245 = vmul.f32 %v3244, 0.6931472
        %v3246 = vlog2.pop %v3131
        %v3247 = vmul.f32 %v3246, 0.6931472
        %v3248 = vlog2.pop %v2847
        %v3249 = vmul.f32 %v3248, 0.6931472
        %v3250 = vlog2.pop %v2888
        %v3251 = vmul.f32 %v3250, 0.6931472
        %v3252 = vlog2.pop %v2929
        %v3253 = vmul.f32 %v3252, 0.6931472
        %v3254 = vlog2.pop %v2970
        %v3255 = vmul.f32 %v3254, 0.6931472
        %v3256 = vlog2.pop %v3011
        %v3257 = vmul.f32 %v3256, 0.6931472
        %v3258 = vlog2.pop %v3052
        %v3259 = vmul.f32 %v3258, 0.6931472
        %v3260 = vlog2.pop %v3093
        %v3261 = vmul.f32 %v3260, 0.6931472
        %v3262 = vlog2.pop %v3134
        %v3263 = vmul.f32 %v3262, 0.6931472
        %v3264 = vadd.f32 %v3137, 4.5
        %v3265 = vadd.f32 %v3139, 4.5
        %v3266 = vadd.f32 %v3141, 4.5
        %v3267 = vadd.f32 %v3143, 4.5
        %v3268 = vadd.f32 %v3145, 4.5
        %v3269 = vadd.f32 %v3147, 4.5
        %v3270 = vadd.f32 %v3149, 4.5
        %v3271 = vadd.f32 %v3151, 4.5
        %v3272 = vadd.f32 %v3153, 4.5
        %v3273 = vadd.f32 %v3155, 4.5
        %v3274 = vadd.f32 %v3157, 4.5
        %v3275 = vadd.f32 %v3159, 4.5
        %v3276 = vadd.f32 %v3161, 4.5
        %v3277 = vadd.f32 %v3163, 4.5
        %v3278 = vadd.f32 %v3165, 4.5
        %v3279 = vadd.f32 %v3167, 4.5
        %v3280 = vadd.f32 %v3169, 4.5
        %v3281 = vadd.f32 %v3171, 4.5
        %v3282 = vadd.f32 %v3173, 4.5
        %v3283 = vadd.f32 %v3175, 4.5
        %v3284 = vadd.f32 %v3177, 4.5
        %v3285 = vadd.f32 %v3179, 4.5
        %v3286 = vadd.f32 %v3181, 4.5
        %v3287 = vadd.f32 %v3183, 4.5
        %v3288 = vadd.f32 %v3185, 4.5
        %v3289 = vadd.f32 %v3187, 4.5
        %v3290 = vadd.f32 %v3189, 4.5
        %v3291 = vadd.f32 %v3191, 4.5
        %v3292 = vadd.f32 %v3193, 4.5
        %v3293 = vadd.f32 %v3195, 4.5
        %v3294 = vadd.f32 %v3197, 4.5
        %v3295 = vadd.f32 %v3199, 4.5
        %v3296 = vadd.f32 %v3201, 4.5
        %v3297 = vadd.f32 %v3203, 4.5
        %v3298 = vadd.f32 %v3205, 4.5
        %v3299 = vadd.f32 %v3207, 4.5
        %v3300 = vadd.f32 %v3209, 4.5
        %v3301 = vadd.f32 %v3211, 4.5
        %v3302 = vadd.f32 %v3213, 4.5
        %v3303 = vadd.f32 %v3215, 4.5
        %v3304 = vadd.f32 %v3217, 4.5
        %v3305 = vadd.f32 %v3219, 4.5
        %v3306 = vadd.f32 %v3221, 4.5
        %v3307 = vadd.f32 %v3223, 4.5
        %v3308 = vadd.f32 %v3225, 4.5
        %v3309 = vadd.f32 %v3227, 4.5
        %v3310 = vadd.f32 %v3229, 4.5
        %v3311 = vadd.f32 %v3231, 4.5
        %v3312 = vadd.f32 %v3233, 4.5
        %v3313 = vadd.f32 %v3235, 4.5
        %v3314 = vadd.f32 %v3237, 4.5
        %v3315 = vadd.f32 %v3239, 4.5
        %v3316 = vadd.f32 %v3241, 4.5
        %v3317 = vadd.f32 %v3243, 4.5
        %v3318 = vadd.f32 %v3245, 4.5
        %v3319 = vadd.f32 %v3247, 4.5
        %v3320 = vadd.f32 %v3249, 4.5
        %v3321 = vadd.f32 %v3251, 4.5
        %v3322 = vadd.f32 %v3253, 4.5
        %v3323 = vadd.f32 %v3255, 4.5
        %v3324 = vadd.f32 %v3257, 4.5
        %v3325 = vadd.f32 %v3259, 4.5
        %v3326 = vadd.f32 %v3261, 4.5
        %v3327 = vadd.f32 %v3263, 4.5
        %v3328 = vmul.f32 %v3264, 0.2
        %v3329 = vmul.f32 %v3265, 0.2
        %v3330 = vmul.f32 %v3266, 0.2
        %v3331 = vmul.f32 %v3267, 0.2
        %v3332 = vmul.f32 %v3268, 0.2
        %v3333 = vmul.f32 %v3269, 0.2
        %v3334 = vmul.f32 %v3270, 0.2
        %v3335 = vmul.f32 %v3271, 0.2
        %v3336 = vmul.f32 %v3272, 0.2
        %v3337 = vmul.f32 %v3273, 0.2
        %v3338 = vmul.f32 %v3274, 0.2
        %v3339 = vmul.f32 %v3275, 0.2
        %v3340 = vmul.f32 %v3276, 0.2
        %v3341 = vmul.f32 %v3277, 0.2
        %v3342 = vmul.f32 %v3278, 0.2
        %v3343 = vmul.f32 %v3279, 0.2
        %v3344 = vmul.f32 %v3280, 0.2
        %v3345 = vmul.f32 %v3281, 0.2
        %v3346 = vmul.f32 %v3282, 0.2
        %v3347 = vmul.f32 %v3283, 0.2
        %v3348 = vmul.f32 %v3284, 0.2
        %v3349 = vmul.f32 %v3285, 0.2
        %v3350 = vmul.f32 %v3286, 0.2
        %v3351 = vmul.f32 %v3287, 0.2
        %v3352 = vmul.f32 %v3288, 0.2
        %v3353 = vmul.f32 %v3289, 0.2
        %v3354 = vmul.f32 %v3290, 0.2
        %v3355 = vmul.f32 %v3291, 0.2
        %v3356 = vmul.f32 %v3292, 0.2
        %v3357 = vmul.f32 %v3293, 0.2
        %v3358 = vmul.f32 %v3294, 0.2
        %v3359 = vmul.f32 %v3295, 0.2
        %v3360 = vmul.f32 %v3296, 0.2
        %v3361 = vmul.f32 %v3297, 0.2
        %v3362 = vmul.f32 %v3298, 0.2
        %v3363 = vmul.f32 %v3299, 0.2
        %v3364 = vmul.f32 %v3300, 0.2
        %v3365 = vmul.f32 %v3301, 0.2
        %v3366 = vmul.f32 %v3302, 0.2
        %v3367 = vmul.f32 %v3303, 0.2
        %v3368 = vmul.f32 %v3304, 0.2
        %v3369 = vmul.f32 %v3305, 0.2
        %v3370 = vmul.f32 %v3306, 0.2
        %v3371 = vmul.f32 %v3307, 0.2
        %v3372 = vmul.f32 %v3308, 0.2
        %v3373 = vmul.f32 %v3309, 0.2
        %v3374 = vmul.f32 %v3310, 0.2
        %v3375 = vmul.f32 %v3311, 0.2
        %v3376 = vmul.f32 %v3312, 0.2
        %v3377 = vmul.f32 %v3313, 0.2
        %v3378 = vmul.f32 %v3314, 0.2
        %v3379 = vmul.f32 %v3315, 0.2
        %v3380 = vmul.f32 %v3316, 0.2
        %v3381 = vmul.f32 %v3317, 0.2
        %v3382 = vmul.f32 %v3318, 0.2
        %v3383 = vmul.f32 %v3319, 0.2
        %v3384 = vmul.f32 %v3320, 0.2
        %v3385 = vmul.f32 %v3321, 0.2
        %v3386 = vmul.f32 %v3322, 0.2
        %v3387 = vmul.f32 %v3323, 0.2
        %v3388 = vmul.f32 %v3324, 0.2
        %v3389 = vmul.f32 %v3325, 0.2
        %v3390 = vmul.f32 %v3326, 0.2
        %v3391 = vmul.f32 %v3327, 0.2
        %v3392 = vlaneseq
        %v3393 = vand.u32 %v3392, 127
        %v3394 = vadd.s32 %v3393, 128
        %v3395 = vadd.s32 %v3393, 256
        %v3396 = vadd.s32 %v3393, 384
        %v3397 = vadd.s32 %v3393, 512
        %v3398 = vadd.s32 %v3393, 640
        %v3399 = vadd.s32 %v3393, 768
        %v3400 = vadd.s32 %v3393, 896
        %vm3401 = vcmp.lt.s32.totalorder %v3393, 32
        %vm3402 = vcmp.lt.s32.totalorder %v3394, 32
        %vm3403 = vcmp.lt.s32.totalorder %v3395, 32
        %vm3404 = vcmp.lt.s32.totalorder %v3396, 32
        %vm3405 = vcmp.lt.s32.totalorder %v3397, 32
        %vm3406 = vcmp.lt.s32.totalorder %v3398, 32
        %vm3407 = vcmp.lt.s32.totalorder %v3399, 32
        %vm3408 = vcmp.lt.s32.totalorder %v3400, 32
        %v3409 = vsel %vm3401, %v3328, 0.9
        %v3410 = vsel %vm3402, %v3329, 0.9
        %v3411 = vsel %vm3403, %v3330, 0.9
        %v3412 = vsel %vm3404, %v3331, 0.9
        %v3413 = vsel %vm3405, %v3332, 0.9
        %v3414 = vsel %vm3406, %v3333, 0.9
        %v3415 = vsel %vm3407, %v3334, 0.9
        %v3416 = vsel %vm3408, %v3335, 0.9
        %v3417 = vsel %vm3401, %v3336, 0.9
        %v3418 = vsel %vm3402, %v3337, 0.9
        %v3419 = vsel %vm3403, %v3338, 0.9
        %v3420 = vsel %vm3404, %v3339, 0.9
        %v3421 = vsel %vm3405, %v3340, 0.9
        %v3422 = vsel %vm3406, %v3341, 0.9
        %v3423 = vsel %vm3407, %v3342, 0.9
        %v3424 = vsel %vm3408, %v3343, 0.9
        %v3425 = vsel %vm3401, %v3344, 0.9
        %v3426 = vsel %vm3402, %v3345, 0.9
        %v3427 = vsel %vm3403, %v3346, 0.9
        %v3428 = vsel %vm3404, %v3347, 0.9
        %v3429 = vsel %vm3405, %v3348, 0.9
        %v3430 = vsel %vm3406, %v3349, 0.9
        %v3431 = vsel %vm3407, %v3350, 0.9
        %v3432 = vsel %vm3408, %v3351, 0.9
        %v3433 = vsel %vm3401, %v3352, 0.9
        %v3434 = vsel %vm3402, %v3353, 0.9
        %v3435 = vsel %vm3403, %v3354, 0.9
        %v3436 = vsel %vm3404, %v3355, 0.9
        %v3437 = vsel %vm3405, %v3356, 0.9
        %v3438 = vsel %vm3406, %v3357, 0.9
        %v3439 = vsel %vm3407, %v3358, 0.9
        %v3440 = vsel %vm3408, %v3359, 0.9
        %v3441 = vsel %vm3401, %v3360, 0.9
        %v3442 = vsel %vm3402, %v3361, 0.9
        %v3443 = vsel %vm3403, %v3362, 0.9
        %v3444 = vsel %vm3404, %v3363, 0.9
        %v3445 = vsel %vm3405, %v3364, 0.9
        %v3446 = vsel %vm3406, %v3365, 0.9
        %v3447 = vsel %vm3407, %v3366, 0.9
        %v3448 = vsel %vm3408, %v3367, 0.9
        %v3449 = vsel %vm3401, %v3368, 0.9
        %v3450 = vsel %vm3402, %v3369, 0.9
        %v3451 = vsel %vm3403, %v3370, 0.9
        %v3452 = vsel %vm3404, %v3371, 0.9
        %v3453 = vsel %vm3405, %v3372, 0.9
        %v3454 = vsel %vm3406, %v3373, 0.9
        %v3455 = vsel %vm3407, %v3374, 0.9
        %v3456 = vsel %vm3408, %v3375, 0.9
        %v3457 = vsel %vm3401, %v3376, 0.9
        %v3458 = vsel %vm3402, %v3377, 0.9
        %v3459 = vsel %vm3403, %v3378, 0.9
        %v3460 = vsel %vm3404, %v3379, 0.9
        %v3461 = vsel %vm3405, %v3380, 0.9
        %v3462 = vsel %vm3406, %v3381, 0.9
        %v3463 = vsel %vm3407, %v3382, 0.9
        %v3464 = vsel %vm3408, %v3383, 0.9
        %v3465 = vsel %vm3401, %v3384, 0.9
        %v3466 = vsel %vm3402, %v3385, 0.9
        %v3467 = vsel %vm3403, %v3386, 0.9
        %v3468 = vsel %vm3404, %v3387, 0.9
        %v3469 = vsel %vm3405, %v3388, 0.9
        %v3470 = vsel %vm3406, %v3389, 0.9
        %v3471 = vsel %vm3407, %v3390, 0.9
        %v3472 = vsel %vm3408, %v3391, 0.9
        %3473 = vst [vmem:[%s163] sm:$0xff] %v3409
        %3474 = vst [vmem:[%s163 + $0x8] sm:$0xff] %v3410
        %3475 = vst [vmem:[%s163 + $0x10] sm:$0xff] %v3411
        %3476 = vst [vmem:[%s163 + $0x18] sm:$0xff] %v3412
        %3477 = vst [vmem:[%s163 + $0x20] sm:$0xff] %v3413
        %3478 = vst [vmem:[%s163 + $0x28] sm:$0xff] %v3414
        %3479 = vst [vmem:[%s163 + $0x30] sm:$0xff] %v3415
        %vm3480 = vcmask 850944
        %3481 = vst.msk [vmem:[%s163 + $0x38] sm:$0xff] %vm3480, %v3416
        %3482 = vst [vmem:[%s163 + $0x40] sm:$0xff] %v3417
        %3483 = vst [vmem:[%s163 + $0x48] sm:$0xff] %v3418
        %3484 = vst [vmem:[%s163 + $0x50] sm:$0xff] %v3419
        %3485 = vst [vmem:[%s163 + $0x58] sm:$0xff] %v3420
        %3486 = vst [vmem:[%s163 + $0x60] sm:$0xff] %v3421
        %3487 = vst [vmem:[%s163 + $0x68] sm:$0xff] %v3422
        %3488 = vst [vmem:[%s163 + $0x70] sm:$0xff] %v3423
        %3489 = vst.msk [vmem:[%s163 + $0x78] sm:$0xff] %vm3480, %v3424
        %3490 = vst [vmem:[%s163 + $0x80] sm:$0xff] %v3425
        %3491 = vst [vmem:[%s163 + $0x88] sm:$0xff] %v3426
        %3492 = vst [vmem:[%s163 + $0x90] sm:$0xff] %v3427
        %3493 = vst [vmem:[%s163 + $0x98] sm:$0xff] %v3428
        %3494 = vst [vmem:[%s163 + $0xa0] sm:$0xff] %v3429
        %3495 = vst [vmem:[%s163 + $0xa8] sm:$0xff] %v3430
        %3496 = vst [vmem:[%s163 + $0xb0] sm:$0xff] %v3431
        %3497 = vst.msk [vmem:[%s163 + $0xb8] sm:$0xff] %vm3480, %v3432
        %3498 = vst [vmem:[%s163 + $0xc0] sm:$0xff] %v3433
        %3499 = vst [vmem:[%s163 + $0xc8] sm:$0xff] %v3434
        %3500 = vst [vmem:[%s163 + $0xd0] sm:$0xff] %v3435
        %3501 = vst [vmem:[%s163 + $0xd8] sm:$0xff] %v3436
        %3502 = vst [vmem:[%s163 + $0xe0] sm:$0xff] %v3437
        %3503 = vst [vmem:[%s163 + $0xe8] sm:$0xff] %v3438
        %3504 = vst [vmem:[%s163 + $0xf0] sm:$0xff] %v3439
        %3505 = vst.msk [vmem:[%s163 + $0xf8] sm:$0xff] %vm3480, %v3440
        %3506 = vst [vmem:[%s163 + $0x100] sm:$0xff] %v3441
        %3507 = vst [vmem:[%s163 + $0x108] sm:$0xff] %v3442
        %3508 = vst [vmem:[%s163 + $0x110] sm:$0xff] %v3443
        %3509 = vst [vmem:[%s163 + $0x118] sm:$0xff] %v3444
        %3510 = vst [vmem:[%s163 + $0x120] sm:$0xff] %v3445
        %3511 = vst [vmem:[%s163 + $0x128] sm:$0xff] %v3446
        %3512 = vst [vmem:[%s163 + $0x130] sm:$0xff] %v3447
        %3513 = vst.msk [vmem:[%s163 + $0x138] sm:$0xff] %vm3480, %v3448
        %3514 = vst [vmem:[%s163 + $0x140] sm:$0xff] %v3449
        %3515 = vst [vmem:[%s163 + $0x148] sm:$0xff] %v3450
        %3516 = vst [vmem:[%s163 + $0x150] sm:$0xff] %v3451
        %3517 = vst [vmem:[%s163 + $0x158] sm:$0xff] %v3452
        %3518 = vst [vmem:[%s163 + $0x160] sm:$0xff] %v3453
        %3519 = vst [vmem:[%s163 + $0x168] sm:$0xff] %v3454
        %3520 = vst [vmem:[%s163 + $0x170] sm:$0xff] %v3455
        %3521 = vst.msk [vmem:[%s163 + $0x178] sm:$0xff] %vm3480, %v3456
        %3522 = vst [vmem:[%s163 + $0x180] sm:$0xff] %v3457
        %3523 = vst [vmem:[%s163 + $0x188] sm:$0xff] %v3458
        %3524 = vst [vmem:[%s163 + $0x190] sm:$0xff] %v3459
        %3525 = vst [vmem:[%s163 + $0x198] sm:$0xff] %v3460
        %3526 = vst [vmem:[%s163 + $0x1a0] sm:$0xff] %v3461
        %3527 = vst [vmem:[%s163 + $0x1a8] sm:$0xff] %v3462
        %3528 = vst [vmem:[%s163 + $0x1b0] sm:$0xff] %v3463
        %3529 = vst.msk [vmem:[%s163 + $0x1b8] sm:$0xff] %vm3480, %v3464
        %3530 = vst [vmem:[%s163 + $0x1c0] sm:$0xff] %v3465
        %3531 = vst [vmem:[%s163 + $0x1c8] sm:$0xff] %v3466
        %3532 = vst [vmem:[%s163 + $0x1d0] sm:$0xff] %v3467
        %3533 = vst [vmem:[%s163 + $0x1d8] sm:$0xff] %v3468
        %3534 = vst [vmem:[%s163 + $0x1e0] sm:$0xff] %v3469
        %3535 = vst [vmem:[%s163 + $0x1e8] sm:$0xff] %v3470
        %3536 = vst [vmem:[%s163 + $0x1f0] sm:$0xff] %v3471
        %3537 = vst.msk [vmem:[%s163 + $0x1f8] sm:$0xff] %vm3480, %v3472
        %s3538 = sand.u32 %s93, 1
        %s3539 = scalar_lea.sflag [#allocation3], %s3538
        %s3540 = sand.u32 %s93, 1
        %s3541 = smul.addr %s3540, 512
        %s3542 = scalar_lea.vmem [#allocation2], %s3541
        // Predicated region
        $region33: #{_lambda_.1} parent=31 // pred_check
          %p3543 = pneg %p103
        $region34: #{_lambda_.1} parent=31 // pred_check_branch
          %3545 = sbr.rel (%p3543) target = $region36
        $region35: #{_lambda_.1} parent=31 // pred_region
          %3547 = vsyncadd %s3539, 0
          %s3548 = smul.addr %s17, 64
          %s3549 = smul.addr %s3548, 8
          %s3550 = scalar_lea.hbm %s3, %s3549
          %s3551 = sshll.u32 %s3542, 4
          %s3552 = int_to_ptr.vmem [resolvable:$true] %s3551
          %s3553 = sshll.u32 %s3550, 4
          %s3554 = int_to_ptr.hbm [resolvable:$true] %s3553
          %3559 = dma.vmem_to_hbm [thread:$0]  %s3552, 8192, %s3554, %s3539, 1024, 1024, 64
        $region36: #{_lambda_.1} parent=31 // pred_fallthru
          _
      $region32: #{_lambda_.1} parent=5 // pred_fallthru
        _
      %p3560 = scmp.le.s32.totalorder 2, %s12
      // Predicated region
      $region37: #{_lambda_.1} parent=5 // pred_check
        %p3561 = pneg %p3560
      $region38: #{_lambda_.1} parent=5 // pred_check_branch
        %3563 = sbr.rel (%p3561) target = $region40
      $region39: #{_lambda_.1} parent=5 // pred_region
        %s3564 = ssub.s32 %s12, 2
        // Predicated region
        $region41: #{_lambda_.1} parent=39 // pred_check
          %p3565 = pneg %p109
        $region42: #{_lambda_.1} parent=39 // pred_check_branch
          %3567 = sbr.rel (%p3565) target = $region44
        $region43: #{_lambda_.1} parent=39 // pred_region
          %s3568 = sand.u32 %s94, 1
          %s3569 = scalar_lea.sflag [#allocation3], %s3568
          %s3570 = sand.u32 %s94, 1
          %s3571 = smul.addr %s3570, 512
          %s3572 = scalar_lea.vmem [#allocation2], %s3571
          %3574 = dma.done %s3569, 8192
        $region44: #{_lambda_.1} parent=39 // pred_fallthru
          _
      $region40: #{_lambda_.1} parent=5 // pred_fallthru
        _
    $region6: #{_lambda_.1} parent=1 // loop_footer
      %s16 = sadd.s32 1, %s12
    $region7: #{_lambda_.1} parent=1 // loop_footer_branch
      %11 = sbr.rel target = $region3
    $region8: #{_lambda_.1} parent=1 // loop_exit
      _
    %3575 = vsyncpa [#allocation3], 1
    %s3576 = scalar_lea.sflag [#allocation3], 1
    %3577 = vsyncpa %s3576, 1

</llo_original>
